<compile_context>
chip_gen: v6e
topology: v6e:2x2x1
jax: 0.10.0
libtpu: 0.0.40
codegen_flags: <defaults>
</compile_context>

<pallas_src>
import math

import numpy as np
import jax
import jax.numpy as jnp
from jax import lax
from jax.experimental import pallas as pl
from jax.experimental.pallas import tpu as pltpu


def _avg_matrix_np(in_size, out_size):
    """PyTorch AdaptiveAvgPool bin-averaging matrix (out_size, in_size)."""
    A = np.zeros((out_size, in_size), np.float32)
    for o in range(out_size):
        s = (o * in_size) // out_size
        e = -(-((o + 1) * in_size) // out_size)
        A[o, s:e] = 1.0 / (e - s)
    return A


def comp_feature_extractor(x_nchw, params):
    w1, b1 = params['w1'], params['b1']
    w2, b2 = params['w2'], params['b2']
    N, C, H, W = x_nchw.shape
    C1, Cin, K1, _ = w1.shape          # (8, 3, 11, 11)
    C2 = w2.shape[0]                   # 32
    assert Cin == C == 3 and K1 == 11 and w2.shape[1] == C1

    # ------------------------- static geometry (trace time) -------------------------
    Hp, Wp = H + 4, W + 4                                   # conv1 pad = 2
    GH, GW = -(-Hp // 4), -(-Wp // 4)                       # space-to-depth grid (stride 4)
    GHW = GH * GW
    OH1, OW1 = (Hp - 11) // 4 + 1, (Wp - 11) // 4 + 1       # conv1 output
    L1 = (OH1 - 1) * GW + OW1                               # flattened conv1 extent (row stride GW)
    P1H, P1W = (OH1 - 3) // 2 + 1, (OW1 - 3) // 2 + 1       # maxpool1 output
    LM1 = 2 * (P1H - 1) * GW + 2 * (P1W - 1) + 1            # dense-max extent for pool1
    LW2 = P1W + 2                                           # conv2 zero-padded row stride
    L2P = (P1H + 2) * LW2                                   # conv2 zero-padded input extent
    OH2, OW2 = P1H, P1W                                     # conv2 output (3x3, pad 1, s1)
    L2 = (OH2 - 1) * LW2 + OW2
    P2H, P2W = (OH2 - 3) // 2 + 1, (OW2 - 3) // 2 + 1       # maxpool2 output
    LM2 = 2 * (P2H - 1) * LW2 + 2 * (P2W - 1) + 1
    OUT_HW = 6 * 6

    # --------------- input re-layout: pad + space-to-depth(4), lane-dense -----------
    # (single cheap relayout of the input itself -- no patch duplication)
    xpad = jnp.pad(x_nchw, ((0, 0), (0, 0),
                            (2, GH * 4 - H - 2), (2, GW * 4 - W - 2)))
    xs = xpad.reshape(N, C, GH, 4, GW, 4).transpose(0, 1, 3, 5, 2, 4)
    xs = xs.reshape(N, C * 16, GHW).astype(jnp.float32)     # (N, 48, GH*GW)

    # conv1 weights: pad 11->12 and regroup into 9 stride-1 taps over 48 s2d channels
    w1p = jnp.pad(w1, ((0, 0), (0, 0), (0, 1), (0, 1)))                 # (C1, C, 12, 12)
    w1r = w1p.reshape(C1, C, 3, 4, 3, 4).transpose(2, 4, 0, 1, 3, 5)
    w1r = w1r.reshape(9, C1, C * 16).astype(jnp.float32)                # tap = p*3+q
    b1r = b1.reshape(C1, 1).astype(jnp.float32)
    w2r = w2.transpose(2, 3, 0, 1).reshape(9, C2, C1).astype(jnp.float32)  # tap = kh*3+kw
    b2r = b2.reshape(C2, 1).astype(jnp.float32)

    # maxpool1 stride-2 subsample + conv2 zero-padding, as a one-hot selection matrix
    S1 = np.zeros((LM1, L2P), np.float32)
    for ph in range(P1H):
        for pw in range(P1W):
            S1[2 * ph * GW + 2 * pw, (ph + 1) * LW2 + (pw + 1)] = 1.0

    # maxpool2 stride-2 subsample + AdaptiveAvgPool(6,6), as one constant matrix
    Ah = _avg_matrix_np(P2H, 6)
    Aw = _avg_matrix_np(P2W, 6)
    S2 = np.zeros((LM2, OUT_HW), np.float32)
    for ph in range(P2H):
        for pw in range(P2W):
            S2[2 * ph * LW2 + 2 * pw, :] += np.outer(Ah[:, ph], Aw[:, pw]).ravel()

    # -------------------------- the fused kernel (one image/step) -------------------
    def kernel(xs_ref, w1_ref, b1_ref, w2_ref, b2_ref, s1_ref, s2_ref,
               out_ref, r1_ref, p1_ref, r2_ref):
        # conv1 + ReLU: 9 accumulated (C1 x 48) @ (48 x L1) MXU matmuls on shifted slices.
        acc = jnp.dot(w1_ref[0], xs_ref[:, pl.ds(0, L1)],
                      preferred_element_type=jnp.float32)
        for t in range(1, 9):
            p, q = divmod(t, 3)
            acc = acc + jnp.dot(w1_ref[t], xs_ref[:, pl.ds(p * GW + q, L1)],
                                preferred_element_type=jnp.float32)
        r1_ref[...] = jnp.maximum(acc + b1_ref[...], 0.0)

        # maxpool1 3x3/2: dense shifted max (VPU, row-then-column for a short dep chain)
        # + subsample / zero-pad one-hot matmul (MXU).
        rows1 = []
        for dh in range(3):
            r = r1_ref[:, pl.ds(dh * GW + 0, LM1)]
            r = jnp.maximum(r, r1_ref[:, pl.ds(dh * GW + 1, LM1)])
            r = jnp.maximum(r, r1_ref[:, pl.ds(dh * GW + 2, LM1)])
            rows1.append(r)
        m1 = jnp.maximum(jnp.maximum(rows1[0], rows1[1]), rows1[2])
        p1_ref[...] = jnp.dot(m1, s1_ref[...], preferred_element_type=jnp.float32)

        # conv2 (3x3, pad 1) + ReLU: 9 accumulated (C2 x C1) @ (C1 x L2) matmuls.
        acc2 = jnp.dot(w2_ref[0], p1_ref[:, pl.ds(0, L2)],
                       preferred_element_type=jnp.float32)
        for t in range(1, 9):
            kh, kw = divmod(t, 3)
            acc2 = acc2 + jnp.dot(w2_ref[t], p1_ref[:, pl.ds(kh * LW2 + kw, L2)],
                                  preferred_element_type=jnp.float32)
        r2_ref[...] = jnp.maximum(acc2 + b2_ref[...], 0.0)

        # maxpool2 3x3/2 + AdaptiveAvgPool(6,6): shifted max + one averaging matmul.
        rows2 = []
        for dh in range(3):
            r = r2_ref[:, pl.ds(dh * LW2 + 0, LM2)]
            r = jnp.maximum(r, r2_ref[:, pl.ds(dh * LW2 + 1, LM2)])
            r = jnp.maximum(r, r2_ref[:, pl.ds(dh * LW2 + 2, LM2)])
            rows2.append(r)
        m2 = jnp.maximum(jnp.maximum(rows2[0], rows2[1]), rows2[2])
        out_ref[...] = jnp.dot(m2, s2_ref[...], preferred_element_type=jnp.float32)

    out = pl.pallas_call(
        kernel,
        out_shape=jax.ShapeDtypeStruct((N, C2, OUT_HW), jnp.float32),
        grid=(N,),
        in_specs=[
            pl.BlockSpec((None, C * 16, GHW), lambda n: (n, 0, 0)),   # s2d input
            pl.BlockSpec((9, C1, C * 16), lambda n: (0, 0, 0)),       # conv1 taps
            pl.BlockSpec((C1, 1), lambda n: (0, 0)),                  # b1
            pl.BlockSpec((9, C2, C1), lambda n: (0, 0, 0)),           # conv2 taps
            pl.BlockSpec((C2, 1), lambda n: (0, 0)),                  # b2
            pl.BlockSpec((LM1, L2P), lambda n: (0, 0)),               # pool1 selection
            pl.BlockSpec((LM2, OUT_HW), lambda n: (0, 0)),            # pool2+avgpool
        ],
        out_specs=pl.BlockSpec((None, C2, OUT_HW), lambda n: (n, 0, 0)),
        scratch_shapes=[
            pltpu.VMEM((C1, L1), jnp.float32),    # conv1+relu (flattened, lane-dense)
            pltpu.VMEM((C1, L2P), jnp.float32),   # pool1, zero-padded for conv2
            pltpu.VMEM((C2, L2), jnp.float32),    # conv2+relu
        ],
        compiler_params=pltpu.CompilerParams(
            dimension_semantics=("parallel",)),   # batch across TensorCores on v7x
    )(xs, w1r, b1r, w2r, b2r, jnp.asarray(S1), jnp.asarray(S2))

    return out.reshape(N, C2, 6, 6)               # NCHW, matches PyTorch


# ------------------------------- pure-JAX reference ---------------------------------

def reference(x, params):
    def conv(x, w, b, stride, pad):
        y = lax.conv_general_dilated(
            x, w, (stride, stride), [(pad, pad), (pad, pad)],
            dimension_numbers=('NCHW', 'OIHW', 'NCHW'))
        return jnp.maximum(y + b.reshape(1, -1, 1, 1), 0.0)

    def mp(x):
        return lax.reduce_window(x, -jnp.inf, lax.max,
                                 (1, 1, 3, 3), (1, 1, 2, 2), 'VALID')

    def aap(x, oh, ow):
        N, C, H, W = x.shape
        rows = []
        for i in range(oh):
            hs, he = (i * H) // oh, math.ceil((i + 1) * H / oh)
            cols = []
            for j in range(ow):
                ws, we = (j * W) // ow, math.ceil((j + 1) * W / ow)
                cols.append(jnp.mean(x[:, :, hs:he, ws:we], axis=(2, 3)))
            rows.append(jnp.stack(cols, axis=-1))
        return jnp.stack(rows, axis=-2)

    x = conv(x, params['w1'], params['b1'], 4, 2)
    x = mp(x)
    x = conv(x, params['w2'], params['b2'], 1, 1)
    x = mp(x)
    return aap(x, 6, 6)


# --------------------------------------- main ---------------------------------------

if __name__ == "__main__":
    key = jax.random.PRNGKey(0)
    k1, k2, k3, k4, kx = jax.random.split(key, 5)

    fan1 = 3 * 11 * 11
    fan2 = 8 * 3 * 3
    b1s = 1.0 / math.sqrt(fan1)
    b2s = 1.0 / math.sqrt(fan2)
    params = {
        'w1': jax.random.uniform(k1, (8, 3, 11, 11), jnp.float32, -b1s, b1s),
        'b1': jax.random.uniform(k2, (8,), jnp.float32, -b1s, b1s),
        'w2': jax.random.uniform(k3, (32, 8, 3, 3), jnp.float32, -b2s, b2s),
        'b2': jax.random.uniform(k4, (32,), jnp.float32, -b2s, b2s),
    }

    x = jax.random.normal(kx, (2, 3, 64, 64), jnp.float32)   # NCHW, SVHN/AlexNet-style small

    fwd = jax.jit(comp_feature_extractor)
    out = jax.block_until_ready(fwd(x, params))
    ref = jax.block_until_ready(reference(x, params))

    assert out.shape == (2, 32, 6, 6), out.shape
    err = float(jnp.max(jnp.abs(out - ref)))
    assert err < 1e-3, f"max abs err {err}"
    print("KERNEL_OK")
</pallas_src>

<mosaic_0001>
module attributes {stable_mosaic.version = 11 : i64} {
  func.func @kernel(%arg0: i32, %arg1: memref<1x48x289xf32, #tpu.memory_space<vmem>>, %arg2: memref<9x8x48xf32, #tpu.memory_space<vmem>>, %arg3: memref<8x1xf32, #tpu.memory_space<vmem>>, %arg4: memref<9x32x8xf32, #tpu.memory_space<vmem>>, %arg5: memref<32x1xf32, #tpu.memory_space<vmem>>, %arg6: memref<217x81xf32, #tpu.memory_space<vmem>>, %arg7: memref<41x36xf32, #tpu.memory_space<vmem>>, %arg8: memref<1x32x36xf32, #tpu.memory_space<vmem>>, %arg9: memref<8x253xf32, #tpu.memory_space<vmem>>, %arg10: memref<8x81xf32, #tpu.memory_space<vmem>>, %arg11: memref<32x61xf32, #tpu.memory_space<vmem>>) attributes {dimension_semantics = [#tpu.dimension_semantics<parallel>], iteration_bounds = array<i64: 2>, scalar_prefetch = 0 : i64, scratch_operands = 3 : i64, tpu.core_type = #tpu.core_type<tc>, window_params = [{transform_indices = @transform_0, window_bounds = array<i64: 1, 48, 289>}, {pipeline_mode = #tpu.pipeline_mode<synchronous>, transform_indices = @transform_1, window_bounds = array<i64: 9, 8, 48>}, {pipeline_mode = #tpu.pipeline_mode<synchronous>, transform_indices = @transform_2, window_bounds = array<i64: 8, 1>}, {pipeline_mode = #tpu.pipeline_mode<synchronous>, transform_indices = @transform_3, window_bounds = array<i64: 9, 32, 8>}, {pipeline_mode = #tpu.pipeline_mode<synchronous>, transform_indices = @transform_4, window_bounds = array<i64: 32, 1>}, {pipeline_mode = #tpu.pipeline_mode<synchronous>, transform_indices = @transform_5, window_bounds = array<i64: 217, 81>}, {pipeline_mode = #tpu.pipeline_mode<synchronous>, transform_indices = @transform_6, window_bounds = array<i64: 41, 36>}, {transform_indices = @transform_7, window_bounds = array<i64: 1, 32, 36>}]} {
    %c0 = arith.constant 0 : index
    %c0_0 = arith.constant 0 : index
    %c0_1 = arith.constant 0 : index
    %0 = vector.load %arg2[%c0, %c0_0, %c0_1] : memref<9x8x48xf32, #tpu.memory_space<vmem>>, vector<1x8x48xf32>
    %1 = vector.shape_cast %0 : vector<1x8x48xf32> to vector<8x48xf32>
    %c0_2 = arith.constant 0 : index
    %c0_3 = arith.constant 0 : index
    %c0_4 = arith.constant 0 : index
    %2 = vector.load %arg1[%c0_2, %c0_3, %c0_4] : memref<1x48x289xf32, #tpu.memory_space<vmem>>, vector<1x48x253xf32>
    %3 = vector.shape_cast %2 : vector<1x48x253xf32> to vector<48x253xf32>
    %cst = arith.constant dense<0.000000e+00> : vector<8x253xf32>
    %4 = tpu.matmul %1, %3, %cst {dimension_numbers = #tpu.dot_dimension_numbers<[1], [0], [0], [1], [0, 0, 1, 1], [], []>} : vector<8x48xf32>, vector<48x253xf32>, vector<8x253xf32> -> vector<8x253xf32>
    %c1 = arith.constant 1 : index
    %c0_5 = arith.constant 0 : index
    %c0_6 = arith.constant 0 : index
    %5 = vector.load %arg2[%c1, %c0_5, %c0_6] : memref<9x8x48xf32, #tpu.memory_space<vmem>>, vector<1x8x48xf32>
    %6 = vector.shape_cast %5 : vector<1x8x48xf32> to vector<8x48xf32>
    %c0_7 = arith.constant 0 : index
    %c0_8 = arith.constant 0 : index
    %c1_9 = arith.constant 1 : index
    %7 = vector.load %arg1[%c0_7, %c0_8, %c1_9] : memref<1x48x289xf32, #tpu.memory_space<vmem>>, vector<1x48x253xf32>
    %8 = vector.shape_cast %7 : vector<1x48x253xf32> to vector<48x253xf32>
    %cst_10 = arith.constant dense<0.000000e+00> : vector<8x253xf32>
    %9 = tpu.matmul %6, %8, %cst_10 {dimension_numbers = #tpu.dot_dimension_numbers<[1], [0], [0], [1], [0, 0, 1, 1], [], []>} : vector<8x48xf32>, vector<48x253xf32>, vector<8x253xf32> -> vector<8x253xf32>
    %10 = arith.addf %4, %9 : vector<8x253xf32>
    %c2 = arith.constant 2 : index
    %c0_11 = arith.constant 0 : index
    %c0_12 = arith.constant 0 : index
    %11 = vector.load %arg2[%c2, %c0_11, %c0_12] : memref<9x8x48xf32, #tpu.memory_space<vmem>>, vector<1x8x48xf32>
    %12 = vector.shape_cast %11 : vector<1x8x48xf32> to vector<8x48xf32>
    %c0_13 = arith.constant 0 : index
    %c0_14 = arith.constant 0 : index
    %c2_15 = arith.constant 2 : index
    %13 = vector.load %arg1[%c0_13, %c0_14, %c2_15] : memref<1x48x289xf32, #tpu.memory_space<vmem>>, vector<1x48x253xf32>
    %14 = vector.shape_cast %13 : vector<1x48x253xf32> to vector<48x253xf32>
    %cst_16 = arith.constant dense<0.000000e+00> : vector<8x253xf32>
    %15 = tpu.matmul %12, %14, %cst_16 {dimension_numbers = #tpu.dot_dimension_numbers<[1], [0], [0], [1], [0, 0, 1, 1], [], []>} : vector<8x48xf32>, vector<48x253xf32>, vector<8x253xf32> -> vector<8x253xf32>
    %16 = arith.addf %10, %15 : vector<8x253xf32>
    %c3 = arith.constant 3 : index
    %c0_17 = arith.constant 0 : index
    %c0_18 = arith.constant 0 : index
    %17 = vector.load %arg2[%c3, %c0_17, %c0_18] : memref<9x8x48xf32, #tpu.memory_space<vmem>>, vector<1x8x48xf32>
    %18 = vector.shape_cast %17 : vector<1x8x48xf32> to vector<8x48xf32>
    %c0_19 = arith.constant 0 : index
    %c0_20 = arith.constant 0 : index
    %c17 = arith.constant 17 : index
    %19 = vector.load %arg1[%c0_19, %c0_20, %c17] : memref<1x48x289xf32, #tpu.memory_space<vmem>>, vector<1x48x253xf32>
    %20 = vector.shape_cast %19 : vector<1x48x253xf32> to vector<48x253xf32>
    %cst_21 = arith.constant dense<0.000000e+00> : vector<8x253xf32>
    %21 = tpu.matmul %18, %20, %cst_21 {dimension_numbers = #tpu.dot_dimension_numbers<[1], [0], [0], [1], [0, 0, 1, 1], [], []>} : vector<8x48xf32>, vector<48x253xf32>, vector<8x253xf32> -> vector<8x253xf32>
    %22 = arith.addf %16, %21 : vector<8x253xf32>
    %c4 = arith.constant 4 : index
    %c0_22 = arith.constant 0 : index
    %c0_23 = arith.constant 0 : index
    %23 = vector.load %arg2[%c4, %c0_22, %c0_23] : memref<9x8x48xf32, #tpu.memory_space<vmem>>, vector<1x8x48xf32>
    %24 = vector.shape_cast %23 : vector<1x8x48xf32> to vector<8x48xf32>
    %c0_24 = arith.constant 0 : index
    %c0_25 = arith.constant 0 : index
    %c18 = arith.constant 18 : index
    %25 = vector.load %arg1[%c0_24, %c0_25, %c18] : memref<1x48x289xf32, #tpu.memory_space<vmem>>, vector<1x48x253xf32>
    %26 = vector.shape_cast %25 : vector<1x48x253xf32> to vector<48x253xf32>
    %cst_26 = arith.constant dense<0.000000e+00> : vector<8x253xf32>
    %27 = tpu.matmul %24, %26, %cst_26 {dimension_numbers = #tpu.dot_dimension_numbers<[1], [0], [0], [1], [0, 0, 1, 1], [], []>} : vector<8x48xf32>, vector<48x253xf32>, vector<8x253xf32> -> vector<8x253xf32>
    %28 = arith.addf %22, %27 : vector<8x253xf32>
    %c5 = arith.constant 5 : index
    %c0_27 = arith.constant 0 : index
    %c0_28 = arith.constant 0 : index
    %29 = vector.load %arg2[%c5, %c0_27, %c0_28] : memref<9x8x48xf32, #tpu.memory_space<vmem>>, vector<1x8x48xf32>
    %30 = vector.shape_cast %29 : vector<1x8x48xf32> to vector<8x48xf32>
    %c0_29 = arith.constant 0 : index
    %c0_30 = arith.constant 0 : index
    %c19 = arith.constant 19 : index
    %31 = vector.load %arg1[%c0_29, %c0_30, %c19] : memref<1x48x289xf32, #tpu.memory_space<vmem>>, vector<1x48x253xf32>
    %32 = vector.shape_cast %31 : vector<1x48x253xf32> to vector<48x253xf32>
    %cst_31 = arith.constant dense<0.000000e+00> : vector<8x253xf32>
    %33 = tpu.matmul %30, %32, %cst_31 {dimension_numbers = #tpu.dot_dimension_numbers<[1], [0], [0], [1], [0, 0, 1, 1], [], []>} : vector<8x48xf32>, vector<48x253xf32>, vector<8x253xf32> -> vector<8x253xf32>
    %34 = arith.addf %28, %33 : vector<8x253xf32>
    %c6 = arith.constant 6 : index
    %c0_32 = arith.constant 0 : index
    %c0_33 = arith.constant 0 : index
    %35 = vector.load %arg2[%c6, %c0_32, %c0_33] : memref<9x8x48xf32, #tpu.memory_space<vmem>>, vector<1x8x48xf32>
    %36 = vector.shape_cast %35 : vector<1x8x48xf32> to vector<8x48xf32>
    %c0_34 = arith.constant 0 : index
    %c0_35 = arith.constant 0 : index
    %c34 = arith.constant 34 : index
    %37 = vector.load %arg1[%c0_34, %c0_35, %c34] : memref<1x48x289xf32, #tpu.memory_space<vmem>>, vector<1x48x253xf32>
    %38 = vector.shape_cast %37 : vector<1x48x253xf32> to vector<48x253xf32>
    %cst_36 = arith.constant dense<0.000000e+00> : vector<8x253xf32>
    %39 = tpu.matmul %36, %38, %cst_36 {dimension_numbers = #tpu.dot_dimension_numbers<[1], [0], [0], [1], [0, 0, 1, 1], [], []>} : vector<8x48xf32>, vector<48x253xf32>, vector<8x253xf32> -> vector<8x253xf32>
    %40 = arith.addf %34, %39 : vector<8x253xf32>
    %c7 = arith.constant 7 : index
    %c0_37 = arith.constant 0 : index
    %c0_38 = arith.constant 0 : index
    %41 = vector.load %arg2[%c7, %c0_37, %c0_38] : memref<9x8x48xf32, #tpu.memory_space<vmem>>, vector<1x8x48xf32>
    %42 = vector.shape_cast %41 : vector<1x8x48xf32> to vector<8x48xf32>
    %c0_39 = arith.constant 0 : index
    %c0_40 = arith.constant 0 : index
    %c35 = arith.constant 35 : index
    %43 = vector.load %arg1[%c0_39, %c0_40, %c35] : memref<1x48x289xf32, #tpu.memory_space<vmem>>, vector<1x48x253xf32>
    %44 = vector.shape_cast %43 : vector<1x48x253xf32> to vector<48x253xf32>
    %cst_41 = arith.constant dense<0.000000e+00> : vector<8x253xf32>
    %45 = tpu.matmul %42, %44, %cst_41 {dimension_numbers = #tpu.dot_dimension_numbers<[1], [0], [0], [1], [0, 0, 1, 1], [], []>} : vector<8x48xf32>, vector<48x253xf32>, vector<8x253xf32> -> vector<8x253xf32>
    %46 = arith.addf %40, %45 : vector<8x253xf32>
    %c8 = arith.constant 8 : index
    %c0_42 = arith.constant 0 : index
    %c0_43 = arith.constant 0 : index
    %47 = vector.load %arg2[%c8, %c0_42, %c0_43] : memref<9x8x48xf32, #tpu.memory_space<vmem>>, vector<1x8x48xf32>
    %48 = vector.shape_cast %47 : vector<1x8x48xf32> to vector<8x48xf32>
    %c0_44 = arith.constant 0 : index
    %c0_45 = arith.constant 0 : index
    %c36 = arith.constant 36 : index
    %49 = vector.load %arg1[%c0_44, %c0_45, %c36] : memref<1x48x289xf32, #tpu.memory_space<vmem>>, vector<1x48x253xf32>
    %50 = vector.shape_cast %49 : vector<1x48x253xf32> to vector<48x253xf32>
    %cst_46 = arith.constant dense<0.000000e+00> : vector<8x253xf32>
    %51 = tpu.matmul %48, %50, %cst_46 {dimension_numbers = #tpu.dot_dimension_numbers<[1], [0], [0], [1], [0, 0, 1, 1], [], []>} : vector<8x48xf32>, vector<48x253xf32>, vector<8x253xf32> -> vector<8x253xf32>
    %52 = arith.addf %46, %51 : vector<8x253xf32>
    %c0_47 = arith.constant 0 : index
    %c0_48 = arith.constant 0 : index
    %53 = vector.load %arg3[%c0_47, %c0_48] : memref<8x1xf32, #tpu.memory_space<vmem>>, vector<8x1xf32>
    %54 = vector.broadcast %53 : vector<8x1xf32> to vector<8x253xf32>
    %55 = arith.addf %52, %54 : vector<8x253xf32>
    %cst_49 = arith.constant 0.000000e+00 : f32
    %56 = vector.broadcast %cst_49 : f32 to vector<8x253xf32>
    %57 = arith.maximumf %55, %56 : vector<8x253xf32>
    %c0_50 = arith.constant 0 : index
    %c0_51 = arith.constant 0 : index
    %58 = vector.load %arg9[%c0_50, %c0_51] : memref<8x253xf32, #tpu.memory_space<vmem>>, vector<8x253xf32>
    tpu.vector_store %arg9[%c0_50, %c0_51], %57 {strides = array<i32>} : memref<8x253xf32, #tpu.memory_space<vmem>>, vector<8x253xf32>,
    %c0_52 = arith.constant 0 : index
    %c0_53 = arith.constant 0 : index
    %59 = vector.load %arg9[%c0_52, %c0_53] : memref<8x253xf32, #tpu.memory_space<vmem>>, vector<8x217xf32>
    %c0_54 = arith.constant 0 : index
    %c1_55 = arith.constant 1 : index
    %60 = vector.load %arg9[%c0_54, %c1_55] : memref<8x253xf32, #tpu.memory_space<vmem>>, vector<8x217xf32>
    %61 = arith.maximumf %59, %60 : vector<8x217xf32>
    %c0_56 = arith.constant 0 : index
    %c2_57 = arith.constant 2 : index
    %62 = vector.load %arg9[%c0_56, %c2_57] : memref<8x253xf32, #tpu.memory_space<vmem>>, vector<8x217xf32>
    %63 = arith.maximumf %61, %62 : vector<8x217xf32>
    %c0_58 = arith.constant 0 : index
    %c17_59 = arith.constant 17 : index
    %64 = vector.load %arg9[%c0_58, %c17_59] : memref<8x253xf32, #tpu.memory_space<vmem>>, vector<8x217xf32>
    %c0_60 = arith.constant 0 : index
    %c18_61 = arith.constant 18 : index
    %65 = vector.load %arg9[%c0_60, %c18_61] : memref<8x253xf32, #tpu.memory_space<vmem>>, vector<8x217xf32>
    %66 = arith.maximumf %64, %65 : vector<8x217xf32>
    %c0_62 = arith.constant 0 : index
    %c19_63 = arith.constant 19 : index
    %67 = vector.load %arg9[%c0_62, %c19_63] : memref<8x253xf32, #tpu.memory_space<vmem>>, vector<8x217xf32>
    %68 = arith.maximumf %66, %67 : vector<8x217xf32>
    %c0_64 = arith.constant 0 : index
    %c34_65 = arith.constant 34 : index
    %69 = vector.load %arg9[%c0_64, %c34_65] : memref<8x253xf32, #tpu.memory_space<vmem>>, vector<8x217xf32>
    %c0_66 = arith.constant 0 : index
    %c35_67 = arith.constant 35 : index
    %70 = vector.load %arg9[%c0_66, %c35_67] : memref<8x253xf32, #tpu.memory_space<vmem>>, vector<8x217xf32>
    %71 = arith.maximumf %69, %70 : vector<8x217xf32>
    %c0_68 = arith.constant 0 : index
    %c36_69 = arith.constant 36 : index
    %72 = vector.load %arg9[%c0_68, %c36_69] : memref<8x253xf32, #tpu.memory_space<vmem>>, vector<8x217xf32>
    %73 = arith.maximumf %71, %72 : vector<8x217xf32>
    %74 = arith.maximumf %63, %68 : vector<8x217xf32>
    %75 = arith.maximumf %74, %73 : vector<8x217xf32>
    %c0_70 = arith.constant 0 : index
    %c0_71 = arith.constant 0 : index
    %76 = vector.load %arg6[%c0_70, %c0_71] : memref<217x81xf32, #tpu.memory_space<vmem>>, vector<217x81xf32>
    %cst_72 = arith.constant dense<0.000000e+00> : vector<8x81xf32>
    %77 = tpu.matmul %75, %76, %cst_72 {dimension_numbers = #tpu.dot_dimension_numbers<[1], [0], [0], [1], [0, 0, 1, 1], [], []>} : vector<8x217xf32>, vector<217x81xf32>, vector<8x81xf32> -> vector<8x81xf32>
    %c0_73 = arith.constant 0 : index
    %c0_74 = arith.constant 0 : index
    %78 = vector.load %arg10[%c0_73, %c0_74] : memref<8x81xf32, #tpu.memory_space<vmem>>, vector<8x81xf32>
    tpu.vector_store %arg10[%c0_73, %c0_74], %77 {strides = array<i32>} : memref<8x81xf32, #tpu.memory_space<vmem>>, vector<8x81xf32>,
    %c0_75 = arith.constant 0 : index
    %c0_76 = arith.constant 0 : index
    %c0_77 = arith.constant 0 : index
    %79 = vector.load %arg4[%c0_75, %c0_76, %c0_77] : memref<9x32x8xf32, #tpu.memory_space<vmem>>, vector<1x32x8xf32>
    %80 = vector.shape_cast %79 : vector<1x32x8xf32> to vector<32x8xf32>
    %c0_78 = arith.constant 0 : index
    %c0_79 = arith.constant 0 : index
    %81 = vector.load %arg10[%c0_78, %c0_79] : memref<8x81xf32, #tpu.memory_space<vmem>>, vector<8x61xf32>
    %cst_80 = arith.constant dense<0.000000e+00> : vector<32x61xf32>
    %82 = tpu.matmul %80, %81, %cst_80 {dimension_numbers = #tpu.dot_dimension_numbers<[1], [0], [0], [1], [0, 0, 1, 1], [], []>} : vector<32x8xf32>, vector<8x61xf32>, vector<32x61xf32> -> vector<32x61xf32>
    %c1_81 = arith.constant 1 : index
    %c0_82 = arith.constant 0 : index
    %c0_83 = arith.constant 0 : index
    %83 = vector.load %arg4[%c1_81, %c0_82, %c0_83] : memref<9x32x8xf32, #tpu.memory_space<vmem>>, vector<1x32x8xf32>
    %84 = vector.shape_cast %83 : vector<1x32x8xf32> to vector<32x8xf32>
    %c0_84 = arith.constant 0 : index
    %c1_85 = arith.constant 1 : index
    %85 = vector.load %arg10[%c0_84, %c1_85] : memref<8x81xf32, #tpu.memory_space<vmem>>, vector<8x61xf32>
    %cst_86 = arith.constant dense<0.000000e+00> : vector<32x61xf32>
    %86 = tpu.matmul %84, %85, %cst_86 {dimension_numbers = #tpu.dot_dimension_numbers<[1], [0], [0], [1], [0, 0, 1, 1], [], []>} : vector<32x8xf32>, vector<8x61xf32>, vector<32x61xf32> -> vector<32x61xf32>
    %87 = arith.addf %82, %86 : vector<32x61xf32>
    %c2_87 = arith.constant 2 : index
    %c0_88 = arith.constant 0 : index
    %c0_89 = arith.constant 0 : index
    %88 = vector.load %arg4[%c2_87, %c0_88, %c0_89] : memref<9x32x8xf32, #tpu.memory_space<vmem>>, vector<1x32x8xf32>
    %89 = vector.shape_cast %88 : vector<1x32x8xf32> to vector<32x8xf32>
    %c0_90 = arith.constant 0 : index
    %c2_91 = arith.constant 2 : index
    %90 = vector.load %arg10[%c0_90, %c2_91] : memref<8x81xf32, #tpu.memory_space<vmem>>, vector<8x61xf32>
    %cst_92 = arith.constant dense<0.000000e+00> : vector<32x61xf32>
    %91 = tpu.matmul %89, %90, %cst_92 {dimension_numbers = #tpu.dot_dimension_numbers<[1], [0], [0], [1], [0, 0, 1, 1], [], []>} : vector<32x8xf32>, vector<8x61xf32>, vector<32x61xf32> -> vector<32x61xf32>
    %92 = arith.addf %87, %91 : vector<32x61xf32>
    %c3_93 = arith.constant 3 : index
    %c0_94 = arith.constant 0 : index
    %c0_95 = arith.constant 0 : index
    %93 = vector.load %arg4[%c3_93, %c0_94, %c0_95] : memref<9x32x8xf32, #tpu.memory_space<vmem>>, vector<1x32x8xf32>
    %94 = vector.shape_cast %93 : vector<1x32x8xf32> to vector<32x8xf32>
    %c0_96 = arith.constant 0 : index
    %c9 = arith.constant 9 : index
    %95 = vector.load %arg10[%c0_96, %c9] : memref<8x81xf32, #tpu.memory_space<vmem>>, vector<8x61xf32>
    %cst_97 = arith.constant dense<0.000000e+00> : vector<32x61xf32>
    %96 = tpu.matmul %94, %95, %cst_97 {dimension_numbers = #tpu.dot_dimension_numbers<[1], [0], [0], [1], [0, 0, 1, 1], [], []>} : vector<32x8xf32>, vector<8x61xf32>, vector<32x61xf32> -> vector<32x61xf32>
    %97 = arith.addf %92, %96 : vector<32x61xf32>
    %c4_98 = arith.constant 4 : index
    %c0_99 = arith.constant 0 : index
    %c0_100 = arith.constant 0 : index
    %98 = vector.load %arg4[%c4_98, %c0_99, %c0_100] : memref<9x32x8xf32, #tpu.memory_space<vmem>>, vector<1x32x8xf32>
    %99 = vector.shape_cast %98 : vector<1x32x8xf32> to vector<32x8xf32>
    %c0_101 = arith.constant 0 : index
    %c10 = arith.constant 10 : index
    %100 = vector.load %arg10[%c0_101, %c10] : memref<8x81xf32, #tpu.memory_space<vmem>>, vector<8x61xf32>
    %cst_102 = arith.constant dense<0.000000e+00> : vector<32x61xf32>
    %101 = tpu.matmul %99, %100, %cst_102 {dimension_numbers = #tpu.dot_dimension_numbers<[1], [0], [0], [1], [0, 0, 1, 1], [], []>} : vector<32x8xf32>, vector<8x61xf32>, vector<32x61xf32> -> vector<32x61xf32>
    %102 = arith.addf %97, %101 : vector<32x61xf32>
    %c5_103 = arith.constant 5 : index
    %c0_104 = arith.constant 0 : index
    %c0_105 = arith.constant 0 : index
    %103 = vector.load %arg4[%c5_103, %c0_104, %c0_105] : memref<9x32x8xf32, #tpu.memory_space<vmem>>, vector<1x32x8xf32>
    %104 = vector.shape_cast %103 : vector<1x32x8xf32> to vector<32x8xf32>
    %c0_106 = arith.constant 0 : index
    %c11 = arith.constant 11 : index
    %105 = vector.load %arg10[%c0_106, %c11] : memref<8x81xf32, #tpu.memory_space<vmem>>, vector<8x61xf32>
    %cst_107 = arith.constant dense<0.000000e+00> : vector<32x61xf32>
    %106 = tpu.matmul %104, %105, %cst_107 {dimension_numbers = #tpu.dot_dimension_numbers<[1], [0], [0], [1], [0, 0, 1, 1], [], []>} : vector<32x8xf32>, vector<8x61xf32>, vector<32x61xf32> -> vector<32x61xf32>
    %107 = arith.addf %102, %106 : vector<32x61xf32>
    %c6_108 = arith.constant 6 : index
    %c0_109 = arith.constant 0 : index
    %c0_110 = arith.constant 0 : index
    %108 = vector.load %arg4[%c6_108, %c0_109, %c0_110] : memref<9x32x8xf32, #tpu.memory_space<vmem>>, vector<1x32x8xf32>
    %109 = vector.shape_cast %108 : vector<1x32x8xf32> to vector<32x8xf32>
    %c0_111 = arith.constant 0 : index
    %c18_112 = arith.constant 18 : index
    %110 = vector.load %arg10[%c0_111, %c18_112] : memref<8x81xf32, #tpu.memory_space<vmem>>, vector<8x61xf32>
    %cst_113 = arith.constant dense<0.000000e+00> : vector<32x61xf32>
    %111 = tpu.matmul %109, %110, %cst_113 {dimension_numbers = #tpu.dot_dimension_numbers<[1], [0], [0], [1], [0, 0, 1, 1], [], []>} : vector<32x8xf32>, vector<8x61xf32>, vector<32x61xf32> -> vector<32x61xf32>
    %112 = arith.addf %107, %111 : vector<32x61xf32>
    %c7_114 = arith.constant 7 : index
    %c0_115 = arith.constant 0 : index
    %c0_116 = arith.constant 0 : index
    %113 = vector.load %arg4[%c7_114, %c0_115, %c0_116] : memref<9x32x8xf32, #tpu.memory_space<vmem>>, vector<1x32x8xf32>
    %114 = vector.shape_cast %113 : vector<1x32x8xf32> to vector<32x8xf32>
    %c0_117 = arith.constant 0 : index
    %c19_118 = arith.constant 19 : index
    %115 = vector.load %arg10[%c0_117, %c19_118] : memref<8x81xf32, #tpu.memory_space<vmem>>, vector<8x61xf32>
    %cst_119 = arith.constant dense<0.000000e+00> : vector<32x61xf32>
    %116 = tpu.matmul %114, %115, %cst_119 {dimension_numbers = #tpu.dot_dimension_numbers<[1], [0], [0], [1], [0, 0, 1, 1], [], []>} : vector<32x8xf32>, vector<8x61xf32>, vector<32x61xf32> -> vector<32x61xf32>
    %117 = arith.addf %112, %116 : vector<32x61xf32>
    %c8_120 = arith.constant 8 : index
    %c0_121 = arith.constant 0 : index
    %c0_122 = arith.constant 0 : index
    %118 = vector.load %arg4[%c8_120, %c0_121, %c0_122] : memref<9x32x8xf32, #tpu.memory_space<vmem>>, vector<1x32x8xf32>
    %119 = vector.shape_cast %118 : vector<1x32x8xf32> to vector<32x8xf32>
    %c0_123 = arith.constant 0 : index
    %c20 = arith.constant 20 : index
    %120 = vector.load %arg10[%c0_123, %c20] : memref<8x81xf32, #tpu.memory_space<vmem>>, vector<8x61xf32>
    %cst_124 = arith.constant dense<0.000000e+00> : vector<32x61xf32>
    %121 = tpu.matmul %119, %120, %cst_124 {dimension_numbers = #tpu.dot_dimension_numbers<[1], [0], [0], [1], [0, 0, 1, 1], [], []>} : vector<32x8xf32>, vector<8x61xf32>, vector<32x61xf32> -> vector<32x61xf32>
    %122 = arith.addf %117, %121 : vector<32x61xf32>
    %c0_125 = arith.constant 0 : index
    %c0_126 = arith.constant 0 : index
    %123 = vector.load %arg5[%c0_125, %c0_126] : memref<32x1xf32, #tpu.memory_space<vmem>>, vector<32x1xf32>
    %124 = vector.broadcast %123 : vector<32x1xf32> to vector<32x61xf32>
    %125 = arith.addf %122, %124 : vector<32x61xf32>
    %cst_127 = arith.constant 0.000000e+00 : f32
    %126 = vector.broadcast %cst_127 : f32 to vector<32x61xf32>
    %127 = arith.maximumf %125, %126 : vector<32x61xf32>
    %c0_128 = arith.constant 0 : index
    %c0_129 = arith.constant 0 : index
    %128 = vector.load %arg11[%c0_128, %c0_129] : memref<32x61xf32, #tpu.memory_space<vmem>>, vector<32x61xf32>
    tpu.vector_store %arg11[%c0_128, %c0_129], %127 {strides = array<i32>} : memref<32x61xf32, #tpu.memory_space<vmem>>, vector<32x61xf32>,
    %c0_130 = arith.constant 0 : index
    %c0_131 = arith.constant 0 : index
    %129 = vector.load %arg11[%c0_130, %c0_131] : memref<32x61xf32, #tpu.memory_space<vmem>>, vector<32x41xf32>
    %c0_132 = arith.constant 0 : index
    %c1_133 = arith.constant 1 : index
    %130 = vector.load %arg11[%c0_132, %c1_133] : memref<32x61xf32, #tpu.memory_space<vmem>>, vector<32x41xf32>
    %131 = arith.maximumf %129, %130 : vector<32x41xf32>
    %c0_134 = arith.constant 0 : index
    %c2_135 = arith.constant 2 : index
    %132 = vector.load %arg11[%c0_134, %c2_135] : memref<32x61xf32, #tpu.memory_space<vmem>>, vector<32x41xf32>
    %133 = arith.maximumf %131, %132 : vector<32x41xf32>
    %c0_136 = arith.constant 0 : index
    %c9_137 = arith.constant 9 : index
    %134 = vector.load %arg11[%c0_136, %c9_137] : memref<32x61xf32, #tpu.memory_space<vmem>>, vector<32x41xf32>
    %c0_138 = arith.constant 0 : index
    %c10_139 = arith.constant 10 : index
    %135 = vector.load %arg11[%c0_138, %c10_139] : memref<32x61xf32, #tpu.memory_space<vmem>>, vector<32x41xf32>
    %136 = arith.maximumf %134, %135 : vector<32x41xf32>
    %c0_140 = arith.constant 0 : index
    %c11_141 = arith.constant 11 : index
    %137 = vector.load %arg11[%c0_140, %c11_141] : memref<32x61xf32, #tpu.memory_space<vmem>>, vector<32x41xf32>
    %138 = arith.maximumf %136, %137 : vector<32x41xf32>
    %c0_142 = arith.constant 0 : index
    %c18_143 = arith.constant 18 : index
    %139 = vector.load %arg11[%c0_142, %c18_143] : memref<32x61xf32, #tpu.memory_space<vmem>>, vector<32x41xf32>
    %c0_144 = arith.constant 0 : index
    %c19_145 = arith.constant 19 : index
    %140 = vector.load %arg11[%c0_144, %c19_145] : memref<32x61xf32, #tpu.memory_space<vmem>>, vector<32x41xf32>
    %141 = arith.maximumf %139, %140 : vector<32x41xf32>
    %c0_146 = arith.constant 0 : index
    %c20_147 = arith.constant 20 : index
    %142 = vector.load %arg11[%c0_146, %c20_147] : memref<32x61xf32, #tpu.memory_space<vmem>>, vector<32x41xf32>
    %143 = arith.maximumf %141, %142 : vector<32x41xf32>
    %144 = arith.maximumf %133, %138 : vector<32x41xf32>
    %145 = arith.maximumf %144, %143 : vector<32x41xf32>
    %c0_148 = arith.constant 0 : index
    %c0_149 = arith.constant 0 : index
    %146 = vector.load %arg7[%c0_148, %c0_149] : memref<41x36xf32, #tpu.memory_space<vmem>>, vector<41x36xf32>
    %cst_150 = arith.constant dense<0.000000e+00> : vector<32x36xf32>
    %147 = tpu.matmul %145, %146, %cst_150 {dimension_numbers = #tpu.dot_dimension_numbers<[1], [0], [0], [1], [0, 0, 1, 1], [], []>} : vector<32x41xf32>, vector<41x36xf32>, vector<32x36xf32> -> vector<32x36xf32>
    %c0_151 = arith.constant 0 : index
    %c0_152 = arith.constant 0 : index
    %c0_153 = arith.constant 0 : index
    %148 = vector.load %arg8[%c0_151, %c0_152, %c0_153] : memref<1x32x36xf32, #tpu.memory_space<vmem>>, vector<1x32x36xf32>
    %149 = vector.shape_cast %148 : vector<1x32x36xf32> to vector<32x36xf32>
    %150 = vector.shape_cast %147 : vector<32x36xf32> to vector<1x32x36xf32>
    tpu.vector_store %arg8[%c0_151, %c0_152, %c0_153], %150 {strides = array<i32>} : memref<1x32x36xf32, #tpu.memory_space<vmem>>, vector<1x32x36xf32>,
    return
  }
  func.func @transform_0(%arg0: i32) -> (i32, i32, i32) {
    %c0_i32 = arith.constant 0 : i32
    %c0_i32_0 = arith.constant 0 : i32
    %c0_i32_1 = arith.constant 0 : i32
    return %arg0, %c0_i32, %c0_i32_0 : i32, i32, i32
  }
  func.func @transform_1(%arg0: i32) -> (i32, i32, i32) {
    %c0_i32 = arith.constant 0 : i32
    %c0_i32_0 = arith.constant 0 : i32
    %c0_i32_1 = arith.constant 0 : i32
    %c0_i32_2 = arith.constant 0 : i32
    return %c0_i32, %c0_i32_0, %c0_i32_1 : i32, i32, i32
  }
  func.func @transform_2(%arg0: i32) -> (i32, i32) {
    %c0_i32 = arith.constant 0 : i32
    %c0_i32_0 = arith.constant 0 : i32
    %c0_i32_1 = arith.constant 0 : i32
    return %c0_i32, %c0_i32_0 : i32, i32
  }
  func.func @transform_3(%arg0: i32) -> (i32, i32, i32) {
    %c0_i32 = arith.constant 0 : i32
    %c0_i32_0 = arith.constant 0 : i32
    %c0_i32_1 = arith.constant 0 : i32
    %c0_i32_2 = arith.constant 0 : i32
    return %c0_i32, %c0_i32_0, %c0_i32_1 : i32, i32, i32
  }
  func.func @transform_4(%arg0: i32) -> (i32, i32) {
    %c0_i32 = arith.constant 0 : i32
    %c0_i32_0 = arith.constant 0 : i32
    %c0_i32_1 = arith.constant 0 : i32
    return %c0_i32, %c0_i32_0 : i32, i32
  }
  func.func @transform_5(%arg0: i32) -> (i32, i32) {
    %c0_i32 = arith.constant 0 : i32
    %c0_i32_0 = arith.constant 0 : i32
    %c0_i32_1 = arith.constant 0 : i32
    return %c0_i32, %c0_i32_0 : i32, i32
  }
  func.func @transform_6(%arg0: i32) -> (i32, i32) {
    %c0_i32 = arith.constant 0 : i32
    %c0_i32_0 = arith.constant 0 : i32
    %c0_i32_1 = arith.constant 0 : i32
    return %c0_i32, %c0_i32_0 : i32, i32
  }
  func.func @transform_7(%arg0: i32) -> (i32, i32, i32) {
    %c0_i32 = arith.constant 0 : i32
    %c0_i32_0 = arith.constant 0 : i32
    %c0_i32_1 = arith.constant 0 : i32
    return %arg0, %c0_i32, %c0_i32_0 : i32, i32, i32
  }
}

</mosaic_0001>

<llo_original>
// kernel: comp_feature_extractor.1
$region0: #{comp_feature_extractor.1}
  #allocation0 [shape = 'u32[]', space=smem, size = 0x4, offset = 0x4, fixed_abs, tag = 'smem constant byte address 0x4 - core index']
  #allocation1 [shape = 'u32[144,128]{1,0:T(1,128)}', space=vmem, size = 0x12000, scoped, tag = 'internal scratch']
  #allocation2 [shape = 'f32[8,253]{1,0:T(8,128)}', space=vmem, size = 0x2000, scoped, tag = 'scratch operand']
  #allocation3 [shape = 'f32[8,81]{1,0:T(8,128)}', space=vmem, size = 0x1000, scoped, tag = 'scratch operand']
  #allocation4 [shape = 'f32[32,61]{1,0:T(8,128)}', space=vmem, size = 0x4000, scoped, tag = 'scratch operand']
  %s0 = inlined_call_operand.vmem [shape: f32[2,48,289], index: 0, kind: input, shape index: {}]
  %s1 = inlined_call_operand.vmem [shape: f32[9,8,48], index: 1, kind: input, shape index: {}]
  %s2 = inlined_call_operand.vmem [shape: f32[8,1], index: 2, kind: input, shape index: {}]
  %s3 = inlined_call_operand.vmem [shape: f32[9,32,8], index: 3, kind: input, shape index: {}]
  %s4 = inlined_call_operand.vmem [shape: f32[32,1], index: 4, kind: input, shape index: {}]
  %s5 = inlined_call_operand.vmem [shape: f32[217,81], index: 5, kind: input, shape index: {}]
  %s6 = inlined_call_operand.vmem [shape: f32[41,36], index: 6, kind: input, shape index: {}]
  %s7 = inlined_call_operand.vmem [shape: f32[2,32,36], index: 7, kind: output, shape index: {}]
  %s8 = sld [smem:[#allocation0]]
  $region61: #{comp_feature_extractor.1} parent=0
    _
  %s10 = ssub.s32 1, %s8
  %s11 = scalar_select 0, %s10, %s8
  loop: start=0, step=1, limit=4
  $region2: #{comp_feature_extractor.1} parent=0 // loop_pre_header
    _
  $region3: #{comp_feature_extractor.1} parent=0 // loop_header
    %s13 = sphi 0, %s17
    %p14 = scmp.ge.s32.totalorder %s13, 4
    %s23 = sphi 0, %s25
    %s26 = sphi 0, %s23
    %s27 = sphi 0, %s26
    %s43 = sphi 0, %s27
    %s47 = sphi 0, %s47
    %s49 = sphi 0, %s47
    %s50 = sphi 0, %s49
    %s64 = sphi 0, %s50
    %s68 = sphi 0, %s68
    %s70 = sphi 0, %s68
    %s71 = sphi 0, %s70
    %s85 = sphi 0, %s71
    %s89 = sphi 0, %s89
    %s91 = sphi 0, %s89
    %s92 = sphi 0, %s91
    %s106 = sphi 0, %s92
    %s110 = sphi 0, %s110
    %s112 = sphi 0, %s110
    %s113 = sphi 0, %s112
    %s127 = sphi 0, %s113
    %s131 = sphi 0, %s131
    %s133 = sphi 0, %s131
    %s134 = sphi 0, %s133
    %s148 = sphi 0, %s134
    %s152 = sphi 0, %s152
    %s154 = sphi 0, %s152
    %s155 = sphi 0, %s154
    %s169 = sphi 0, %s155
    %s175 = sphi 0, %s177
    %s178 = sphi 0, %s175
    %s179 = sphi 0, %s178
    %s195 = sphi 0, %s179
  $region4: #{comp_feature_extractor.1} parent=0 // loop_header_branch
    %16 = sbr.rel (%p14) target = $region8
  $region5: #{comp_feature_extractor.1} parent=0 // loop_body
    %s18 = ssub.s32 %s13, 1
    %s19 = ssub.s32 %s13, 2
    %s20 = sadd.s32 %s13, 1
    %s21 = ssub.s32 %s13, %s20
    %p22 = scmp.eq.s32.totalorder %s21, 0
    %s24 = sadd.s32 %s23, 1
    %s25 = scalar_select %p22, %s23, %s24
    %p28 = pneg %p22
    %p29 = scmp.eq.s32.totalorder %s13, 1
    %p30 = por %p28, %p29
    %p31 = scmp.ne.s32.totalorder %s23, %s26
    %p32 = scmp.eq.s32.totalorder %s13, 0
    %p33 = por %p31, %p32
    %p34 = scmp.ne.s32.totalorder %s23, %s26
    %p35 = scmp.eq.s32.totalorder %s18, 1
    %p36 = por %p34, %p35
    %p37 = scmp.ne.s32.totalorder %s26, %s27
    %p38 = scmp.eq.s32.totalorder %s18, 0
    %p39 = por %p37, %p38
    %p40 = scmp.ne.s32.totalorder %s26, %s27
    %p41 = scmp.eq.s32.totalorder %s19, 1
    %p42 = por %p40, %p41
    %p44 = scmp.ne.s32.totalorder %s27, %s43
    %p45 = scmp.eq.s32.totalorder %s19, 0
    %p46 = por %p44, %p45
    %s48 = sadd.s32 %s47, 1
    %p51 = scmp.eq.s32.totalorder %s13, 1
    %p52 = scmp.ne.s32.totalorder %s47, %s49
    %p53 = scmp.eq.s32.totalorder %s13, 0
    %p54 = por %p52, %p53
    %p55 = scmp.ne.s32.totalorder %s47, %s49
    %p56 = scmp.eq.s32.totalorder %s18, 1
    %p57 = por %p55, %p56
    %p58 = scmp.ne.s32.totalorder %s49, %s50
    %p59 = scmp.eq.s32.totalorder %s18, 0
    %p60 = por %p58, %p59
    %p61 = scmp.ne.s32.totalorder %s49, %s50
    %p62 = scmp.eq.s32.totalorder %s19, 1
    %p63 = por %p61, %p62
    %p65 = scmp.ne.s32.totalorder %s50, %s64
    %p66 = scmp.eq.s32.totalorder %s19, 0
    %p67 = por %p65, %p66
    %s69 = sadd.s32 %s68, 1
    %p72 = scmp.eq.s32.totalorder %s13, 1
    %p73 = scmp.ne.s32.totalorder %s68, %s70
    %p74 = scmp.eq.s32.totalorder %s13, 0
    %p75 = por %p73, %p74
    %p76 = scmp.ne.s32.totalorder %s68, %s70
    %p77 = scmp.eq.s32.totalorder %s18, 1
    %p78 = por %p76, %p77
    %p79 = scmp.ne.s32.totalorder %s70, %s71
    %p80 = scmp.eq.s32.totalorder %s18, 0
    %p81 = por %p79, %p80
    %p82 = scmp.ne.s32.totalorder %s70, %s71
    %p83 = scmp.eq.s32.totalorder %s19, 1
    %p84 = por %p82, %p83
    %p86 = scmp.ne.s32.totalorder %s71, %s85
    %p87 = scmp.eq.s32.totalorder %s19, 0
    %p88 = por %p86, %p87
    %s90 = sadd.s32 %s89, 1
    %p93 = scmp.eq.s32.totalorder %s13, 1
    %p94 = scmp.ne.s32.totalorder %s89, %s91
    %p95 = scmp.eq.s32.totalorder %s13, 0
    %p96 = por %p94, %p95
    %p97 = scmp.ne.s32.totalorder %s89, %s91
    %p98 = scmp.eq.s32.totalorder %s18, 1
    %p99 = por %p97, %p98
    %p100 = scmp.ne.s32.totalorder %s91, %s92
    %p101 = scmp.eq.s32.totalorder %s18, 0
    %p102 = por %p100, %p101
    %p103 = scmp.ne.s32.totalorder %s91, %s92
    %p104 = scmp.eq.s32.totalorder %s19, 1
    %p105 = por %p103, %p104
    %p107 = scmp.ne.s32.totalorder %s92, %s106
    %p108 = scmp.eq.s32.totalorder %s19, 0
    %p109 = por %p107, %p108
    %s111 = sadd.s32 %s110, 1
    %p114 = scmp.eq.s32.totalorder %s13, 1
    %p115 = scmp.ne.s32.totalorder %s110, %s112
    %p116 = scmp.eq.s32.totalorder %s13, 0
    %p117 = por %p115, %p116
    %p118 = scmp.ne.s32.totalorder %s110, %s112
    %p119 = scmp.eq.s32.totalorder %s18, 1
    %p120 = por %p118, %p119
    %p121 = scmp.ne.s32.totalorder %s112, %s113
    %p122 = scmp.eq.s32.totalorder %s18, 0
    %p123 = por %p121, %p122
    %p124 = scmp.ne.s32.totalorder %s112, %s113
    %p125 = scmp.eq.s32.totalorder %s19, 1
    %p126 = por %p124, %p125
    %p128 = scmp.ne.s32.totalorder %s113, %s127
    %p129 = scmp.eq.s32.totalorder %s19, 0
    %p130 = por %p128, %p129
    %s132 = sadd.s32 %s131, 1
    %p135 = scmp.eq.s32.totalorder %s13, 1
    %p136 = scmp.ne.s32.totalorder %s131, %s133
    %p137 = scmp.eq.s32.totalorder %s13, 0
    %p138 = por %p136, %p137
    %p139 = scmp.ne.s32.totalorder %s131, %s133
    %p140 = scmp.eq.s32.totalorder %s18, 1
    %p141 = por %p139, %p140
    %p142 = scmp.ne.s32.totalorder %s133, %s134
    %p143 = scmp.eq.s32.totalorder %s18, 0
    %p144 = por %p142, %p143
    %p145 = scmp.ne.s32.totalorder %s133, %s134
    %p146 = scmp.eq.s32.totalorder %s19, 1
    %p147 = por %p145, %p146
    %p149 = scmp.ne.s32.totalorder %s134, %s148
    %p150 = scmp.eq.s32.totalorder %s19, 0
    %p151 = por %p149, %p150
    %s153 = sadd.s32 %s152, 1
    %p156 = scmp.eq.s32.totalorder %s13, 1
    %p157 = scmp.ne.s32.totalorder %s152, %s154
    %p158 = scmp.eq.s32.totalorder %s13, 0
    %p159 = por %p157, %p158
    %p160 = scmp.ne.s32.totalorder %s152, %s154
    %p161 = scmp.eq.s32.totalorder %s18, 1
    %p162 = por %p160, %p161
    %p163 = scmp.ne.s32.totalorder %s154, %s155
    %p164 = scmp.eq.s32.totalorder %s18, 0
    %p165 = por %p163, %p164
    %p166 = scmp.ne.s32.totalorder %s154, %s155
    %p167 = scmp.eq.s32.totalorder %s19, 1
    %p168 = por %p166, %p167
    %p170 = scmp.ne.s32.totalorder %s155, %s169
    %p171 = scmp.eq.s32.totalorder %s19, 0
    %p172 = por %p170, %p171
    %s173 = ssub.s32 %s13, %s20
    %p174 = scmp.eq.s32.totalorder %s173, 0
    %s176 = sadd.s32 %s175, 1
    %s177 = scalar_select %p174, %s175, %s176
    %p180 = pneg %p174
    %p181 = scmp.eq.s32.totalorder %s13, 1
    %p182 = por %p180, %p181
    %p183 = scmp.ne.s32.totalorder %s175, %s178
    %p184 = scmp.eq.s32.totalorder %s13, 0
    %p185 = por %p183, %p184
    %p186 = scmp.ne.s32.totalorder %s175, %s178
    %p187 = scmp.eq.s32.totalorder %s18, 1
    %p188 = por %p186, %p187
    %p189 = scmp.ne.s32.totalorder %s178, %s179
    %p190 = scmp.eq.s32.totalorder %s18, 0
    %p191 = por %p189, %p190
    %p192 = scmp.ne.s32.totalorder %s178, %s179
    %p193 = scmp.eq.s32.totalorder %s19, 1
    %p194 = por %p192, %p193
    %p196 = scmp.ne.s32.totalorder %s179, %s195
    %p197 = scmp.eq.s32.totalorder %s19, 0
    %p198 = por %p196, %p197
    %p199 = scmp.le.s32.totalorder 1, %s13
    %p200 = scmp.lt.s32.totalorder %s13, 3
    %p201 = pnand %p199, %p200
    %p202 = pneg %p201
    // Predicated region
    $region9: #{comp_feature_extractor.1} parent=5 // pred_check
      _
    $region10: #{comp_feature_extractor.1} parent=5 // pred_check_branch
      %204 = sbr.rel (%p201) target = $region12
    $region11: #{comp_feature_extractor.1} parent=5 // pred_region
      %s205 = ssub.s32 %s13, 1
      // Predicated region
      $region13: #{comp_feature_extractor.1} parent=11 // pred_check
        %p206 = pneg %p60
      $region14: #{comp_feature_extractor.1} parent=11 // pred_check_branch
        %208 = sbr.rel (%p206) target = $region16
      $region15: #{comp_feature_extractor.1} parent=11 // pred_region
        _
      $region16: #{comp_feature_extractor.1} parent=11 // pred_fallthru
        _
      // Predicated region
      $region17: #{comp_feature_extractor.1} parent=11 // pred_check
        %p209 = pneg %p81
      $region18: #{comp_feature_extractor.1} parent=11 // pred_check_branch
        %211 = sbr.rel (%p209) target = $region20
      $region19: #{comp_feature_extractor.1} parent=11 // pred_region
        _
      $region20: #{comp_feature_extractor.1} parent=11 // pred_fallthru
        _
      // Predicated region
      $region21: #{comp_feature_extractor.1} parent=11 // pred_check
        %p212 = pneg %p102
      $region22: #{comp_feature_extractor.1} parent=11 // pred_check_branch
        %214 = sbr.rel (%p212) target = $region24
      $region23: #{comp_feature_extractor.1} parent=11 // pred_region
        _
      $region24: #{comp_feature_extractor.1} parent=11 // pred_fallthru
        _
      // Predicated region
      $region25: #{comp_feature_extractor.1} parent=11 // pred_check
        %p215 = pneg %p123
      $region26: #{comp_feature_extractor.1} parent=11 // pred_check_branch
        %217 = sbr.rel (%p215) target = $region28
      $region27: #{comp_feature_extractor.1} parent=11 // pred_region
        _
      $region28: #{comp_feature_extractor.1} parent=11 // pred_fallthru
        _
      // Predicated region
      $region29: #{comp_feature_extractor.1} parent=11 // pred_check
        %p218 = pneg %p144
      $region30: #{comp_feature_extractor.1} parent=11 // pred_check_branch
        %220 = sbr.rel (%p218) target = $region32
      $region31: #{comp_feature_extractor.1} parent=11 // pred_region
        _
      $region32: #{comp_feature_extractor.1} parent=11 // pred_fallthru
        _
      // Predicated region
      $region33: #{comp_feature_extractor.1} parent=11 // pred_check
        %p221 = pneg %p165
      $region34: #{comp_feature_extractor.1} parent=11 // pred_check_branch
        %223 = sbr.rel (%p221) target = $region36
      $region35: #{comp_feature_extractor.1} parent=11 // pred_region
        _
      $region36: #{comp_feature_extractor.1} parent=11 // pred_fallthru
        _
    $region12: #{comp_feature_extractor.1} parent=5 // pred_fallthru
      _
    %p224 = scmp.lt.s32.totalorder %s13, 2
    // Predicated region
    $region37: #{comp_feature_extractor.1} parent=5 // pred_check
      %p225 = pneg %p224
    $region38: #{comp_feature_extractor.1} parent=5 // pred_check_branch
      %227 = sbr.rel (%p225) target = $region40
    $region39: #{comp_feature_extractor.1} parent=5 // pred_region
      // Predicated region
      $region41: #{comp_feature_extractor.1} parent=39 // pred_check
        %p228 = pneg %p33
      $region42: #{comp_feature_extractor.1} parent=39 // pred_check_branch
        %230 = sbr.rel (%p228) target = $region44
      $region43: #{comp_feature_extractor.1} parent=39 // pred_region
        %p231 = scmp.lt.s32.totalorder %s13, 1
        %s232 = scalar_select %p231, %s13, 1
        %s233 = smul.addr %s232, 18
        %s234 = smul.addr %s233, 8
        %s235 = scalar_lea.vmem %s0, %s234
      $region44: #{comp_feature_extractor.1} parent=39 // pred_fallthru
        _
    $region40: #{comp_feature_extractor.1} parent=5 // pred_fallthru
      _
    %p236 = scmp.le.s32.totalorder 1, %s13
    %p237 = scmp.lt.s32.totalorder %s13, 3
    %p238 = pnand %p236, %p237
    %p239 = pneg %p238
    // Predicated region
    $region45: #{comp_feature_extractor.1} parent=5 // pred_check
      _
    $region46: #{comp_feature_extractor.1} parent=5 // pred_check_branch
      %241 = sbr.rel (%p238) target = $region48
    $region47: #{comp_feature_extractor.1} parent=5 // pred_region
      %s242 = ssub.s32 %s13, 1
      %p243 = scmp.lt.s32.totalorder %s18, 1
      %s244 = scalar_select %p243, %s18, 1
      %s245 = smul.addr %s244, 18
      %s246 = smul.addr %s245, 8
      %s247 = scalar_lea.vmem %s0, %s246
      %p248 = pneg %p39
      %p249 = pneg %p36
      %p250 = pneg %p60
      %p251 = pneg %p57
      %p252 = pneg %p81
      %p253 = pneg %p78
      %p254 = pneg %p102
      %p255 = pneg %p99
      %p256 = pneg %p123
      %p257 = pneg %p120
      %p258 = pneg %p144
      %p259 = pneg %p141
      %p260 = pneg %p165
      %p261 = pneg %p162
      %p262 = pneg %p191
      %p263 = pneg %p188
      %p264 = scmp.lt.s32.totalorder %s18, 1
      %s265 = scalar_select %p264, %s18, 1
      %s266 = smul.addr %s265, 4
      %s267 = smul.addr %s266, 8
      %s268 = scalar_lea.vmem %s7, %s267
      %p269 = scmp.lt.s32.totalorder %s18, 1
      %s270 = scalar_select %p269, %s18, 1
      %s271 = smul.addr %s270, 18
      %s272 = smul.addr %s271, 8
      %s273 = scalar_lea.vmem %s0, %s272
      %p274 = scmp.lt.s32.totalorder %s18, 1
      %s275 = scalar_select %p274, %s18, 1
      %s276 = smul.addr %s275, 4
      %s277 = smul.addr %s276, 8
      %s278 = scalar_lea.vmem %s7, %s277
      %v279 = vld [vmem:[%s1] sm:$0xff]
      %v280 = vld [vmem:[%s273] sm:$0xff]
      %v281 = vld [vmem:[%s273 + $0x8] sm:$0xff]
      %v282 = vld [vmem:[%s273 + $0x18] sm:$0xff]
      %v283 = vld [vmem:[%s273 + $0x20] sm:$0xff]
      %v284 = vld [vmem:[%s273 + $0x30] sm:$0xff]
      %v285 = vld [vmem:[%s273 + $0x38] sm:$0xff]
      %v286 = vld [vmem:[%s273 + $0x48] sm:$0xff]
      %v287 = vld [vmem:[%s273 + $0x50] sm:$0xff]
      %v288 = vld [vmem:[%s273 + $0x60] sm:$0xff]
      %v289 = vld [vmem:[%s273 + $0x68] sm:$0xff]
      %v290 = vld [vmem:[%s273 + $0x78] sm:$0xff]
      %v291 = vld [vmem:[%s273 + $0x80] sm:$0xff]
      %s292 = scalar_lea.vmem %s1, 8
      %v293 = vld [vmem:[%s292] sm:$0xff]
      %306 = vrot.lane.b32.xlu0 %v280, 127
      %v307 = vpop.permute.xlu0 %306
      %308 = vrot.lane.b32.xlu0 %v281, 127
      %v309 = vpop.permute.xlu0 %308
      %310 = vrot.lane.b32.xlu0 %v282, 127
      %v311 = vpop.permute.xlu0 %310
      %312 = vrot.lane.b32.xlu0 %v283, 127
      %v313 = vpop.permute.xlu0 %312
      %314 = vrot.lane.b32.xlu0 %v284, 127
      %v315 = vpop.permute.xlu0 %314
      %316 = vrot.lane.b32.xlu0 %v285, 127
      %v317 = vpop.permute.xlu0 %316
      %318 = vrot.lane.b32.xlu0 %v286, 127
      %v319 = vpop.permute.xlu0 %318
      %320 = vrot.lane.b32.xlu0 %v287, 127
      %v321 = vpop.permute.xlu0 %320
      %322 = vrot.lane.b32.xlu0 %v288, 127
      %v323 = vpop.permute.xlu0 %322
      %324 = vrot.lane.b32.xlu0 %v289, 127
      %v325 = vpop.permute.xlu0 %324
      %326 = vrot.lane.b32.xlu0 %v290, 127
      %v327 = vpop.permute.xlu0 %326
      %328 = vrot.lane.b32.xlu0 %v291, 127
      %v329 = vpop.permute.xlu0 %328
      %vm330 = vcmask 1039360
      %v331 = vsel %vm330, %v307, %v309
      %v332 = vsel %vm330, %v311, %v313
      %v333 = vsel %vm330, %v315, %v317
      %v334 = vsel %vm330, %v319, %v321
      %v335 = vsel %vm330, %v323, %v325
      %v336 = vsel %vm330, %v327, %v329
      %vm349 = vcmask 392192
      %v351 = vsel %vm349, %v293, 0
      %353 = vmatprep.subr.mxu0 0.0
      %354 = vmatpush1.msra.mxu0 0.0
      %355 = vmatprep.subr.mxu0 0.0
      %356 = vmatpush1.msra.mxu0 0.0
      %357 = vmatprep.subr.mxu0 0.0
      %358 = vmatpush1.msra.mxu0 0.0
      %359 = vmatprep.subr.mxu0 0.0
      %360 = vmatpush1.msra.mxu0 0.0
      %361 = vmatprep.subr.mxu0 0.0
      %362 = vmatpush1.msra.mxu0 0.0
      %363 = vmatprep.subr.mxu0 0.0
      %364 = vmatpush1.msra.mxu0 0.0
      %365 = vmatprep.subr.mxu0 0.0
      %366 = vmatpush1.msra.mxu0 0.0
      %367 = vmatprep.subr.mxu0 0.0
      %368 = vmatpush1.msra.mxu0 0.0
      %369 = vmatprep.subr.mxu0 0.0
      %370 = vmatpush1.msra.mxu0 0.0
      %371 = vmatprep.subr.mxu0 0.0
      %372 = vmatpush1.msra.mxu0 0.0
      %373 = vmatprep.subr.mxu0 %v329
      %374 = vmatpush1.msra.mxu0 %v336
      %375 = vmatprep.subr.mxu0 %v325
      %376 = vmatpush1.msra.mxu0 %v335
      %377 = vmatprep.subr.mxu0 %v321
      %378 = vmatpush1.msra.mxu0 %v334
      %379 = vmatprep.subr.mxu0 %v317
      %380 = vmatpush1.msra.mxu0 %v333
      %381 = vmatprep.subr.mxu0 %v313
      %382 = vmatpush1.msra.mxu0 %v332
      %383 = vmatprep.subr.mxu0 %v309
      %384 = vmatpush1.msra.mxu0 %v331
      %385 = vmatprep.subr.mxu0 0.0
      %386 = vmatpush2.msra.mxu0 0.0
      %387 = vmatprep.subr.mxu0 0.0
      %388 = vmatpush2.msra.mxu0 0.0
      %389 = vmatprep.subr.mxu0 0.0
      %390 = vmatpush2.msra.mxu0 0.0
      %391 = vmatprep.subr.mxu0 0.0
      %392 = vmatpush2.msra.mxu0 0.0
      %393 = vmatprep.subr.mxu0 0.0
      %394 = vmatpush2.msra.mxu0 0.0
      %395 = vmatprep.subr.mxu0 0.0
      %396 = vmatpush2.msra.mxu0 0.0
      %397 = vmatprep.subr.mxu0 0.0
      %398 = vmatpush2.msra.mxu0 0.0
      %399 = vmatprep.subr.mxu0 0.0
      %400 = vmatpush2.msra.mxu0 0.0
      %401 = vmatprep.subr.mxu0 0.0
      %402 = vmatpush2.msra.mxu0 0.0
      %403 = vmatprep.subr.mxu0 0.0
      %404 = vmatpush2.msra.mxu0 0.0
      %405 = vmatprep.subr.mxu0 0.0
      %406 = vmatpush2.msra.mxu0 0.0
      %407 = vmatprep.subr.mxu0 0.0
      %408 = vmatpush2.msra.mxu0 0.0
      %409 = vmatprep.subr.mxu0 0.0
      %410 = vmatpush2.msra.mxu0 0.0
      %411 = vmatprep.subr.mxu0 0.0
      %412 = vmatpush2.msra.mxu0 0.0
      %413 = vmatprep.subr.mxu0 0.0
      %414 = vmatpush2.msra.mxu0 0.0
      %415 = vmatprep.subr.mxu0 0.0
      %416 = vmatpush2.msra.mxu0 0.0
      %417 = vmatprep.mubr.f32.mxu0 0.0
      %418 = vmatmul.mubr.f32.gmra.mxu0 %v351
      %v419 = vpop.f32.mrf.mxu0
      %v420 = vadd.f32 0.0, %v419
      %v421 = vpop.f32.mrf.mxu0
      %v422 = vadd.f32 0.0, %v421
      %423 = vdwg.mxu0
      %v425 = vsel %vm349, %v279, 0
      %427 = vmatprep.subr.mxu0 0.0
      %428 = vmatpush1.msra.mxu0 0.0
      %429 = vmatprep.subr.mxu0 0.0
      %430 = vmatpush1.msra.mxu0 0.0
      %431 = vmatprep.subr.mxu0 0.0
      %432 = vmatpush1.msra.mxu0 0.0
      %433 = vmatprep.subr.mxu0 0.0
      %434 = vmatpush1.msra.mxu0 0.0
      %435 = vmatprep.subr.mxu0 0.0
      %436 = vmatpush1.msra.mxu0 0.0
      %437 = vmatprep.subr.mxu0 0.0
      %438 = vmatpush1.msra.mxu0 0.0
      %439 = vmatprep.subr.mxu0 0.0
      %440 = vmatpush1.msra.mxu0 0.0
      %441 = vmatprep.subr.mxu0 0.0
      %442 = vmatpush1.msra.mxu0 0.0
      %443 = vmatprep.subr.mxu0 0.0
      %444 = vmatpush1.msra.mxu0 0.0
      %445 = vmatprep.subr.mxu0 0.0
      %446 = vmatpush1.msra.mxu0 0.0
      %447 = vmatprep.subr.mxu0 %v291
      %448 = vmatpush1.msra.mxu0 %v290
      %449 = vmatprep.subr.mxu0 %v289
      %450 = vmatpush1.msra.mxu0 %v288
      %451 = vmatprep.subr.mxu0 %v287
      %452 = vmatpush1.msra.mxu0 %v286
      %453 = vmatprep.subr.mxu0 %v285
      %454 = vmatpush1.msra.mxu0 %v284
      %455 = vmatprep.subr.mxu0 %v283
      %456 = vmatpush1.msra.mxu0 %v282
      %457 = vmatprep.subr.mxu0 %v281
      %458 = vmatpush1.msra.mxu0 %v280
      %459 = vmatprep.subr.mxu0 0.0
      %460 = vmatpush2.msra.mxu0 0.0
      %461 = vmatprep.subr.mxu0 0.0
      %462 = vmatpush2.msra.mxu0 0.0
      %463 = vmatprep.subr.mxu0 0.0
      %464 = vmatpush2.msra.mxu0 0.0
      %465 = vmatprep.subr.mxu0 0.0
      %466 = vmatpush2.msra.mxu0 0.0
      %467 = vmatprep.subr.mxu0 0.0
      %468 = vmatpush2.msra.mxu0 0.0
      %469 = vmatprep.subr.mxu0 0.0
      %470 = vmatpush2.msra.mxu0 0.0
      %471 = vmatprep.subr.mxu0 0.0
      %472 = vmatpush2.msra.mxu0 0.0
      %473 = vmatprep.subr.mxu0 0.0
      %474 = vmatpush2.msra.mxu0 0.0
      %475 = vmatprep.subr.mxu0 0.0
      %476 = vmatpush2.msra.mxu0 0.0
      %477 = vmatprep.subr.mxu0 0.0
      %478 = vmatpush2.msra.mxu0 0.0
      %479 = vmatprep.subr.mxu0 0.0
      %480 = vmatpush2.msra.mxu0 0.0
      %481 = vmatprep.subr.mxu0 0.0
      %482 = vmatpush2.msra.mxu0 0.0
      %483 = vmatprep.subr.mxu0 0.0
      %484 = vmatpush2.msra.mxu0 0.0
      %485 = vmatprep.subr.mxu0 0.0
      %486 = vmatpush2.msra.mxu0 0.0
      %487 = vmatprep.subr.mxu0 0.0
      %488 = vmatpush2.msra.mxu0 0.0
      %489 = vmatprep.subr.mxu0 0.0
      %490 = vmatpush2.msra.mxu0 0.0
      %491 = vmatprep.mubr.f32.mxu0 0.0
      %492 = vmatmul.mubr.f32.gmra.mxu0 %v425
      %v493 = vpop.f32.mrf.mxu0
      %v494 = vadd.f32 %v420, %v493
      %v495 = vpop.f32.mrf.mxu0
      %v496 = vadd.f32 %v422, %v495
      %497 = vdwg.mxu0
      %s498 = scalar_lea.vmem %s1, 16
      %v499 = vld [vmem:[%s498] sm:$0xff]
      %500 = vrot.lane.b32.xlu0 %v280, 126
      %v501 = vpop.permute.xlu0 %500
      %502 = vrot.lane.b32.xlu0 %v281, 126
      %v503 = vpop.permute.xlu0 %502
      %504 = vrot.lane.b32.xlu0 %v282, 126
      %v505 = vpop.permute.xlu0 %504
      %506 = vrot.lane.b32.xlu0 %v283, 126
      %v507 = vpop.permute.xlu0 %506
      %508 = vrot.lane.b32.xlu0 %v284, 126
      %v509 = vpop.permute.xlu0 %508
      %510 = vrot.lane.b32.xlu0 %v285, 126
      %v511 = vpop.permute.xlu0 %510
      %512 = vrot.lane.b32.xlu0 %v286, 126
      %v513 = vpop.permute.xlu0 %512
      %514 = vrot.lane.b32.xlu0 %v287, 126
      %v515 = vpop.permute.xlu0 %514
      %516 = vrot.lane.b32.xlu0 %v288, 126
      %v517 = vpop.permute.xlu0 %516
      %518 = vrot.lane.b32.xlu0 %v289, 126
      %v519 = vpop.permute.xlu0 %518
      %520 = vrot.lane.b32.xlu0 %v290, 126
      %v521 = vpop.permute.xlu0 %520
      %522 = vrot.lane.b32.xlu0 %v291, 126
      %v523 = vpop.permute.xlu0 %522
      %vm524 = vcmask 1031168
      %v525 = vsel %vm524, %v501, %v503
      %v526 = vsel %vm524, %v505, %v507
      %v527 = vsel %vm524, %v509, %v511
      %v528 = vsel %vm524, %v513, %v515
      %v529 = vsel %vm524, %v517, %v519
      %v530 = vsel %vm524, %v521, %v523
      %v544 = vsel %vm349, %v499, 0
      %546 = vmatprep.subr.mxu0 0.0
      %547 = vmatpush1.msra.mxu0 0.0
      %548 = vmatprep.subr.mxu0 0.0
      %549 = vmatpush1.msra.mxu0 0.0
      %550 = vmatprep.subr.mxu0 0.0
      %551 = vmatpush1.msra.mxu0 0.0
      %552 = vmatprep.subr.mxu0 0.0
      %553 = vmatpush1.msra.mxu0 0.0
      %554 = vmatprep.subr.mxu0 0.0
      %555 = vmatpush1.msra.mxu0 0.0
      %556 = vmatprep.subr.mxu0 0.0
      %557 = vmatpush1.msra.mxu0 0.0
      %558 = vmatprep.subr.mxu0 0.0
      %559 = vmatpush1.msra.mxu0 0.0
      %560 = vmatprep.subr.mxu0 0.0
      %561 = vmatpush1.msra.mxu0 0.0
      %562 = vmatprep.subr.mxu0 0.0
      %563 = vmatpush1.msra.mxu0 0.0
      %564 = vmatprep.subr.mxu0 0.0
      %565 = vmatpush1.msra.mxu0 0.0
      %566 = vmatprep.subr.mxu0 %v523
      %567 = vmatpush1.msra.mxu0 %v530
      %568 = vmatprep.subr.mxu0 %v519
      %569 = vmatpush1.msra.mxu0 %v529
      %570 = vmatprep.subr.mxu0 %v515
      %571 = vmatpush1.msra.mxu0 %v528
      %572 = vmatprep.subr.mxu0 %v511
      %573 = vmatpush1.msra.mxu0 %v527
      %574 = vmatprep.subr.mxu0 %v507
      %575 = vmatpush1.msra.mxu0 %v526
      %576 = vmatprep.subr.mxu0 %v503
      %577 = vmatpush1.msra.mxu0 %v525
      %578 = vmatprep.subr.mxu0 0.0
      %579 = vmatpush2.msra.mxu0 0.0
      %580 = vmatprep.subr.mxu0 0.0
      %581 = vmatpush2.msra.mxu0 0.0
      %582 = vmatprep.subr.mxu0 0.0
      %583 = vmatpush2.msra.mxu0 0.0
      %584 = vmatprep.subr.mxu0 0.0
      %585 = vmatpush2.msra.mxu0 0.0
      %586 = vmatprep.subr.mxu0 0.0
      %587 = vmatpush2.msra.mxu0 0.0
      %588 = vmatprep.subr.mxu0 0.0
      %589 = vmatpush2.msra.mxu0 0.0
      %590 = vmatprep.subr.mxu0 0.0
      %591 = vmatpush2.msra.mxu0 0.0
      %592 = vmatprep.subr.mxu0 0.0
      %593 = vmatpush2.msra.mxu0 0.0
      %594 = vmatprep.subr.mxu0 0.0
      %595 = vmatpush2.msra.mxu0 0.0
      %596 = vmatprep.subr.mxu0 0.0
      %597 = vmatpush2.msra.mxu0 0.0
      %598 = vmatprep.subr.mxu0 0.0
      %599 = vmatpush2.msra.mxu0 0.0
      %600 = vmatprep.subr.mxu0 0.0
      %601 = vmatpush2.msra.mxu0 0.0
      %602 = vmatprep.subr.mxu0 0.0
      %603 = vmatpush2.msra.mxu0 0.0
      %604 = vmatprep.subr.mxu0 0.0
      %605 = vmatpush2.msra.mxu0 0.0
      %606 = vmatprep.subr.mxu0 0.0
      %607 = vmatpush2.msra.mxu0 0.0
      %608 = vmatprep.subr.mxu0 0.0
      %609 = vmatpush2.msra.mxu0 0.0
      %610 = vmatprep.mubr.f32.mxu0 0.0
      %611 = vmatmul.mubr.f32.gmra.mxu0 %v544
      %v612 = vpop.f32.mrf.mxu0
      %v613 = vadd.f32 0.0, %v612
      %v614 = vpop.f32.mrf.mxu0
      %v615 = vadd.f32 0.0, %v614
      %616 = vdwg.mxu0
      %v617 = vadd.f32 %v494, %v613
      %v618 = vadd.f32 %v496, %v615
      %s619 = scalar_lea.vmem %s1, 24
      %v620 = vld [vmem:[%s619] sm:$0xff]
      %v621 = vld [vmem:[%s273] sm:$0xff]
      %v622 = vld [vmem:[%s273 + $0x8] sm:$0xff]
      %v623 = vld [vmem:[%s273 + $0x10] sm:$0xff]
      %v624 = vld [vmem:[%s273 + $0x18] sm:$0xff]
      %v625 = vld [vmem:[%s273 + $0x20] sm:$0xff]
      %v626 = vld [vmem:[%s273 + $0x28] sm:$0xff]
      %v627 = vld [vmem:[%s273 + $0x30] sm:$0xff]
      %v628 = vld [vmem:[%s273 + $0x38] sm:$0xff]
      %v629 = vld [vmem:[%s273 + $0x40] sm:$0xff]
      %v630 = vld [vmem:[%s273 + $0x48] sm:$0xff]
      %v631 = vld [vmem:[%s273 + $0x50] sm:$0xff]
      %v632 = vld [vmem:[%s273 + $0x58] sm:$0xff]
      %v633 = vld [vmem:[%s273 + $0x60] sm:$0xff]
      %v634 = vld [vmem:[%s273 + $0x68] sm:$0xff]
      %v635 = vld [vmem:[%s273 + $0x70] sm:$0xff]
      %v636 = vld [vmem:[%s273 + $0x78] sm:$0xff]
      %v637 = vld [vmem:[%s273 + $0x80] sm:$0xff]
      %v638 = vld [vmem:[%s273 + $0x88] sm:$0xff]
      %657 = vrot.lane.b32.xlu0 %v621, 111
      %v658 = vpop.permute.xlu0 %657
      %659 = vrot.lane.b32.xlu0 %v622, 111
      %v660 = vpop.permute.xlu0 %659
      %661 = vrot.lane.b32.xlu0 %v623, 111
      %v662 = vpop.permute.xlu0 %661
      %663 = vrot.lane.b32.xlu0 %v624, 111
      %v664 = vpop.permute.xlu0 %663
      %665 = vrot.lane.b32.xlu0 %v625, 111
      %v666 = vpop.permute.xlu0 %665
      %667 = vrot.lane.b32.xlu0 %v626, 111
      %v668 = vpop.permute.xlu0 %667
      %669 = vrot.lane.b32.xlu0 %v627, 111
      %v670 = vpop.permute.xlu0 %669
      %671 = vrot.lane.b32.xlu0 %v628, 111
      %v672 = vpop.permute.xlu0 %671
      %673 = vrot.lane.b32.xlu0 %v629, 111
      %v674 = vpop.permute.xlu0 %673
      %675 = vrot.lane.b32.xlu0 %v630, 111
      %v676 = vpop.permute.xlu0 %675
      %677 = vrot.lane.b32.xlu0 %v631, 111
      %v678 = vpop.permute.xlu0 %677
      %679 = vrot.lane.b32.xlu0 %v632, 111
      %v680 = vpop.permute.xlu0 %679
      %681 = vrot.lane.b32.xlu0 %v633, 111
      %v682 = vpop.permute.xlu0 %681
      %683 = vrot.lane.b32.xlu0 %v634, 111
      %v684 = vpop.permute.xlu0 %683
      %685 = vrot.lane.b32.xlu0 %v635, 111
      %v686 = vpop.permute.xlu0 %685
      %687 = vrot.lane.b32.xlu0 %v636, 111
      %v688 = vpop.permute.xlu0 %687
      %689 = vrot.lane.b32.xlu0 %v637, 111
      %v690 = vpop.permute.xlu0 %689
      %691 = vrot.lane.b32.xlu0 %v638, 111
      %v692 = vpop.permute.xlu0 %691
      %vm693 = vcmask 908288
      %v694 = vsel %vm693, %v658, %v660
      %v695 = vsel %vm693, %v660, %v662
      %v696 = vsel %vm693, %v664, %v666
      %v697 = vsel %vm693, %v666, %v668
      %v698 = vsel %vm693, %v670, %v672
      %v699 = vsel %vm693, %v672, %v674
      %v700 = vsel %vm693, %v676, %v678
      %v701 = vsel %vm693, %v678, %v680
      %v702 = vsel %vm693, %v682, %v684
      %v703 = vsel %vm693, %v684, %v686
      %v704 = vsel %vm693, %v688, %v690
      %v705 = vsel %vm693, %v690, %v692
      %v719 = vsel %vm349, %v620, 0
      %721 = vmatprep.subr.mxu0 0.0
      %722 = vmatpush1.msra.mxu0 0.0
      %723 = vmatprep.subr.mxu0 0.0
      %724 = vmatpush1.msra.mxu0 0.0
      %725 = vmatprep.subr.mxu0 0.0
      %726 = vmatpush1.msra.mxu0 0.0
      %727 = vmatprep.subr.mxu0 0.0
      %728 = vmatpush1.msra.mxu0 0.0
      %729 = vmatprep.subr.mxu0 0.0
      %730 = vmatpush1.msra.mxu0 0.0
      %731 = vmatprep.subr.mxu0 0.0
      %732 = vmatpush1.msra.mxu0 0.0
      %733 = vmatprep.subr.mxu0 0.0
      %734 = vmatpush1.msra.mxu0 0.0
      %735 = vmatprep.subr.mxu0 0.0
      %736 = vmatpush1.msra.mxu0 0.0
      %737 = vmatprep.subr.mxu0 0.0
      %738 = vmatpush1.msra.mxu0 0.0
      %739 = vmatprep.subr.mxu0 0.0
      %740 = vmatpush1.msra.mxu0 0.0
      %741 = vmatprep.subr.mxu0 %v705
      %742 = vmatpush1.msra.mxu0 %v704
      %743 = vmatprep.subr.mxu0 %v703
      %744 = vmatpush1.msra.mxu0 %v702
      %745 = vmatprep.subr.mxu0 %v701
      %746 = vmatpush1.msra.mxu0 %v700
      %747 = vmatprep.subr.mxu0 %v699
      %748 = vmatpush1.msra.mxu0 %v698
      %749 = vmatprep.subr.mxu0 %v697
      %750 = vmatpush1.msra.mxu0 %v696
      %751 = vmatprep.subr.mxu0 %v695
      %752 = vmatpush1.msra.mxu0 %v694
      %753 = vmatprep.subr.mxu0 0.0
      %754 = vmatpush2.msra.mxu0 0.0
      %755 = vmatprep.subr.mxu0 0.0
      %756 = vmatpush2.msra.mxu0 0.0
      %757 = vmatprep.subr.mxu0 0.0
      %758 = vmatpush2.msra.mxu0 0.0
      %759 = vmatprep.subr.mxu0 0.0
      %760 = vmatpush2.msra.mxu0 0.0
      %761 = vmatprep.subr.mxu0 0.0
      %762 = vmatpush2.msra.mxu0 0.0
      %763 = vmatprep.subr.mxu0 0.0
      %764 = vmatpush2.msra.mxu0 0.0
      %765 = vmatprep.subr.mxu0 0.0
      %766 = vmatpush2.msra.mxu0 0.0
      %767 = vmatprep.subr.mxu0 0.0
      %768 = vmatpush2.msra.mxu0 0.0
      %769 = vmatprep.subr.mxu0 0.0
      %770 = vmatpush2.msra.mxu0 0.0
      %771 = vmatprep.subr.mxu0 0.0
      %772 = vmatpush2.msra.mxu0 0.0
      %773 = vmatprep.subr.mxu0 0.0
      %774 = vmatpush2.msra.mxu0 0.0
      %775 = vmatprep.subr.mxu0 0.0
      %776 = vmatpush2.msra.mxu0 0.0
      %777 = vmatprep.subr.mxu0 0.0
      %778 = vmatpush2.msra.mxu0 0.0
      %779 = vmatprep.subr.mxu0 0.0
      %780 = vmatpush2.msra.mxu0 0.0
      %781 = vmatprep.subr.mxu0 0.0
      %782 = vmatpush2.msra.mxu0 0.0
      %783 = vmatprep.subr.mxu0 0.0
      %784 = vmatpush2.msra.mxu0 0.0
      %785 = vmatprep.mubr.f32.mxu0 0.0
      %786 = vmatmul.mubr.f32.gmra.mxu0 %v719
      %v787 = vpop.f32.mrf.mxu0
      %v788 = vadd.f32 0.0, %v787
      %v789 = vpop.f32.mrf.mxu0
      %v790 = vadd.f32 0.0, %v789
      %791 = vdwg.mxu0
      %v792 = vadd.f32 %v617, %v788
      %v793 = vadd.f32 %v618, %v790
      %s794 = scalar_lea.vmem %s1, 32
      %v795 = vld [vmem:[%s794] sm:$0xff]
      %796 = vrot.lane.b32.xlu0 %v621, 110
      %v797 = vpop.permute.xlu0 %796
      %798 = vrot.lane.b32.xlu0 %v622, 110
      %v799 = vpop.permute.xlu0 %798
      %800 = vrot.lane.b32.xlu0 %v623, 110
      %v801 = vpop.permute.xlu0 %800
      %802 = vrot.lane.b32.xlu0 %v624, 110
      %v803 = vpop.permute.xlu0 %802
      %804 = vrot.lane.b32.xlu0 %v625, 110
      %v805 = vpop.permute.xlu0 %804
      %806 = vrot.lane.b32.xlu0 %v626, 110
      %v807 = vpop.permute.xlu0 %806
      %808 = vrot.lane.b32.xlu0 %v627, 110
      %v809 = vpop.permute.xlu0 %808
      %810 = vrot.lane.b32.xlu0 %v628, 110
      %v811 = vpop.permute.xlu0 %810
      %812 = vrot.lane.b32.xlu0 %v629, 110
      %v813 = vpop.permute.xlu0 %812
      %814 = vrot.lane.b32.xlu0 %v630, 110
      %v815 = vpop.permute.xlu0 %814
      %816 = vrot.lane.b32.xlu0 %v631, 110
      %v817 = vpop.permute.xlu0 %816
      %818 = vrot.lane.b32.xlu0 %v632, 110
      %v819 = vpop.permute.xlu0 %818
      %820 = vrot.lane.b32.xlu0 %v633, 110
      %v821 = vpop.permute.xlu0 %820
      %822 = vrot.lane.b32.xlu0 %v634, 110
      %v823 = vpop.permute.xlu0 %822
      %824 = vrot.lane.b32.xlu0 %v635, 110
      %v825 = vpop.permute.xlu0 %824
      %826 = vrot.lane.b32.xlu0 %v636, 110
      %v827 = vpop.permute.xlu0 %826
      %828 = vrot.lane.b32.xlu0 %v637, 110
      %v829 = vpop.permute.xlu0 %828
      %830 = vrot.lane.b32.xlu0 %v638, 110
      %v831 = vpop.permute.xlu0 %830
      %vm832 = vcmask 900096
      %v833 = vsel %vm832, %v797, %v799
      %v834 = vsel %vm832, %v799, %v801
      %v835 = vsel %vm832, %v803, %v805
      %v836 = vsel %vm832, %v805, %v807
      %v837 = vsel %vm832, %v809, %v811
      %v838 = vsel %vm832, %v811, %v813
      %v839 = vsel %vm832, %v815, %v817
      %v840 = vsel %vm832, %v817, %v819
      %v841 = vsel %vm832, %v821, %v823
      %v842 = vsel %vm832, %v823, %v825
      %v843 = vsel %vm832, %v827, %v829
      %v844 = vsel %vm832, %v829, %v831
      %v858 = vsel %vm349, %v795, 0
      %860 = vmatprep.subr.mxu0 0.0
      %861 = vmatpush1.msra.mxu0 0.0
      %862 = vmatprep.subr.mxu0 0.0
      %863 = vmatpush1.msra.mxu0 0.0
      %864 = vmatprep.subr.mxu0 0.0
      %865 = vmatpush1.msra.mxu0 0.0
      %866 = vmatprep.subr.mxu0 0.0
      %867 = vmatpush1.msra.mxu0 0.0
      %868 = vmatprep.subr.mxu0 0.0
      %869 = vmatpush1.msra.mxu0 0.0
      %870 = vmatprep.subr.mxu0 0.0
      %871 = vmatpush1.msra.mxu0 0.0
      %872 = vmatprep.subr.mxu0 0.0
      %873 = vmatpush1.msra.mxu0 0.0
      %874 = vmatprep.subr.mxu0 0.0
      %875 = vmatpush1.msra.mxu0 0.0
      %876 = vmatprep.subr.mxu0 0.0
      %877 = vmatpush1.msra.mxu0 0.0
      %878 = vmatprep.subr.mxu0 0.0
      %879 = vmatpush1.msra.mxu0 0.0
      %880 = vmatprep.subr.mxu0 %v844
      %881 = vmatpush1.msra.mxu0 %v843
      %882 = vmatprep.subr.mxu0 %v842
      %883 = vmatpush1.msra.mxu0 %v841
      %884 = vmatprep.subr.mxu0 %v840
      %885 = vmatpush1.msra.mxu0 %v839
      %886 = vmatprep.subr.mxu0 %v838
      %887 = vmatpush1.msra.mxu0 %v837
      %888 = vmatprep.subr.mxu0 %v836
      %889 = vmatpush1.msra.mxu0 %v835
      %890 = vmatprep.subr.mxu0 %v834
      %891 = vmatpush1.msra.mxu0 %v833
      %892 = vmatprep.subr.mxu0 0.0
      %893 = vmatpush2.msra.mxu0 0.0
      %894 = vmatprep.subr.mxu0 0.0
      %895 = vmatpush2.msra.mxu0 0.0
      %896 = vmatprep.subr.mxu0 0.0
      %897 = vmatpush2.msra.mxu0 0.0
      %898 = vmatprep.subr.mxu0 0.0
      %899 = vmatpush2.msra.mxu0 0.0
      %900 = vmatprep.subr.mxu0 0.0
      %901 = vmatpush2.msra.mxu0 0.0
      %902 = vmatprep.subr.mxu0 0.0
      %903 = vmatpush2.msra.mxu0 0.0
      %904 = vmatprep.subr.mxu0 0.0
      %905 = vmatpush2.msra.mxu0 0.0
      %906 = vmatprep.subr.mxu0 0.0
      %907 = vmatpush2.msra.mxu0 0.0
      %908 = vmatprep.subr.mxu0 0.0
      %909 = vmatpush2.msra.mxu0 0.0
      %910 = vmatprep.subr.mxu0 0.0
      %911 = vmatpush2.msra.mxu0 0.0
      %912 = vmatprep.subr.mxu0 0.0
      %913 = vmatpush2.msra.mxu0 0.0
      %914 = vmatprep.subr.mxu0 0.0
      %915 = vmatpush2.msra.mxu0 0.0
      %916 = vmatprep.subr.mxu0 0.0
      %917 = vmatpush2.msra.mxu0 0.0
      %918 = vmatprep.subr.mxu0 0.0
      %919 = vmatpush2.msra.mxu0 0.0
      %920 = vmatprep.subr.mxu0 0.0
      %921 = vmatpush2.msra.mxu0 0.0
      %922 = vmatprep.subr.mxu0 0.0
      %923 = vmatpush2.msra.mxu0 0.0
      %924 = vmatprep.mubr.f32.mxu0 0.0
      %925 = vmatmul.mubr.f32.gmra.mxu0 %v858
      %v926 = vpop.f32.mrf.mxu0
      %v927 = vadd.f32 0.0, %v926
      %v928 = vpop.f32.mrf.mxu0
      %v929 = vadd.f32 0.0, %v928
      %930 = vdwg.mxu0
      %v931 = vadd.f32 %v792, %v927
      %v932 = vadd.f32 %v793, %v929
      %s933 = scalar_lea.vmem %s1, 40
      %v934 = vld [vmem:[%s933] sm:$0xff]
      %935 = vrot.lane.b32.xlu0 %v621, 109
      %v936 = vpop.permute.xlu0 %935
      %937 = vrot.lane.b32.xlu0 %v622, 109
      %v938 = vpop.permute.xlu0 %937
      %939 = vrot.lane.b32.xlu0 %v623, 109
      %v940 = vpop.permute.xlu0 %939
      %941 = vrot.lane.b32.xlu0 %v624, 109
      %v942 = vpop.permute.xlu0 %941
      %943 = vrot.lane.b32.xlu0 %v625, 109
      %v944 = vpop.permute.xlu0 %943
      %945 = vrot.lane.b32.xlu0 %v626, 109
      %v946 = vpop.permute.xlu0 %945
      %947 = vrot.lane.b32.xlu0 %v627, 109
      %v948 = vpop.permute.xlu0 %947
      %949 = vrot.lane.b32.xlu0 %v628, 109
      %v950 = vpop.permute.xlu0 %949
      %951 = vrot.lane.b32.xlu0 %v629, 109
      %v952 = vpop.permute.xlu0 %951
      %953 = vrot.lane.b32.xlu0 %v630, 109
      %v954 = vpop.permute.xlu0 %953
      %955 = vrot.lane.b32.xlu0 %v631, 109
      %v956 = vpop.permute.xlu0 %955
      %957 = vrot.lane.b32.xlu0 %v632, 109
      %v958 = vpop.permute.xlu0 %957
      %959 = vrot.lane.b32.xlu0 %v633, 109
      %v960 = vpop.permute.xlu0 %959
      %961 = vrot.lane.b32.xlu0 %v634, 109
      %v962 = vpop.permute.xlu0 %961
      %963 = vrot.lane.b32.xlu0 %v635, 109
      %v964 = vpop.permute.xlu0 %963
      %965 = vrot.lane.b32.xlu0 %v636, 109
      %v966 = vpop.permute.xlu0 %965
      %967 = vrot.lane.b32.xlu0 %v637, 109
      %v968 = vpop.permute.xlu0 %967
      %969 = vrot.lane.b32.xlu0 %v638, 109
      %v970 = vpop.permute.xlu0 %969
      %vm971 = vcmask 891904
      %v972 = vsel %vm971, %v936, %v938
      %v973 = vsel %vm971, %v938, %v940
      %v974 = vsel %vm971, %v942, %v944
      %v975 = vsel %vm971, %v944, %v946
      %v976 = vsel %vm971, %v948, %v950
      %v977 = vsel %vm971, %v950, %v952
      %v978 = vsel %vm971, %v954, %v956
      %v979 = vsel %vm971, %v956, %v958
      %v980 = vsel %vm971, %v960, %v962
      %v981 = vsel %vm971, %v962, %v964
      %v982 = vsel %vm971, %v966, %v968
      %v983 = vsel %vm971, %v968, %v970
      %v997 = vsel %vm349, %v934, 0
      %999 = vmatprep.subr.mxu0 0.0
      %1000 = vmatpush1.msra.mxu0 0.0
      %1001 = vmatprep.subr.mxu0 0.0
      %1002 = vmatpush1.msra.mxu0 0.0
      %1003 = vmatprep.subr.mxu0 0.0
      %1004 = vmatpush1.msra.mxu0 0.0
      %1005 = vmatprep.subr.mxu0 0.0
      %1006 = vmatpush1.msra.mxu0 0.0
      %1007 = vmatprep.subr.mxu0 0.0
      %1008 = vmatpush1.msra.mxu0 0.0
      %1009 = vmatprep.subr.mxu0 0.0
      %1010 = vmatpush1.msra.mxu0 0.0
      %1011 = vmatprep.subr.mxu0 0.0
      %1012 = vmatpush1.msra.mxu0 0.0
      %1013 = vmatprep.subr.mxu0 0.0
      %1014 = vmatpush1.msra.mxu0 0.0
      %1015 = vmatprep.subr.mxu0 0.0
      %1016 = vmatpush1.msra.mxu0 0.0
      %1017 = vmatprep.subr.mxu0 0.0
      %1018 = vmatpush1.msra.mxu0 0.0
      %1019 = vmatprep.subr.mxu0 %v983
      %1020 = vmatpush1.msra.mxu0 %v982
      %1021 = vmatprep.subr.mxu0 %v981
      %1022 = vmatpush1.msra.mxu0 %v980
      %1023 = vmatprep.subr.mxu0 %v979
      %1024 = vmatpush1.msra.mxu0 %v978
      %1025 = vmatprep.subr.mxu0 %v977
      %1026 = vmatpush1.msra.mxu0 %v976
      %1027 = vmatprep.subr.mxu0 %v975
      %1028 = vmatpush1.msra.mxu0 %v974
      %1029 = vmatprep.subr.mxu0 %v973
      %1030 = vmatpush1.msra.mxu0 %v972
      %1031 = vmatprep.subr.mxu0 0.0
      %1032 = vmatpush2.msra.mxu0 0.0
      %1033 = vmatprep.subr.mxu0 0.0
      %1034 = vmatpush2.msra.mxu0 0.0
      %1035 = vmatprep.subr.mxu0 0.0
      %1036 = vmatpush2.msra.mxu0 0.0
      %1037 = vmatprep.subr.mxu0 0.0
      %1038 = vmatpush2.msra.mxu0 0.0
      %1039 = vmatprep.subr.mxu0 0.0
      %1040 = vmatpush2.msra.mxu0 0.0
      %1041 = vmatprep.subr.mxu0 0.0
      %1042 = vmatpush2.msra.mxu0 0.0
      %1043 = vmatprep.subr.mxu0 0.0
      %1044 = vmatpush2.msra.mxu0 0.0
      %1045 = vmatprep.subr.mxu0 0.0
      %1046 = vmatpush2.msra.mxu0 0.0
      %1047 = vmatprep.subr.mxu0 0.0
      %1048 = vmatpush2.msra.mxu0 0.0
      %1049 = vmatprep.subr.mxu0 0.0
      %1050 = vmatpush2.msra.mxu0 0.0
      %1051 = vmatprep.subr.mxu0 0.0
      %1052 = vmatpush2.msra.mxu0 0.0
      %1053 = vmatprep.subr.mxu0 0.0
      %1054 = vmatpush2.msra.mxu0 0.0
      %1055 = vmatprep.subr.mxu0 0.0
      %1056 = vmatpush2.msra.mxu0 0.0
      %1057 = vmatprep.subr.mxu0 0.0
      %1058 = vmatpush2.msra.mxu0 0.0
      %1059 = vmatprep.subr.mxu0 0.0
      %1060 = vmatpush2.msra.mxu0 0.0
      %1061 = vmatprep.subr.mxu0 0.0
      %1062 = vmatpush2.msra.mxu0 0.0
      %1063 = vmatprep.mubr.f32.mxu0 0.0
      %1064 = vmatmul.mubr.f32.gmra.mxu0 %v997
      %v1065 = vpop.f32.mrf.mxu0
      %v1066 = vadd.f32 0.0, %v1065
      %v1067 = vpop.f32.mrf.mxu0
      %v1068 = vadd.f32 0.0, %v1067
      %1069 = vdwg.mxu0
      %v1070 = vadd.f32 %v931, %v1066
      %v1071 = vadd.f32 %v932, %v1068
      %s1072 = scalar_lea.vmem %s1, 48
      %v1073 = vld [vmem:[%s1072] sm:$0xff]
      %1074 = vrot.lane.b32.xlu0 %v621, 94
      %v1075 = vpop.permute.xlu0 %1074
      %1076 = vrot.lane.b32.xlu0 %v622, 94
      %v1077 = vpop.permute.xlu0 %1076
      %1078 = vrot.lane.b32.xlu0 %v623, 94
      %v1079 = vpop.permute.xlu0 %1078
      %1080 = vrot.lane.b32.xlu0 %v624, 94
      %v1081 = vpop.permute.xlu0 %1080
      %1082 = vrot.lane.b32.xlu0 %v625, 94
      %v1083 = vpop.permute.xlu0 %1082
      %1084 = vrot.lane.b32.xlu0 %v626, 94
      %v1085 = vpop.permute.xlu0 %1084
      %1086 = vrot.lane.b32.xlu0 %v627, 94
      %v1087 = vpop.permute.xlu0 %1086
      %1088 = vrot.lane.b32.xlu0 %v628, 94
      %v1089 = vpop.permute.xlu0 %1088
      %1090 = vrot.lane.b32.xlu0 %v629, 94
      %v1091 = vpop.permute.xlu0 %1090
      %1092 = vrot.lane.b32.xlu0 %v630, 94
      %v1093 = vpop.permute.xlu0 %1092
      %1094 = vrot.lane.b32.xlu0 %v631, 94
      %v1095 = vpop.permute.xlu0 %1094
      %1096 = vrot.lane.b32.xlu0 %v632, 94
      %v1097 = vpop.permute.xlu0 %1096
      %1098 = vrot.lane.b32.xlu0 %v633, 94
      %v1099 = vpop.permute.xlu0 %1098
      %1100 = vrot.lane.b32.xlu0 %v634, 94
      %v1101 = vpop.permute.xlu0 %1100
      %1102 = vrot.lane.b32.xlu0 %v635, 94
      %v1103 = vpop.permute.xlu0 %1102
      %1104 = vrot.lane.b32.xlu0 %v636, 94
      %v1105 = vpop.permute.xlu0 %1104
      %1106 = vrot.lane.b32.xlu0 %v637, 94
      %v1107 = vpop.permute.xlu0 %1106
      %1108 = vrot.lane.b32.xlu0 %v638, 94
      %v1109 = vpop.permute.xlu0 %1108
      %vm1110 = vcmask 769024
      %v1111 = vsel %vm1110, %v1075, %v1077
      %v1112 = vsel %vm1110, %v1077, %v1079
      %v1113 = vsel %vm1110, %v1081, %v1083
      %v1114 = vsel %vm1110, %v1083, %v1085
      %v1115 = vsel %vm1110, %v1087, %v1089
      %v1116 = vsel %vm1110, %v1089, %v1091
      %v1117 = vsel %vm1110, %v1093, %v1095
      %v1118 = vsel %vm1110, %v1095, %v1097
      %v1119 = vsel %vm1110, %v1099, %v1101
      %v1120 = vsel %vm1110, %v1101, %v1103
      %v1121 = vsel %vm1110, %v1105, %v1107
      %v1122 = vsel %vm1110, %v1107, %v1109
      %v1136 = vsel %vm349, %v1073, 0
      %1138 = vmatprep.subr.mxu0 0.0
      %1139 = vmatpush1.msra.mxu0 0.0
      %1140 = vmatprep.subr.mxu0 0.0
      %1141 = vmatpush1.msra.mxu0 0.0
      %1142 = vmatprep.subr.mxu0 0.0
      %1143 = vmatpush1.msra.mxu0 0.0
      %1144 = vmatprep.subr.mxu0 0.0
      %1145 = vmatpush1.msra.mxu0 0.0
      %1146 = vmatprep.subr.mxu0 0.0
      %1147 = vmatpush1.msra.mxu0 0.0
      %1148 = vmatprep.subr.mxu0 0.0
      %1149 = vmatpush1.msra.mxu0 0.0
      %1150 = vmatprep.subr.mxu0 0.0
      %1151 = vmatpush1.msra.mxu0 0.0
      %1152 = vmatprep.subr.mxu0 0.0
      %1153 = vmatpush1.msra.mxu0 0.0
      %1154 = vmatprep.subr.mxu0 0.0
      %1155 = vmatpush1.msra.mxu0 0.0
      %1156 = vmatprep.subr.mxu0 0.0
      %1157 = vmatpush1.msra.mxu0 0.0
      %1158 = vmatprep.subr.mxu0 %v1122
      %1159 = vmatpush1.msra.mxu0 %v1121
      %1160 = vmatprep.subr.mxu0 %v1120
      %1161 = vmatpush1.msra.mxu0 %v1119
      %1162 = vmatprep.subr.mxu0 %v1118
      %1163 = vmatpush1.msra.mxu0 %v1117
      %1164 = vmatprep.subr.mxu0 %v1116
      %1165 = vmatpush1.msra.mxu0 %v1115
      %1166 = vmatprep.subr.mxu0 %v1114
      %1167 = vmatpush1.msra.mxu0 %v1113
      %1168 = vmatprep.subr.mxu0 %v1112
      %1169 = vmatpush1.msra.mxu0 %v1111
      %1170 = vmatprep.subr.mxu0 0.0
      %1171 = vmatpush2.msra.mxu0 0.0
      %1172 = vmatprep.subr.mxu0 0.0
      %1173 = vmatpush2.msra.mxu0 0.0
      %1174 = vmatprep.subr.mxu0 0.0
      %1175 = vmatpush2.msra.mxu0 0.0
      %1176 = vmatprep.subr.mxu0 0.0
      %1177 = vmatpush2.msra.mxu0 0.0
      %1178 = vmatprep.subr.mxu0 0.0
      %1179 = vmatpush2.msra.mxu0 0.0
      %1180 = vmatprep.subr.mxu0 0.0
      %1181 = vmatpush2.msra.mxu0 0.0
      %1182 = vmatprep.subr.mxu0 0.0
      %1183 = vmatpush2.msra.mxu0 0.0
      %1184 = vmatprep.subr.mxu0 0.0
      %1185 = vmatpush2.msra.mxu0 0.0
      %1186 = vmatprep.subr.mxu0 0.0
      %1187 = vmatpush2.msra.mxu0 0.0
      %1188 = vmatprep.subr.mxu0 0.0
      %1189 = vmatpush2.msra.mxu0 0.0
      %1190 = vmatprep.subr.mxu0 0.0
      %1191 = vmatpush2.msra.mxu0 0.0
      %1192 = vmatprep.subr.mxu0 0.0
      %1193 = vmatpush2.msra.mxu0 0.0
      %1194 = vmatprep.subr.mxu0 0.0
      %1195 = vmatpush2.msra.mxu0 0.0
      %1196 = vmatprep.subr.mxu0 0.0
      %1197 = vmatpush2.msra.mxu0 0.0
      %1198 = vmatprep.subr.mxu0 0.0
      %1199 = vmatpush2.msra.mxu0 0.0
      %1200 = vmatprep.subr.mxu0 0.0
      %1201 = vmatpush2.msra.mxu0 0.0
      %1202 = vmatprep.mubr.f32.mxu0 0.0
      %1203 = vmatmul.mubr.f32.gmra.mxu0 %v1136
      %v1204 = vpop.f32.mrf.mxu0
      %v1205 = vadd.f32 0.0, %v1204
      %v1206 = vpop.f32.mrf.mxu0
      %v1207 = vadd.f32 0.0, %v1206
      %1208 = vdwg.mxu0
      %v1209 = vadd.f32 %v1070, %v1205
      %v1210 = vadd.f32 %v1071, %v1207
      %s1211 = scalar_lea.vmem %s1, 56
      %v1212 = vld [vmem:[%s1211] sm:$0xff]
      %1213 = vrot.lane.b32.xlu0 %v621, 93
      %v1214 = vpop.permute.xlu0 %1213
      %1215 = vrot.lane.b32.xlu0 %v622, 93
      %v1216 = vpop.permute.xlu0 %1215
      %1217 = vrot.lane.b32.xlu0 %v623, 93
      %v1218 = vpop.permute.xlu0 %1217
      %1219 = vrot.lane.b32.xlu0 %v624, 93
      %v1220 = vpop.permute.xlu0 %1219
      %1221 = vrot.lane.b32.xlu0 %v625, 93
      %v1222 = vpop.permute.xlu0 %1221
      %1223 = vrot.lane.b32.xlu0 %v626, 93
      %v1224 = vpop.permute.xlu0 %1223
      %1225 = vrot.lane.b32.xlu0 %v627, 93
      %v1226 = vpop.permute.xlu0 %1225
      %1227 = vrot.lane.b32.xlu0 %v628, 93
      %v1228 = vpop.permute.xlu0 %1227
      %1229 = vrot.lane.b32.xlu0 %v629, 93
      %v1230 = vpop.permute.xlu0 %1229
      %1231 = vrot.lane.b32.xlu0 %v630, 93
      %v1232 = vpop.permute.xlu0 %1231
      %1233 = vrot.lane.b32.xlu0 %v631, 93
      %v1234 = vpop.permute.xlu0 %1233
      %1235 = vrot.lane.b32.xlu0 %v632, 93
      %v1236 = vpop.permute.xlu0 %1235
      %1237 = vrot.lane.b32.xlu0 %v633, 93
      %v1238 = vpop.permute.xlu0 %1237
      %1239 = vrot.lane.b32.xlu0 %v634, 93
      %v1240 = vpop.permute.xlu0 %1239
      %1241 = vrot.lane.b32.xlu0 %v635, 93
      %v1242 = vpop.permute.xlu0 %1241
      %1243 = vrot.lane.b32.xlu0 %v636, 93
      %v1244 = vpop.permute.xlu0 %1243
      %1245 = vrot.lane.b32.xlu0 %v637, 93
      %v1246 = vpop.permute.xlu0 %1245
      %1247 = vrot.lane.b32.xlu0 %v638, 93
      %v1248 = vpop.permute.xlu0 %1247
      %vm1249 = vcmask 760832
      %v1250 = vsel %vm1249, %v1214, %v1216
      %v1251 = vsel %vm1249, %v1216, %v1218
      %v1252 = vsel %vm1249, %v1220, %v1222
      %v1253 = vsel %vm1249, %v1222, %v1224
      %v1254 = vsel %vm1249, %v1226, %v1228
      %v1255 = vsel %vm1249, %v1228, %v1230
      %v1256 = vsel %vm1249, %v1232, %v1234
      %v1257 = vsel %vm1249, %v1234, %v1236
      %v1258 = vsel %vm1249, %v1238, %v1240
      %v1259 = vsel %vm1249, %v1240, %v1242
      %v1260 = vsel %vm1249, %v1244, %v1246
      %v1261 = vsel %vm1249, %v1246, %v1248
      %v1275 = vsel %vm349, %v1212, 0
      %1277 = vmatprep.subr.mxu0 0.0
      %1278 = vmatpush1.msra.mxu0 0.0
      %1279 = vmatprep.subr.mxu0 0.0
      %1280 = vmatpush1.msra.mxu0 0.0
      %1281 = vmatprep.subr.mxu0 0.0
      %1282 = vmatpush1.msra.mxu0 0.0
      %1283 = vmatprep.subr.mxu0 0.0
      %1284 = vmatpush1.msra.mxu0 0.0
      %1285 = vmatprep.subr.mxu0 0.0
      %1286 = vmatpush1.msra.mxu0 0.0
      %1287 = vmatprep.subr.mxu0 0.0
      %1288 = vmatpush1.msra.mxu0 0.0
      %1289 = vmatprep.subr.mxu0 0.0
      %1290 = vmatpush1.msra.mxu0 0.0
      %1291 = vmatprep.subr.mxu0 0.0
      %1292 = vmatpush1.msra.mxu0 0.0
      %1293 = vmatprep.subr.mxu0 0.0
      %1294 = vmatpush1.msra.mxu0 0.0
      %1295 = vmatprep.subr.mxu0 0.0
      %1296 = vmatpush1.msra.mxu0 0.0
      %1297 = vmatprep.subr.mxu0 %v1261
      %1298 = vmatpush1.msra.mxu0 %v1260
      %1299 = vmatprep.subr.mxu0 %v1259
      %1300 = vmatpush1.msra.mxu0 %v1258
      %1301 = vmatprep.subr.mxu0 %v1257
      %1302 = vmatpush1.msra.mxu0 %v1256
      %1303 = vmatprep.subr.mxu0 %v1255
      %1304 = vmatpush1.msra.mxu0 %v1254
      %1305 = vmatprep.subr.mxu0 %v1253
      %1306 = vmatpush1.msra.mxu0 %v1252
      %1307 = vmatprep.subr.mxu0 %v1251
      %1308 = vmatpush1.msra.mxu0 %v1250
      %1309 = vmatprep.subr.mxu0 0.0
      %1310 = vmatpush2.msra.mxu0 0.0
      %1311 = vmatprep.subr.mxu0 0.0
      %1312 = vmatpush2.msra.mxu0 0.0
      %1313 = vmatprep.subr.mxu0 0.0
      %1314 = vmatpush2.msra.mxu0 0.0
      %1315 = vmatprep.subr.mxu0 0.0
      %1316 = vmatpush2.msra.mxu0 0.0
      %1317 = vmatprep.subr.mxu0 0.0
      %1318 = vmatpush2.msra.mxu0 0.0
      %1319 = vmatprep.subr.mxu0 0.0
      %1320 = vmatpush2.msra.mxu0 0.0
      %1321 = vmatprep.subr.mxu0 0.0
      %1322 = vmatpush2.msra.mxu0 0.0
      %1323 = vmatprep.subr.mxu0 0.0
      %1324 = vmatpush2.msra.mxu0 0.0
      %1325 = vmatprep.subr.mxu0 0.0
      %1326 = vmatpush2.msra.mxu0 0.0
      %1327 = vmatprep.subr.mxu0 0.0
      %1328 = vmatpush2.msra.mxu0 0.0
      %1329 = vmatprep.subr.mxu0 0.0
      %1330 = vmatpush2.msra.mxu0 0.0
      %1331 = vmatprep.subr.mxu0 0.0
      %1332 = vmatpush2.msra.mxu0 0.0
      %1333 = vmatprep.subr.mxu0 0.0
      %1334 = vmatpush2.msra.mxu0 0.0
      %1335 = vmatprep.subr.mxu0 0.0
      %1336 = vmatpush2.msra.mxu0 0.0
      %1337 = vmatprep.subr.mxu0 0.0
      %1338 = vmatpush2.msra.mxu0 0.0
      %1339 = vmatprep.subr.mxu0 0.0
      %1340 = vmatpush2.msra.mxu0 0.0
      %1341 = vmatprep.mubr.f32.mxu0 0.0
      %1342 = vmatmul.mubr.f32.gmra.mxu0 %v1275
      %v1343 = vpop.f32.mrf.mxu0
      %v1344 = vadd.f32 0.0, %v1343
      %v1345 = vpop.f32.mrf.mxu0
      %v1346 = vadd.f32 0.0, %v1345
      %1347 = vdwg.mxu0
      %v1348 = vadd.f32 %v1209, %v1344
      %v1349 = vadd.f32 %v1210, %v1346
      %s1350 = scalar_lea.vmem %s1, 64
      %v1351 = vld [vmem:[%s1350] sm:$0xff]
      %1352 = vrot.lane.b32.xlu0 %v621, 92
      %v1353 = vpop.permute.xlu0 %1352
      %1354 = vrot.lane.b32.xlu0 %v622, 92
      %v1355 = vpop.permute.xlu0 %1354
      %1356 = vrot.lane.b32.xlu0 %v623, 92
      %v1357 = vpop.permute.xlu0 %1356
      %1358 = vrot.lane.b32.xlu0 %v624, 92
      %v1359 = vpop.permute.xlu0 %1358
      %1360 = vrot.lane.b32.xlu0 %v625, 92
      %v1361 = vpop.permute.xlu0 %1360
      %1362 = vrot.lane.b32.xlu0 %v626, 92
      %v1363 = vpop.permute.xlu0 %1362
      %1364 = vrot.lane.b32.xlu0 %v627, 92
      %v1365 = vpop.permute.xlu0 %1364
      %1366 = vrot.lane.b32.xlu0 %v628, 92
      %v1367 = vpop.permute.xlu0 %1366
      %1368 = vrot.lane.b32.xlu0 %v629, 92
      %v1369 = vpop.permute.xlu0 %1368
      %1370 = vrot.lane.b32.xlu0 %v630, 92
      %v1371 = vpop.permute.xlu0 %1370
      %1372 = vrot.lane.b32.xlu0 %v631, 92
      %v1373 = vpop.permute.xlu0 %1372
      %1374 = vrot.lane.b32.xlu0 %v632, 92
      %v1375 = vpop.permute.xlu0 %1374
      %1376 = vrot.lane.b32.xlu0 %v633, 92
      %v1377 = vpop.permute.xlu0 %1376
      %1378 = vrot.lane.b32.xlu0 %v634, 92
      %v1379 = vpop.permute.xlu0 %1378
      %1380 = vrot.lane.b32.xlu0 %v635, 92
      %v1381 = vpop.permute.xlu0 %1380
      %1382 = vrot.lane.b32.xlu0 %v636, 92
      %v1383 = vpop.permute.xlu0 %1382
      %1384 = vrot.lane.b32.xlu0 %v637, 92
      %v1385 = vpop.permute.xlu0 %1384
      %1386 = vrot.lane.b32.xlu0 %v638, 92
      %v1387 = vpop.permute.xlu0 %1386
      %vm1388 = vcmask 752640
      %v1389 = vsel %vm1388, %v1353, %v1355
      %v1390 = vsel %vm1388, %v1355, %v1357
      %v1391 = vsel %vm1388, %v1359, %v1361
      %v1392 = vsel %vm1388, %v1361, %v1363
      %v1393 = vsel %vm1388, %v1365, %v1367
      %v1394 = vsel %vm1388, %v1367, %v1369
      %v1395 = vsel %vm1388, %v1371, %v1373
      %v1396 = vsel %vm1388, %v1373, %v1375
      %v1397 = vsel %vm1388, %v1377, %v1379
      %v1398 = vsel %vm1388, %v1379, %v1381
      %v1399 = vsel %vm1388, %v1383, %v1385
      %v1400 = vsel %vm1388, %v1385, %v1387
      %v1414 = vsel %vm349, %v1351, 0
      %1416 = vmatprep.subr.mxu0 0.0
      %1417 = vmatpush1.msra.mxu0 0.0
      %1418 = vmatprep.subr.mxu0 0.0
      %1419 = vmatpush1.msra.mxu0 0.0
      %1420 = vmatprep.subr.mxu0 0.0
      %1421 = vmatpush1.msra.mxu0 0.0
      %1422 = vmatprep.subr.mxu0 0.0
      %1423 = vmatpush1.msra.mxu0 0.0
      %1424 = vmatprep.subr.mxu0 0.0
      %1425 = vmatpush1.msra.mxu0 0.0
      %1426 = vmatprep.subr.mxu0 0.0
      %1427 = vmatpush1.msra.mxu0 0.0
      %1428 = vmatprep.subr.mxu0 0.0
      %1429 = vmatpush1.msra.mxu0 0.0
      %1430 = vmatprep.subr.mxu0 0.0
      %1431 = vmatpush1.msra.mxu0 0.0
      %1432 = vmatprep.subr.mxu0 0.0
      %1433 = vmatpush1.msra.mxu0 0.0
      %1434 = vmatprep.subr.mxu0 0.0
      %1435 = vmatpush1.msra.mxu0 0.0
      %1436 = vmatprep.subr.mxu0 %v1400
      %1437 = vmatpush1.msra.mxu0 %v1399
      %1438 = vmatprep.subr.mxu0 %v1398
      %1439 = vmatpush1.msra.mxu0 %v1397
      %1440 = vmatprep.subr.mxu0 %v1396
      %1441 = vmatpush1.msra.mxu0 %v1395
      %1442 = vmatprep.subr.mxu0 %v1394
      %1443 = vmatpush1.msra.mxu0 %v1393
      %1444 = vmatprep.subr.mxu0 %v1392
      %1445 = vmatpush1.msra.mxu0 %v1391
      %1446 = vmatprep.subr.mxu0 %v1390
      %1447 = vmatpush1.msra.mxu0 %v1389
      %1448 = vmatprep.subr.mxu0 0.0
      %1449 = vmatpush2.msra.mxu0 0.0
      %1450 = vmatprep.subr.mxu0 0.0
      %1451 = vmatpush2.msra.mxu0 0.0
      %1452 = vmatprep.subr.mxu0 0.0
      %1453 = vmatpush2.msra.mxu0 0.0
      %1454 = vmatprep.subr.mxu0 0.0
      %1455 = vmatpush2.msra.mxu0 0.0
      %1456 = vmatprep.subr.mxu0 0.0
      %1457 = vmatpush2.msra.mxu0 0.0
      %1458 = vmatprep.subr.mxu0 0.0
      %1459 = vmatpush2.msra.mxu0 0.0
      %1460 = vmatprep.subr.mxu0 0.0
      %1461 = vmatpush2.msra.mxu0 0.0
      %1462 = vmatprep.subr.mxu0 0.0
      %1463 = vmatpush2.msra.mxu0 0.0
      %1464 = vmatprep.subr.mxu0 0.0
      %1465 = vmatpush2.msra.mxu0 0.0
      %1466 = vmatprep.subr.mxu0 0.0
      %1467 = vmatpush2.msra.mxu0 0.0
      %1468 = vmatprep.subr.mxu0 0.0
      %1469 = vmatpush2.msra.mxu0 0.0
      %1470 = vmatprep.subr.mxu0 0.0
      %1471 = vmatpush2.msra.mxu0 0.0
      %1472 = vmatprep.subr.mxu0 0.0
      %1473 = vmatpush2.msra.mxu0 0.0
      %1474 = vmatprep.subr.mxu0 0.0
      %1475 = vmatpush2.msra.mxu0 0.0
      %1476 = vmatprep.subr.mxu0 0.0
      %1477 = vmatpush2.msra.mxu0 0.0
      %1478 = vmatprep.subr.mxu0 0.0
      %1479 = vmatpush2.msra.mxu0 0.0
      %1480 = vmatprep.mubr.f32.mxu0 0.0
      %1481 = vmatmul.mubr.f32.gmra.mxu0 %v1414
      %v1482 = vpop.f32.mrf.mxu0
      %v1483 = vadd.f32 0.0, %v1482
      %v1484 = vpop.f32.mrf.mxu0
      %v1485 = vadd.f32 0.0, %v1484
      %1486 = vdwg.mxu0
      %v1487 = vadd.f32 %v1348, %v1483
      %v1488 = vadd.f32 %v1349, %v1485
      %v1489 = vld [vmem:[%s2] sm:$0xff]
      %1491 = vset.pattern.permute.xlu0 0
      %1492 = vperm.xlu0 %1491, %v1489
      %v1493 = vpop.permute.xlu0 %1492
      %v1495 = vadd.f32 %v1487, %v1493
      %v1496 = vadd.f32 %v1488, %v1493
      %v1497 = vmax.f32 %v1495, 0.0
      %v1498 = vmax.f32 %v1496, 0.0
      %1499 = vst [vmem:[#allocation2] sm:$0xff] %v1497
      %vm1500 = vcmask 1022976
      %1501 = vst.msk [vmem:[#allocation2 + $0x8] sm:$0xff] %vm1500, %v1498
      %v1502 = vld [vmem:[#allocation2] sm:$0xff]
      %v1503 = vld [vmem:[#allocation2 + $0x8] sm:$0xff]
      %1506 = vrot.lane.b32.xlu0 %v1502, 127
      %v1507 = vpop.permute.xlu0 %1506
      %1508 = vrot.lane.b32.xlu0 %v1503, 127
      %v1509 = vpop.permute.xlu0 %1508
      %v1510 = vsel %vm330, %v1507, %v1509
      %v1513 = vmax.f32 %v1502, %v1510
      %v1514 = vmax.f32 %v1503, %v1509
      %1515 = vrot.lane.b32.xlu0 %v1502, 126
      %v1516 = vpop.permute.xlu0 %1515
      %1517 = vrot.lane.b32.xlu0 %v1503, 126
      %v1518 = vpop.permute.xlu0 %1517
      %v1519 = vsel %vm524, %v1516, %v1518
      %v1522 = vmax.f32 %v1513, %v1519
      %v1523 = vmax.f32 %v1514, %v1518
      %1526 = vrot.lane.b32.xlu0 %v1522, 111
      %v1527 = vpop.permute.xlu0 %1526
      %1528 = vrot.lane.b32.xlu0 %v1523, 111
      %v1529 = vpop.permute.xlu0 %1528
      %v1530 = vsel %vm693, %v1527, %v1529
      %v1533 = vmax.f32 %v1522, %v1530
      %v1534 = vmax.f32 %v1523, %v1529
      %1535 = vrot.lane.b32.xlu0 %v1522, 94
      %v1536 = vpop.permute.xlu0 %1535
      %1537 = vrot.lane.b32.xlu0 %v1523, 94
      %v1538 = vpop.permute.xlu0 %1537
      %v1539 = vsel %vm1110, %v1536, %v1538
      %v1542 = vmax.f32 %v1533, %v1539
      %v1543 = vmax.f32 %v1534, %v1538
      %v1544 = vld [vmem:[%s5] sm:$0xff]
      %v1545 = vld [vmem:[%s5 + $0x8] sm:$0xff]
      %v1546 = vld [vmem:[%s5 + $0x10] sm:$0xff]
      %v1547 = vld [vmem:[%s5 + $0x18] sm:$0xff]
      %v1548 = vld [vmem:[%s5 + $0x20] sm:$0xff]
      %v1549 = vld [vmem:[%s5 + $0x28] sm:$0xff]
      %v1550 = vld [vmem:[%s5 + $0x30] sm:$0xff]
      %v1551 = vld [vmem:[%s5 + $0x38] sm:$0xff]
      %v1552 = vld [vmem:[%s5 + $0x40] sm:$0xff]
      %v1553 = vld [vmem:[%s5 + $0x48] sm:$0xff]
      %v1554 = vld [vmem:[%s5 + $0x50] sm:$0xff]
      %v1555 = vld [vmem:[%s5 + $0x58] sm:$0xff]
      %v1556 = vld [vmem:[%s5 + $0x60] sm:$0xff]
      %v1557 = vld [vmem:[%s5 + $0x68] sm:$0xff]
      %v1558 = vld [vmem:[%s5 + $0x70] sm:$0xff]
      %v1559 = vld [vmem:[%s5 + $0x78] sm:$0xff]
      %v1560 = vld [vmem:[%s5 + $0x80] sm:$0xff]
      %v1561 = vld [vmem:[%s5 + $0x88] sm:$0xff]
      %v1562 = vld [vmem:[%s5 + $0x90] sm:$0xff]
      %v1563 = vld [vmem:[%s5 + $0x98] sm:$0xff]
      %v1564 = vld [vmem:[%s5 + $0xa0] sm:$0xff]
      %v1565 = vld [vmem:[%s5 + $0xa8] sm:$0xff]
      %v1566 = vld [vmem:[%s5 + $0xb0] sm:$0xff]
      %v1567 = vld [vmem:[%s5 + $0xb8] sm:$0xff]
      %v1568 = vld [vmem:[%s5 + $0xc0] sm:$0xff]
      %v1569 = vld [vmem:[%s5 + $0xc8] sm:$0xff]
      %v1570 = vld [vmem:[%s5 + $0xd0] sm:$0xff]
      %v1571 = vld [vmem:[%s5 + $0xd8] sm:$0x1]
      %vm1572 = vcmask 728064
      %v1574 = vsel %vm1572, %v1543, 0
      %vm1576 = vcmask 1040384
      %v1578 = vsel %vm1576, %v1571, 0
      %1580 = vmatprep.subr.mxu0 0.0
      %1581 = vmatpush1.msra.mxu0 %v1559
      %1582 = vmatprep.subr.mxu0 0.0
      %1583 = vmatpush1.msra.mxu0 %v1558
      %1584 = vmatprep.subr.mxu0 0.0
      %1585 = vmatpush1.msra.mxu0 %v1557
      %1586 = vmatprep.subr.mxu0 0.0
      %1587 = vmatpush1.msra.mxu0 %v1556
      %1588 = vmatprep.subr.mxu0 0.0
      %1589 = vmatpush1.msra.mxu0 %v1555
      %1590 = vmatprep.subr.mxu0 0.0
      %1591 = vmatpush1.msra.mxu0 %v1554
      %1592 = vmatprep.subr.mxu0 0.0
      %1593 = vmatpush1.msra.mxu0 %v1553
      %1594 = vmatprep.subr.mxu0 0.0
      %1595 = vmatpush1.msra.mxu0 %v1552
      %1596 = vmatprep.subr.mxu0 0.0
      %1597 = vmatpush1.msra.mxu0 %v1551
      %1598 = vmatprep.subr.mxu0 0.0
      %1599 = vmatpush1.msra.mxu0 %v1550
      %1600 = vmatprep.subr.mxu0 0.0
      %1601 = vmatpush1.msra.mxu0 %v1549
      %1602 = vmatprep.subr.mxu0 0.0
      %1603 = vmatpush1.msra.mxu0 %v1548
      %1604 = vmatprep.subr.mxu0 0.0
      %1605 = vmatpush1.msra.mxu0 %v1547
      %1606 = vmatprep.subr.mxu0 0.0
      %1607 = vmatpush1.msra.mxu0 %v1546
      %1608 = vmatprep.subr.mxu0 0.0
      %1609 = vmatpush1.msra.mxu0 %v1545
      %1610 = vmatprep.subr.mxu0 0.0
      %1611 = vmatpush1.msra.mxu0 %v1544
      %1612 = vmatprep.subr.mxu0 0.0
      %1613 = vmatpush2.msra.mxu0 0.0
      %1614 = vmatprep.subr.mxu0 0.0
      %1615 = vmatpush2.msra.mxu0 0.0
      %1616 = vmatprep.subr.mxu0 0.0
      %1617 = vmatpush2.msra.mxu0 0.0
      %1618 = vmatprep.subr.mxu0 0.0
      %1619 = vmatpush2.msra.mxu0 0.0
      %1620 = vmatprep.subr.mxu0 0.0
      %1621 = vmatpush2.msra.mxu0 %v1578
      %1622 = vmatprep.subr.mxu0 0.0
      %1623 = vmatpush2.msra.mxu0 %v1570
      %1624 = vmatprep.subr.mxu0 0.0
      %1625 = vmatpush2.msra.mxu0 %v1569
      %1626 = vmatprep.subr.mxu0 0.0
      %1627 = vmatpush2.msra.mxu0 %v1568
      %1628 = vmatprep.subr.mxu0 0.0
      %1629 = vmatpush2.msra.mxu0 %v1567
      %1630 = vmatprep.subr.mxu0 0.0
      %1631 = vmatpush2.msra.mxu0 %v1566
      %1632 = vmatprep.subr.mxu0 0.0
      %1633 = vmatpush2.msra.mxu0 %v1565
      %1634 = vmatprep.subr.mxu0 0.0
      %1635 = vmatpush2.msra.mxu0 %v1564
      %1636 = vmatprep.subr.mxu0 0.0
      %1637 = vmatpush2.msra.mxu0 %v1563
      %1638 = vmatprep.subr.mxu0 0.0
      %1639 = vmatpush2.msra.mxu0 %v1562
      %1640 = vmatprep.subr.mxu0 0.0
      %1641 = vmatpush2.msra.mxu0 %v1561
      %1642 = vmatprep.subr.mxu0 0.0
      %1643 = vmatpush2.msra.mxu0 %v1560
      %1644 = vmatprep.mubr.f32.mxu0 %v1574
      %1645 = vmatmul.mubr.f32.gmra.mxu0 %v1542
      %v1646 = vpop.f32.mrf.mxu0
      %v1647 = vadd.f32 0.0, %v1646
      %v1648 = vpop.f32.mrf.mxu0
      %1649 = vdwg.mxu0
      %vm1650 = vcmask 662528
      %1651 = vst.msk [vmem:[#allocation3] sm:$0xff] %vm1650, %v1647
      %v1652 = vld [vmem:[%s3] sm:$0xff]
      %v1653 = vld [vmem:[%s3 + $0x8] sm:$0xff]
      %v1654 = vld [vmem:[%s3 + $0x10] sm:$0xff]
      %v1655 = vld [vmem:[%s3 + $0x18] sm:$0xff]
      %v1656 = vld [vmem:[#allocation3] sm:$0xff]
      %s1657 = scalar_lea.vmem %s3, 32
      %v1658 = vld [vmem:[%s1657] sm:$0xff]
      %v1659 = vld [vmem:[%s1657 + $0x8] sm:$0xff]
      %v1660 = vld [vmem:[%s1657 + $0x10] sm:$0xff]
      %v1661 = vld [vmem:[%s1657 + $0x18] sm:$0xff]
      %1663 = vrot.lane.b32.xlu0 %v1656, 127
      %v1664 = vpop.permute.xlu0 %1663
      %vm1666 = vcmask 64512
      %v1668 = vsel %vm1666, %v1658, 0
      %v1671 = vsel %vm1666, %v1659, 0
      %v1674 = vsel %vm1666, %v1660, 0
      %v1677 = vsel %vm1666, %v1661, 0
      %1679 = vmatprep.subr.mxu0 0.0
      %1680 = vmatpush1.msra.mxu0 0.0
      %1681 = vmatprep.subr.mxu0 0.0
      %1682 = vmatpush1.msra.mxu0 0.0
      %1683 = vmatprep.subr.mxu0 0.0
      %1684 = vmatpush1.msra.mxu0 0.0
      %1685 = vmatprep.subr.mxu0 0.0
      %1686 = vmatpush1.msra.mxu0 0.0
      %1687 = vmatprep.subr.mxu0 0.0
      %1688 = vmatpush1.msra.mxu0 0.0
      %1689 = vmatprep.subr.mxu0 0.0
      %1690 = vmatpush1.msra.mxu0 0.0
      %1691 = vmatprep.subr.mxu0 0.0
      %1692 = vmatpush1.msra.mxu0 0.0
      %1693 = vmatprep.subr.mxu0 0.0
      %1694 = vmatpush1.msra.mxu0 0.0
      %1695 = vmatprep.subr.mxu0 0.0
      %1696 = vmatpush1.msra.mxu0 0.0
      %1697 = vmatprep.subr.mxu0 0.0
      %1698 = vmatpush1.msra.mxu0 0.0
      %1699 = vmatprep.subr.mxu0 0.0
      %1700 = vmatpush1.msra.mxu0 0.0
      %1701 = vmatprep.subr.mxu0 0.0
      %1702 = vmatpush1.msra.mxu0 0.0
      %1703 = vmatprep.subr.mxu0 0.0
      %1704 = vmatpush1.msra.mxu0 0.0
      %1705 = vmatprep.subr.mxu0 0.0
      %1706 = vmatpush1.msra.mxu0 0.0
      %1707 = vmatprep.subr.mxu0 0.0
      %1708 = vmatpush1.msra.mxu0 0.0
      %1709 = vmatprep.subr.mxu0 0.0
      %1710 = vmatpush1.msra.mxu0 %v1664
      %1711 = vmatprep.subr.mxu0 0.0
      %1712 = vmatpush2.msra.mxu0 0.0
      %1713 = vmatprep.subr.mxu0 0.0
      %1714 = vmatpush2.msra.mxu0 0.0
      %1715 = vmatprep.subr.mxu0 0.0
      %1716 = vmatpush2.msra.mxu0 0.0
      %1717 = vmatprep.subr.mxu0 0.0
      %1718 = vmatpush2.msra.mxu0 0.0
      %1719 = vmatprep.subr.mxu0 0.0
      %1720 = vmatpush2.msra.mxu0 0.0
      %1721 = vmatprep.subr.mxu0 0.0
      %1722 = vmatpush2.msra.mxu0 0.0
      %1723 = vmatprep.subr.mxu0 0.0
      %1724 = vmatpush2.msra.mxu0 0.0
      %1725 = vmatprep.subr.mxu0 0.0
      %1726 = vmatpush2.msra.mxu0 0.0
      %1727 = vmatprep.subr.mxu0 0.0
      %1728 = vmatpush2.msra.mxu0 0.0
      %1729 = vmatprep.subr.mxu0 0.0
      %1730 = vmatpush2.msra.mxu0 0.0
      %1731 = vmatprep.subr.mxu0 0.0
      %1732 = vmatpush2.msra.mxu0 0.0
      %1733 = vmatprep.subr.mxu0 0.0
      %1734 = vmatpush2.msra.mxu0 0.0
      %1735 = vmatprep.subr.mxu0 0.0
      %1736 = vmatpush2.msra.mxu0 0.0
      %1737 = vmatprep.subr.mxu0 0.0
      %1738 = vmatpush2.msra.mxu0 0.0
      %1739 = vmatprep.subr.mxu0 0.0
      %1740 = vmatpush2.msra.mxu0 0.0
      %1741 = vmatprep.subr.mxu0 0.0
      %1742 = vmatpush2.msra.mxu0 0.0
      %1743 = vmatprep.mubr.f32.mxu0 0.0
      %1744 = vmatmul.mubr.f32.gmra.mxu0 %v1668
      %v1745 = vpop.f32.mrf.mxu0
      %v1746 = vadd.f32 0.0, %v1745
      %v1747 = vpop.f32.mrf.mxu0
      %1748 = vmatprep.mubr.f32.mxu0 0.0
      %1749 = vmatmul.mubr.f32.gmra.mxu0 %v1671
      %v1750 = vpop.f32.mrf.mxu0
      %v1751 = vadd.f32 0.0, %v1750
      %v1752 = vpop.f32.mrf.mxu0
      %1753 = vmatprep.mubr.f32.mxu0 0.0
      %1754 = vmatmul.mubr.f32.gmra.mxu0 %v1674
      %v1755 = vpop.f32.mrf.mxu0
      %v1756 = vadd.f32 0.0, %v1755
      %v1757 = vpop.f32.mrf.mxu0
      %1758 = vmatprep.mubr.f32.mxu0 0.0
      %1759 = vmatmul.mubr.f32.gmra.mxu0 %v1677
      %v1760 = vpop.f32.mrf.mxu0
      %v1761 = vadd.f32 0.0, %v1760
      %v1762 = vpop.f32.mrf.mxu0
      %1763 = vdwg.mxu0
      %v1765 = vsel %vm1666, %v1652, 0
      %v1768 = vsel %vm1666, %v1653, 0
      %v1771 = vsel %vm1666, %v1654, 0
      %v1774 = vsel %vm1666, %v1655, 0
      %1776 = vmatprep.subr.mxu0 0.0
      %1777 = vmatpush1.msra.mxu0 0.0
      %1778 = vmatprep.subr.mxu0 0.0
      %1779 = vmatpush1.msra.mxu0 0.0
      %1780 = vmatprep.subr.mxu0 0.0
      %1781 = vmatpush1.msra.mxu0 0.0
      %1782 = vmatprep.subr.mxu0 0.0
      %1783 = vmatpush1.msra.mxu0 0.0
      %1784 = vmatprep.subr.mxu0 0.0
      %1785 = vmatpush1.msra.mxu0 0.0
      %1786 = vmatprep.subr.mxu0 0.0
      %1787 = vmatpush1.msra.mxu0 0.0
      %1788 = vmatprep.subr.mxu0 0.0
      %1789 = vmatpush1.msra.mxu0 0.0
      %1790 = vmatprep.subr.mxu0 0.0
      %1791 = vmatpush1.msra.mxu0 0.0
      %1792 = vmatprep.subr.mxu0 0.0
      %1793 = vmatpush1.msra.mxu0 0.0
      %1794 = vmatprep.subr.mxu0 0.0
      %1795 = vmatpush1.msra.mxu0 0.0
      %1796 = vmatprep.subr.mxu0 0.0
      %1797 = vmatpush1.msra.mxu0 0.0
      %1798 = vmatprep.subr.mxu0 0.0
      %1799 = vmatpush1.msra.mxu0 0.0
      %1800 = vmatprep.subr.mxu0 0.0
      %1801 = vmatpush1.msra.mxu0 0.0
      %1802 = vmatprep.subr.mxu0 0.0
      %1803 = vmatpush1.msra.mxu0 0.0
      %1804 = vmatprep.subr.mxu0 0.0
      %1805 = vmatpush1.msra.mxu0 0.0
      %1806 = vmatprep.subr.mxu0 0.0
      %1807 = vmatpush1.msra.mxu0 %v1656
      %1808 = vmatprep.subr.mxu0 0.0
      %1809 = vmatpush2.msra.mxu0 0.0
      %1810 = vmatprep.subr.mxu0 0.0
      %1811 = vmatpush2.msra.mxu0 0.0
      %1812 = vmatprep.subr.mxu0 0.0
      %1813 = vmatpush2.msra.mxu0 0.0
      %1814 = vmatprep.subr.mxu0 0.0
      %1815 = vmatpush2.msra.mxu0 0.0
      %1816 = vmatprep.subr.mxu0 0.0
      %1817 = vmatpush2.msra.mxu0 0.0
      %1818 = vmatprep.subr.mxu0 0.0
      %1819 = vmatpush2.msra.mxu0 0.0
      %1820 = vmatprep.subr.mxu0 0.0
      %1821 = vmatpush2.msra.mxu0 0.0
      %1822 = vmatprep.subr.mxu0 0.0
      %1823 = vmatpush2.msra.mxu0 0.0
      %1824 = vmatprep.subr.mxu0 0.0
      %1825 = vmatpush2.msra.mxu0 0.0
      %1826 = vmatprep.subr.mxu0 0.0
      %1827 = vmatpush2.msra.mxu0 0.0
      %1828 = vmatprep.subr.mxu0 0.0
      %1829 = vmatpush2.msra.mxu0 0.0
      %1830 = vmatprep.subr.mxu0 0.0
      %1831 = vmatpush2.msra.mxu0 0.0
      %1832 = vmatprep.subr.mxu0 0.0
      %1833 = vmatpush2.msra.mxu0 0.0
      %1834 = vmatprep.subr.mxu0 0.0
      %1835 = vmatpush2.msra.mxu0 0.0
      %1836 = vmatprep.subr.mxu0 0.0
      %1837 = vmatpush2.msra.mxu0 0.0
      %1838 = vmatprep.subr.mxu0 0.0
      %1839 = vmatpush2.msra.mxu0 0.0
      %1840 = vmatprep.mubr.f32.mxu0 0.0
      %1841 = vmatmul.mubr.f32.gmra.mxu0 %v1765
      %v1842 = vpop.f32.mrf.mxu0
      %v1843 = vadd.f32 %v1746, %v1842
      %v1844 = vpop.f32.mrf.mxu0
      %1845 = vmatprep.mubr.f32.mxu0 0.0
      %1846 = vmatmul.mubr.f32.gmra.mxu0 %v1768
      %v1847 = vpop.f32.mrf.mxu0
      %v1848 = vadd.f32 %v1751, %v1847
      %v1849 = vpop.f32.mrf.mxu0
      %1850 = vmatprep.mubr.f32.mxu0 0.0
      %1851 = vmatmul.mubr.f32.gmra.mxu0 %v1771
      %v1852 = vpop.f32.mrf.mxu0
      %v1853 = vadd.f32 %v1756, %v1852
      %v1854 = vpop.f32.mrf.mxu0
      %1855 = vmatprep.mubr.f32.mxu0 0.0
      %1856 = vmatmul.mubr.f32.gmra.mxu0 %v1774
      %v1857 = vpop.f32.mrf.mxu0
      %v1858 = vadd.f32 %v1761, %v1857
      %v1859 = vpop.f32.mrf.mxu0
      %1860 = vdwg.mxu0
      %s1861 = scalar_lea.vmem %s3, 64
      %v1862 = vld [vmem:[%s1861] sm:$0xff]
      %v1863 = vld [vmem:[%s1861 + $0x8] sm:$0xff]
      %v1864 = vld [vmem:[%s1861 + $0x10] sm:$0xff]
      %v1865 = vld [vmem:[%s1861 + $0x18] sm:$0xff]
      %1866 = vrot.lane.b32.xlu0 %v1656, 126
      %v1867 = vpop.permute.xlu0 %1866
      %v1870 = vsel %vm1666, %v1862, 0
      %v1873 = vsel %vm1666, %v1863, 0
      %v1876 = vsel %vm1666, %v1864, 0
      %v1879 = vsel %vm1666, %v1865, 0
      %1881 = vmatprep.subr.mxu0 0.0
      %1882 = vmatpush1.msra.mxu0 0.0
      %1883 = vmatprep.subr.mxu0 0.0
      %1884 = vmatpush1.msra.mxu0 0.0
      %1885 = vmatprep.subr.mxu0 0.0
      %1886 = vmatpush1.msra.mxu0 0.0
      %1887 = vmatprep.subr.mxu0 0.0
      %1888 = vmatpush1.msra.mxu0 0.0
      %1889 = vmatprep.subr.mxu0 0.0
      %1890 = vmatpush1.msra.mxu0 0.0
      %1891 = vmatprep.subr.mxu0 0.0
      %1892 = vmatpush1.msra.mxu0 0.0
      %1893 = vmatprep.subr.mxu0 0.0
      %1894 = vmatpush1.msra.mxu0 0.0
      %1895 = vmatprep.subr.mxu0 0.0
      %1896 = vmatpush1.msra.mxu0 0.0
      %1897 = vmatprep.subr.mxu0 0.0
      %1898 = vmatpush1.msra.mxu0 0.0
      %1899 = vmatprep.subr.mxu0 0.0
      %1900 = vmatpush1.msra.mxu0 0.0
      %1901 = vmatprep.subr.mxu0 0.0
      %1902 = vmatpush1.msra.mxu0 0.0
      %1903 = vmatprep.subr.mxu0 0.0
      %1904 = vmatpush1.msra.mxu0 0.0
      %1905 = vmatprep.subr.mxu0 0.0
      %1906 = vmatpush1.msra.mxu0 0.0
      %1907 = vmatprep.subr.mxu0 0.0
      %1908 = vmatpush1.msra.mxu0 0.0
      %1909 = vmatprep.subr.mxu0 0.0
      %1910 = vmatpush1.msra.mxu0 0.0
      %1911 = vmatprep.subr.mxu0 0.0
      %1912 = vmatpush1.msra.mxu0 %v1867
      %1913 = vmatprep.subr.mxu0 0.0
      %1914 = vmatpush2.msra.mxu0 0.0
      %1915 = vmatprep.subr.mxu0 0.0
      %1916 = vmatpush2.msra.mxu0 0.0
      %1917 = vmatprep.subr.mxu0 0.0
      %1918 = vmatpush2.msra.mxu0 0.0
      %1919 = vmatprep.subr.mxu0 0.0
      %1920 = vmatpush2.msra.mxu0 0.0
      %1921 = vmatprep.subr.mxu0 0.0
      %1922 = vmatpush2.msra.mxu0 0.0
      %1923 = vmatprep.subr.mxu0 0.0
      %1924 = vmatpush2.msra.mxu0 0.0
      %1925 = vmatprep.subr.mxu0 0.0
      %1926 = vmatpush2.msra.mxu0 0.0
      %1927 = vmatprep.subr.mxu0 0.0
      %1928 = vmatpush2.msra.mxu0 0.0
      %1929 = vmatprep.subr.mxu0 0.0
      %1930 = vmatpush2.msra.mxu0 0.0
      %1931 = vmatprep.subr.mxu0 0.0
      %1932 = vmatpush2.msra.mxu0 0.0
      %1933 = vmatprep.subr.mxu0 0.0
      %1934 = vmatpush2.msra.mxu0 0.0
      %1935 = vmatprep.subr.mxu0 0.0
      %1936 = vmatpush2.msra.mxu0 0.0
      %1937 = vmatprep.subr.mxu0 0.0
      %1938 = vmatpush2.msra.mxu0 0.0
      %1939 = vmatprep.subr.mxu0 0.0
      %1940 = vmatpush2.msra.mxu0 0.0
      %1941 = vmatprep.subr.mxu0 0.0
      %1942 = vmatpush2.msra.mxu0 0.0
      %1943 = vmatprep.subr.mxu0 0.0
      %1944 = vmatpush2.msra.mxu0 0.0
      %1945 = vmatprep.mubr.f32.mxu0 0.0
      %1946 = vmatmul.mubr.f32.gmra.mxu0 %v1870
      %v1947 = vpop.f32.mrf.mxu0
      %v1948 = vadd.f32 0.0, %v1947
      %v1949 = vpop.f32.mrf.mxu0
      %1950 = vmatprep.mubr.f32.mxu0 0.0
      %1951 = vmatmul.mubr.f32.gmra.mxu0 %v1873
      %v1952 = vpop.f32.mrf.mxu0
      %v1953 = vadd.f32 0.0, %v1952
      %v1954 = vpop.f32.mrf.mxu0
      %1955 = vmatprep.mubr.f32.mxu0 0.0
      %1956 = vmatmul.mubr.f32.gmra.mxu0 %v1876
      %v1957 = vpop.f32.mrf.mxu0
      %v1958 = vadd.f32 0.0, %v1957
      %v1959 = vpop.f32.mrf.mxu0
      %1960 = vmatprep.mubr.f32.mxu0 0.0
      %1961 = vmatmul.mubr.f32.gmra.mxu0 %v1879
      %v1962 = vpop.f32.mrf.mxu0
      %v1963 = vadd.f32 0.0, %v1962
      %v1964 = vpop.f32.mrf.mxu0
      %1965 = vdwg.mxu0
      %v1966 = vadd.f32 %v1843, %v1948
      %v1967 = vadd.f32 %v1848, %v1953
      %v1968 = vadd.f32 %v1853, %v1958
      %v1969 = vadd.f32 %v1858, %v1963
      %s1970 = scalar_lea.vmem %s3, 96
      %v1971 = vld [vmem:[%s1970] sm:$0xff]
      %v1972 = vld [vmem:[%s1970 + $0x8] sm:$0xff]
      %v1973 = vld [vmem:[%s1970 + $0x10] sm:$0xff]
      %v1974 = vld [vmem:[%s1970 + $0x18] sm:$0xff]
      %1975 = vrot.lane.b32.xlu0 %v1656, 119
      %v1976 = vpop.permute.xlu0 %1975
      %v1979 = vsel %vm1666, %v1971, 0
      %v1982 = vsel %vm1666, %v1972, 0
      %v1985 = vsel %vm1666, %v1973, 0
      %v1988 = vsel %vm1666, %v1974, 0
      %1990 = vmatprep.subr.mxu0 0.0
      %1991 = vmatpush1.msra.mxu0 0.0
      %1992 = vmatprep.subr.mxu0 0.0
      %1993 = vmatpush1.msra.mxu0 0.0
      %1994 = vmatprep.subr.mxu0 0.0
      %1995 = vmatpush1.msra.mxu0 0.0
      %1996 = vmatprep.subr.mxu0 0.0
      %1997 = vmatpush1.msra.mxu0 0.0
      %1998 = vmatprep.subr.mxu0 0.0
      %1999 = vmatpush1.msra.mxu0 0.0
      %2000 = vmatprep.subr.mxu0 0.0
      %2001 = vmatpush1.msra.mxu0 0.0
      %2002 = vmatprep.subr.mxu0 0.0
      %2003 = vmatpush1.msra.mxu0 0.0
      %2004 = vmatprep.subr.mxu0 0.0
      %2005 = vmatpush1.msra.mxu0 0.0
      %2006 = vmatprep.subr.mxu0 0.0
      %2007 = vmatpush1.msra.mxu0 0.0
      %2008 = vmatprep.subr.mxu0 0.0
      %2009 = vmatpush1.msra.mxu0 0.0
      %2010 = vmatprep.subr.mxu0 0.0
      %2011 = vmatpush1.msra.mxu0 0.0
      %2012 = vmatprep.subr.mxu0 0.0
      %2013 = vmatpush1.msra.mxu0 0.0
      %2014 = vmatprep.subr.mxu0 0.0
      %2015 = vmatpush1.msra.mxu0 0.0
      %2016 = vmatprep.subr.mxu0 0.0
      %2017 = vmatpush1.msra.mxu0 0.0
      %2018 = vmatprep.subr.mxu0 0.0
      %2019 = vmatpush1.msra.mxu0 0.0
      %2020 = vmatprep.subr.mxu0 0.0
      %2021 = vmatpush1.msra.mxu0 %v1976
      %2022 = vmatprep.subr.mxu0 0.0
      %2023 = vmatpush2.msra.mxu0 0.0
      %2024 = vmatprep.subr.mxu0 0.0
      %2025 = vmatpush2.msra.mxu0 0.0
      %2026 = vmatprep.subr.mxu0 0.0
      %2027 = vmatpush2.msra.mxu0 0.0
      %2028 = vmatprep.subr.mxu0 0.0
      %2029 = vmatpush2.msra.mxu0 0.0
      %2030 = vmatprep.subr.mxu0 0.0
      %2031 = vmatpush2.msra.mxu0 0.0
      %2032 = vmatprep.subr.mxu0 0.0
      %2033 = vmatpush2.msra.mxu0 0.0
      %2034 = vmatprep.subr.mxu0 0.0
      %2035 = vmatpush2.msra.mxu0 0.0
      %2036 = vmatprep.subr.mxu0 0.0
      %2037 = vmatpush2.msra.mxu0 0.0
      %2038 = vmatprep.subr.mxu0 0.0
      %2039 = vmatpush2.msra.mxu0 0.0
      %2040 = vmatprep.subr.mxu0 0.0
      %2041 = vmatpush2.msra.mxu0 0.0
      %2042 = vmatprep.subr.mxu0 0.0
      %2043 = vmatpush2.msra.mxu0 0.0
      %2044 = vmatprep.subr.mxu0 0.0
      %2045 = vmatpush2.msra.mxu0 0.0
      %2046 = vmatprep.subr.mxu0 0.0
      %2047 = vmatpush2.msra.mxu0 0.0
      %2048 = vmatprep.subr.mxu0 0.0
      %2049 = vmatpush2.msra.mxu0 0.0
      %2050 = vmatprep.subr.mxu0 0.0
      %2051 = vmatpush2.msra.mxu0 0.0
      %2052 = vmatprep.subr.mxu0 0.0
      %2053 = vmatpush2.msra.mxu0 0.0
      %2054 = vmatprep.mubr.f32.mxu0 0.0
      %2055 = vmatmul.mubr.f32.gmra.mxu0 %v1979
      %v2056 = vpop.f32.mrf.mxu0
      %v2057 = vadd.f32 0.0, %v2056
      %v2058 = vpop.f32.mrf.mxu0
      %2059 = vmatprep.mubr.f32.mxu0 0.0
      %2060 = vmatmul.mubr.f32.gmra.mxu0 %v1982
      %v2061 = vpop.f32.mrf.mxu0
      %v2062 = vadd.f32 0.0, %v2061
      %v2063 = vpop.f32.mrf.mxu0
      %2064 = vmatprep.mubr.f32.mxu0 0.0
      %2065 = vmatmul.mubr.f32.gmra.mxu0 %v1985
      %v2066 = vpop.f32.mrf.mxu0
      %v2067 = vadd.f32 0.0, %v2066
      %v2068 = vpop.f32.mrf.mxu0
      %2069 = vmatprep.mubr.f32.mxu0 0.0
      %2070 = vmatmul.mubr.f32.gmra.mxu0 %v1988
      %v2071 = vpop.f32.mrf.mxu0
      %v2072 = vadd.f32 0.0, %v2071
      %v2073 = vpop.f32.mrf.mxu0
      %2074 = vdwg.mxu0
      %v2075 = vadd.f32 %v1966, %v2057
      %v2076 = vadd.f32 %v1967, %v2062
      %v2077 = vadd.f32 %v1968, %v2067
      %v2078 = vadd.f32 %v1969, %v2072
      %s2079 = scalar_lea.vmem %s3, 128
      %v2080 = vld [vmem:[%s2079] sm:$0xff]
      %v2081 = vld [vmem:[%s2079 + $0x8] sm:$0xff]
      %v2082 = vld [vmem:[%s2079 + $0x10] sm:$0xff]
      %v2083 = vld [vmem:[%s2079 + $0x18] sm:$0xff]
      %2084 = vrot.lane.b32.xlu0 %v1656, 118
      %v2085 = vpop.permute.xlu0 %2084
      %v2088 = vsel %vm1666, %v2080, 0
      %v2091 = vsel %vm1666, %v2081, 0
      %v2094 = vsel %vm1666, %v2082, 0
      %v2097 = vsel %vm1666, %v2083, 0
      %2099 = vmatprep.subr.mxu0 0.0
      %2100 = vmatpush1.msra.mxu0 0.0
      %2101 = vmatprep.subr.mxu0 0.0
      %2102 = vmatpush1.msra.mxu0 0.0
      %2103 = vmatprep.subr.mxu0 0.0
      %2104 = vmatpush1.msra.mxu0 0.0
      %2105 = vmatprep.subr.mxu0 0.0
      %2106 = vmatpush1.msra.mxu0 0.0
      %2107 = vmatprep.subr.mxu0 0.0
      %2108 = vmatpush1.msra.mxu0 0.0
      %2109 = vmatprep.subr.mxu0 0.0
      %2110 = vmatpush1.msra.mxu0 0.0
      %2111 = vmatprep.subr.mxu0 0.0
      %2112 = vmatpush1.msra.mxu0 0.0
      %2113 = vmatprep.subr.mxu0 0.0
      %2114 = vmatpush1.msra.mxu0 0.0
      %2115 = vmatprep.subr.mxu0 0.0
      %2116 = vmatpush1.msra.mxu0 0.0
      %2117 = vmatprep.subr.mxu0 0.0
      %2118 = vmatpush1.msra.mxu0 0.0
      %2119 = vmatprep.subr.mxu0 0.0
      %2120 = vmatpush1.msra.mxu0 0.0
      %2121 = vmatprep.subr.mxu0 0.0
      %2122 = vmatpush1.msra.mxu0 0.0
      %2123 = vmatprep.subr.mxu0 0.0
      %2124 = vmatpush1.msra.mxu0 0.0
      %2125 = vmatprep.subr.mxu0 0.0
      %2126 = vmatpush1.msra.mxu0 0.0
      %2127 = vmatprep.subr.mxu0 0.0
      %2128 = vmatpush1.msra.mxu0 0.0
      %2129 = vmatprep.subr.mxu0 0.0
      %2130 = vmatpush1.msra.mxu0 %v2085
      %2131 = vmatprep.subr.mxu0 0.0
      %2132 = vmatpush2.msra.mxu0 0.0
      %2133 = vmatprep.subr.mxu0 0.0
      %2134 = vmatpush2.msra.mxu0 0.0
      %2135 = vmatprep.subr.mxu0 0.0
      %2136 = vmatpush2.msra.mxu0 0.0
      %2137 = vmatprep.subr.mxu0 0.0
      %2138 = vmatpush2.msra.mxu0 0.0
      %2139 = vmatprep.subr.mxu0 0.0
      %2140 = vmatpush2.msra.mxu0 0.0
      %2141 = vmatprep.subr.mxu0 0.0
      %2142 = vmatpush2.msra.mxu0 0.0
      %2143 = vmatprep.subr.mxu0 0.0
      %2144 = vmatpush2.msra.mxu0 0.0
      %2145 = vmatprep.subr.mxu0 0.0
      %2146 = vmatpush2.msra.mxu0 0.0
      %2147 = vmatprep.subr.mxu0 0.0
      %2148 = vmatpush2.msra.mxu0 0.0
      %2149 = vmatprep.subr.mxu0 0.0
      %2150 = vmatpush2.msra.mxu0 0.0
      %2151 = vmatprep.subr.mxu0 0.0
      %2152 = vmatpush2.msra.mxu0 0.0
      %2153 = vmatprep.subr.mxu0 0.0
      %2154 = vmatpush2.msra.mxu0 0.0
      %2155 = vmatprep.subr.mxu0 0.0
      %2156 = vmatpush2.msra.mxu0 0.0
      %2157 = vmatprep.subr.mxu0 0.0
      %2158 = vmatpush2.msra.mxu0 0.0
      %2159 = vmatprep.subr.mxu0 0.0
      %2160 = vmatpush2.msra.mxu0 0.0
      %2161 = vmatprep.subr.mxu0 0.0
      %2162 = vmatpush2.msra.mxu0 0.0
      %2163 = vmatprep.mubr.f32.mxu0 0.0
      %2164 = vmatmul.mubr.f32.gmra.mxu0 %v2088
      %v2165 = vpop.f32.mrf.mxu0
      %v2166 = vadd.f32 0.0, %v2165
      %v2167 = vpop.f32.mrf.mxu0
      %2168 = vmatprep.mubr.f32.mxu0 0.0
      %2169 = vmatmul.mubr.f32.gmra.mxu0 %v2091
      %v2170 = vpop.f32.mrf.mxu0
      %v2171 = vadd.f32 0.0, %v2170
      %v2172 = vpop.f32.mrf.mxu0
      %2173 = vmatprep.mubr.f32.mxu0 0.0
      %2174 = vmatmul.mubr.f32.gmra.mxu0 %v2094
      %v2175 = vpop.f32.mrf.mxu0
      %v2176 = vadd.f32 0.0, %v2175
      %v2177 = vpop.f32.mrf.mxu0
      %2178 = vmatprep.mubr.f32.mxu0 0.0
      %2179 = vmatmul.mubr.f32.gmra.mxu0 %v2097
      %v2180 = vpop.f32.mrf.mxu0
      %v2181 = vadd.f32 0.0, %v2180
      %v2182 = vpop.f32.mrf.mxu0
      %2183 = vdwg.mxu0
      %v2184 = vadd.f32 %v2075, %v2166
      %v2185 = vadd.f32 %v2076, %v2171
      %v2186 = vadd.f32 %v2077, %v2176
      %v2187 = vadd.f32 %v2078, %v2181
      %s2188 = scalar_lea.vmem %s3, 160
      %v2189 = vld [vmem:[%s2188] sm:$0xff]
      %v2190 = vld [vmem:[%s2188 + $0x8] sm:$0xff]
      %v2191 = vld [vmem:[%s2188 + $0x10] sm:$0xff]
      %v2192 = vld [vmem:[%s2188 + $0x18] sm:$0xff]
      %2193 = vrot.lane.b32.xlu0 %v1656, 117
      %v2194 = vpop.permute.xlu0 %2193
      %v2197 = vsel %vm1666, %v2189, 0
      %v2200 = vsel %vm1666, %v2190, 0
      %v2203 = vsel %vm1666, %v2191, 0
      %v2206 = vsel %vm1666, %v2192, 0
      %2208 = vmatprep.subr.mxu0 0.0
      %2209 = vmatpush1.msra.mxu0 0.0
      %2210 = vmatprep.subr.mxu0 0.0
      %2211 = vmatpush1.msra.mxu0 0.0
      %2212 = vmatprep.subr.mxu0 0.0
      %2213 = vmatpush1.msra.mxu0 0.0
      %2214 = vmatprep.subr.mxu0 0.0
      %2215 = vmatpush1.msra.mxu0 0.0
      %2216 = vmatprep.subr.mxu0 0.0
      %2217 = vmatpush1.msra.mxu0 0.0
      %2218 = vmatprep.subr.mxu0 0.0
      %2219 = vmatpush1.msra.mxu0 0.0
      %2220 = vmatprep.subr.mxu0 0.0
      %2221 = vmatpush1.msra.mxu0 0.0
      %2222 = vmatprep.subr.mxu0 0.0
      %2223 = vmatpush1.msra.mxu0 0.0
      %2224 = vmatprep.subr.mxu0 0.0
      %2225 = vmatpush1.msra.mxu0 0.0
      %2226 = vmatprep.subr.mxu0 0.0
      %2227 = vmatpush1.msra.mxu0 0.0
      %2228 = vmatprep.subr.mxu0 0.0
      %2229 = vmatpush1.msra.mxu0 0.0
      %2230 = vmatprep.subr.mxu0 0.0
      %2231 = vmatpush1.msra.mxu0 0.0
      %2232 = vmatprep.subr.mxu0 0.0
      %2233 = vmatpush1.msra.mxu0 0.0
      %2234 = vmatprep.subr.mxu0 0.0
      %2235 = vmatpush1.msra.mxu0 0.0
      %2236 = vmatprep.subr.mxu0 0.0
      %2237 = vmatpush1.msra.mxu0 0.0
      %2238 = vmatprep.subr.mxu0 0.0
      %2239 = vmatpush1.msra.mxu0 %v2194
      %2240 = vmatprep.subr.mxu0 0.0
      %2241 = vmatpush2.msra.mxu0 0.0
      %2242 = vmatprep.subr.mxu0 0.0
      %2243 = vmatpush2.msra.mxu0 0.0
      %2244 = vmatprep.subr.mxu0 0.0
      %2245 = vmatpush2.msra.mxu0 0.0
      %2246 = vmatprep.subr.mxu0 0.0
      %2247 = vmatpush2.msra.mxu0 0.0
      %2248 = vmatprep.subr.mxu0 0.0
      %2249 = vmatpush2.msra.mxu0 0.0
      %2250 = vmatprep.subr.mxu0 0.0
      %2251 = vmatpush2.msra.mxu0 0.0
      %2252 = vmatprep.subr.mxu0 0.0
      %2253 = vmatpush2.msra.mxu0 0.0
      %2254 = vmatprep.subr.mxu0 0.0
      %2255 = vmatpush2.msra.mxu0 0.0
      %2256 = vmatprep.subr.mxu0 0.0
      %2257 = vmatpush2.msra.mxu0 0.0
      %2258 = vmatprep.subr.mxu0 0.0
      %2259 = vmatpush2.msra.mxu0 0.0
      %2260 = vmatprep.subr.mxu0 0.0
      %2261 = vmatpush2.msra.mxu0 0.0
      %2262 = vmatprep.subr.mxu0 0.0
      %2263 = vmatpush2.msra.mxu0 0.0
      %2264 = vmatprep.subr.mxu0 0.0
      %2265 = vmatpush2.msra.mxu0 0.0
      %2266 = vmatprep.subr.mxu0 0.0
      %2267 = vmatpush2.msra.mxu0 0.0
      %2268 = vmatprep.subr.mxu0 0.0
      %2269 = vmatpush2.msra.mxu0 0.0
      %2270 = vmatprep.subr.mxu0 0.0
      %2271 = vmatpush2.msra.mxu0 0.0
      %2272 = vmatprep.mubr.f32.mxu0 0.0
      %2273 = vmatmul.mubr.f32.gmra.mxu0 %v2197
      %v2274 = vpop.f32.mrf.mxu0
      %v2275 = vadd.f32 0.0, %v2274
      %v2276 = vpop.f32.mrf.mxu0
      %2277 = vmatprep.mubr.f32.mxu0 0.0
      %2278 = vmatmul.mubr.f32.gmra.mxu0 %v2200
      %v2279 = vpop.f32.mrf.mxu0
      %v2280 = vadd.f32 0.0, %v2279
      %v2281 = vpop.f32.mrf.mxu0
      %2282 = vmatprep.mubr.f32.mxu0 0.0
      %2283 = vmatmul.mubr.f32.gmra.mxu0 %v2203
      %v2284 = vpop.f32.mrf.mxu0
      %v2285 = vadd.f32 0.0, %v2284
      %v2286 = vpop.f32.mrf.mxu0
      %2287 = vmatprep.mubr.f32.mxu0 0.0
      %2288 = vmatmul.mubr.f32.gmra.mxu0 %v2206
      %v2289 = vpop.f32.mrf.mxu0
      %v2290 = vadd.f32 0.0, %v2289
      %v2291 = vpop.f32.mrf.mxu0
      %2292 = vdwg.mxu0
      %v2293 = vadd.f32 %v2184, %v2275
      %v2294 = vadd.f32 %v2185, %v2280
      %v2295 = vadd.f32 %v2186, %v2285
      %v2296 = vadd.f32 %v2187, %v2290
      %s2297 = scalar_lea.vmem %s3, 192
      %v2298 = vld [vmem:[%s2297] sm:$0xff]
      %v2299 = vld [vmem:[%s2297 + $0x8] sm:$0xff]
      %v2300 = vld [vmem:[%s2297 + $0x10] sm:$0xff]
      %v2301 = vld [vmem:[%s2297 + $0x18] sm:$0xff]
      %2302 = vrot.lane.b32.xlu0 %v1656, 110
      %v2303 = vpop.permute.xlu0 %2302
      %v2306 = vsel %vm1666, %v2298, 0
      %v2309 = vsel %vm1666, %v2299, 0
      %v2312 = vsel %vm1666, %v2300, 0
      %v2315 = vsel %vm1666, %v2301, 0
      %2317 = vmatprep.subr.mxu0 0.0
      %2318 = vmatpush1.msra.mxu0 0.0
      %2319 = vmatprep.subr.mxu0 0.0
      %2320 = vmatpush1.msra.mxu0 0.0
      %2321 = vmatprep.subr.mxu0 0.0
      %2322 = vmatpush1.msra.mxu0 0.0
      %2323 = vmatprep.subr.mxu0 0.0
      %2324 = vmatpush1.msra.mxu0 0.0
      %2325 = vmatprep.subr.mxu0 0.0
      %2326 = vmatpush1.msra.mxu0 0.0
      %2327 = vmatprep.subr.mxu0 0.0
      %2328 = vmatpush1.msra.mxu0 0.0
      %2329 = vmatprep.subr.mxu0 0.0
      %2330 = vmatpush1.msra.mxu0 0.0
      %2331 = vmatprep.subr.mxu0 0.0
      %2332 = vmatpush1.msra.mxu0 0.0
      %2333 = vmatprep.subr.mxu0 0.0
      %2334 = vmatpush1.msra.mxu0 0.0
      %2335 = vmatprep.subr.mxu0 0.0
      %2336 = vmatpush1.msra.mxu0 0.0
      %2337 = vmatprep.subr.mxu0 0.0
      %2338 = vmatpush1.msra.mxu0 0.0
      %2339 = vmatprep.subr.mxu0 0.0
      %2340 = vmatpush1.msra.mxu0 0.0
      %2341 = vmatprep.subr.mxu0 0.0
      %2342 = vmatpush1.msra.mxu0 0.0
      %2343 = vmatprep.subr.mxu0 0.0
      %2344 = vmatpush1.msra.mxu0 0.0
      %2345 = vmatprep.subr.mxu0 0.0
      %2346 = vmatpush1.msra.mxu0 0.0
      %2347 = vmatprep.subr.mxu0 0.0
      %2348 = vmatpush1.msra.mxu0 %v2303
      %2349 = vmatprep.subr.mxu0 0.0
      %2350 = vmatpush2.msra.mxu0 0.0
      %2351 = vmatprep.subr.mxu0 0.0
      %2352 = vmatpush2.msra.mxu0 0.0
      %2353 = vmatprep.subr.mxu0 0.0
      %2354 = vmatpush2.msra.mxu0 0.0
      %2355 = vmatprep.subr.mxu0 0.0
      %2356 = vmatpush2.msra.mxu0 0.0
      %2357 = vmatprep.subr.mxu0 0.0
      %2358 = vmatpush2.msra.mxu0 0.0
      %2359 = vmatprep.subr.mxu0 0.0
      %2360 = vmatpush2.msra.mxu0 0.0
      %2361 = vmatprep.subr.mxu0 0.0
      %2362 = vmatpush2.msra.mxu0 0.0
      %2363 = vmatprep.subr.mxu0 0.0
      %2364 = vmatpush2.msra.mxu0 0.0
      %2365 = vmatprep.subr.mxu0 0.0
      %2366 = vmatpush2.msra.mxu0 0.0
      %2367 = vmatprep.subr.mxu0 0.0
      %2368 = vmatpush2.msra.mxu0 0.0
      %2369 = vmatprep.subr.mxu0 0.0
      %2370 = vmatpush2.msra.mxu0 0.0
      %2371 = vmatprep.subr.mxu0 0.0
      %2372 = vmatpush2.msra.mxu0 0.0
      %2373 = vmatprep.subr.mxu0 0.0
      %2374 = vmatpush2.msra.mxu0 0.0
      %2375 = vmatprep.subr.mxu0 0.0
      %2376 = vmatpush2.msra.mxu0 0.0
      %2377 = vmatprep.subr.mxu0 0.0
      %2378 = vmatpush2.msra.mxu0 0.0
      %2379 = vmatprep.subr.mxu0 0.0
      %2380 = vmatpush2.msra.mxu0 0.0
      %2381 = vmatprep.mubr.f32.mxu0 0.0
      %2382 = vmatmul.mubr.f32.gmra.mxu0 %v2306
      %v2383 = vpop.f32.mrf.mxu0
      %v2384 = vadd.f32 0.0, %v2383
      %v2385 = vpop.f32.mrf.mxu0
      %2386 = vmatprep.mubr.f32.mxu0 0.0
      %2387 = vmatmul.mubr.f32.gmra.mxu0 %v2309
      %v2388 = vpop.f32.mrf.mxu0
      %v2389 = vadd.f32 0.0, %v2388
      %v2390 = vpop.f32.mrf.mxu0
      %2391 = vmatprep.mubr.f32.mxu0 0.0
      %2392 = vmatmul.mubr.f32.gmra.mxu0 %v2312
      %v2393 = vpop.f32.mrf.mxu0
      %v2394 = vadd.f32 0.0, %v2393
      %v2395 = vpop.f32.mrf.mxu0
      %2396 = vmatprep.mubr.f32.mxu0 0.0
      %2397 = vmatmul.mubr.f32.gmra.mxu0 %v2315
      %v2398 = vpop.f32.mrf.mxu0
      %v2399 = vadd.f32 0.0, %v2398
      %v2400 = vpop.f32.mrf.mxu0
      %2401 = vdwg.mxu0
      %v2402 = vadd.f32 %v2293, %v2384
      %v2403 = vadd.f32 %v2294, %v2389
      %v2404 = vadd.f32 %v2295, %v2394
      %v2405 = vadd.f32 %v2296, %v2399
      %s2406 = scalar_lea.vmem %s3, 224
      %v2407 = vld [vmem:[%s2406] sm:$0xff]
      %v2408 = vld [vmem:[%s2406 + $0x8] sm:$0xff]
      %v2409 = vld [vmem:[%s2406 + $0x10] sm:$0xff]
      %v2410 = vld [vmem:[%s2406 + $0x18] sm:$0xff]
      %2411 = vrot.lane.b32.xlu0 %v1656, 109
      %v2412 = vpop.permute.xlu0 %2411
      %v2415 = vsel %vm1666, %v2407, 0
      %v2418 = vsel %vm1666, %v2408, 0
      %v2421 = vsel %vm1666, %v2409, 0
      %v2424 = vsel %vm1666, %v2410, 0
      %2426 = vmatprep.subr.mxu0 0.0
      %2427 = vmatpush1.msra.mxu0 0.0
      %2428 = vmatprep.subr.mxu0 0.0
      %2429 = vmatpush1.msra.mxu0 0.0
      %2430 = vmatprep.subr.mxu0 0.0
      %2431 = vmatpush1.msra.mxu0 0.0
      %2432 = vmatprep.subr.mxu0 0.0
      %2433 = vmatpush1.msra.mxu0 0.0
      %2434 = vmatprep.subr.mxu0 0.0
      %2435 = vmatpush1.msra.mxu0 0.0
      %2436 = vmatprep.subr.mxu0 0.0
      %2437 = vmatpush1.msra.mxu0 0.0
      %2438 = vmatprep.subr.mxu0 0.0
      %2439 = vmatpush1.msra.mxu0 0.0
      %2440 = vmatprep.subr.mxu0 0.0
      %2441 = vmatpush1.msra.mxu0 0.0
      %2442 = vmatprep.subr.mxu0 0.0
      %2443 = vmatpush1.msra.mxu0 0.0
      %2444 = vmatprep.subr.mxu0 0.0
      %2445 = vmatpush1.msra.mxu0 0.0
      %2446 = vmatprep.subr.mxu0 0.0
      %2447 = vmatpush1.msra.mxu0 0.0
      %2448 = vmatprep.subr.mxu0 0.0
      %2449 = vmatpush1.msra.mxu0 0.0
      %2450 = vmatprep.subr.mxu0 0.0
      %2451 = vmatpush1.msra.mxu0 0.0
      %2452 = vmatprep.subr.mxu0 0.0
      %2453 = vmatpush1.msra.mxu0 0.0
      %2454 = vmatprep.subr.mxu0 0.0
      %2455 = vmatpush1.msra.mxu0 0.0
      %2456 = vmatprep.subr.mxu0 0.0
      %2457 = vmatpush1.msra.mxu0 %v2412
      %2458 = vmatprep.subr.mxu0 0.0
      %2459 = vmatpush2.msra.mxu0 0.0
      %2460 = vmatprep.subr.mxu0 0.0
      %2461 = vmatpush2.msra.mxu0 0.0
      %2462 = vmatprep.subr.mxu0 0.0
      %2463 = vmatpush2.msra.mxu0 0.0
      %2464 = vmatprep.subr.mxu0 0.0
      %2465 = vmatpush2.msra.mxu0 0.0
      %2466 = vmatprep.subr.mxu0 0.0
      %2467 = vmatpush2.msra.mxu0 0.0
      %2468 = vmatprep.subr.mxu0 0.0
      %2469 = vmatpush2.msra.mxu0 0.0
      %2470 = vmatprep.subr.mxu0 0.0
      %2471 = vmatpush2.msra.mxu0 0.0
      %2472 = vmatprep.subr.mxu0 0.0
      %2473 = vmatpush2.msra.mxu0 0.0
      %2474 = vmatprep.subr.mxu0 0.0
      %2475 = vmatpush2.msra.mxu0 0.0
      %2476 = vmatprep.subr.mxu0 0.0
      %2477 = vmatpush2.msra.mxu0 0.0
      %2478 = vmatprep.subr.mxu0 0.0
      %2479 = vmatpush2.msra.mxu0 0.0
      %2480 = vmatprep.subr.mxu0 0.0
      %2481 = vmatpush2.msra.mxu0 0.0
      %2482 = vmatprep.subr.mxu0 0.0
      %2483 = vmatpush2.msra.mxu0 0.0
      %2484 = vmatprep.subr.mxu0 0.0
      %2485 = vmatpush2.msra.mxu0 0.0
      %2486 = vmatprep.subr.mxu0 0.0
      %2487 = vmatpush2.msra.mxu0 0.0
      %2488 = vmatprep.subr.mxu0 0.0
      %2489 = vmatpush2.msra.mxu0 0.0
      %2490 = vmatprep.mubr.f32.mxu0 0.0
      %2491 = vmatmul.mubr.f32.gmra.mxu0 %v2415
      %v2492 = vpop.f32.mrf.mxu0
      %v2493 = vadd.f32 0.0, %v2492
      %v2494 = vpop.f32.mrf.mxu0
      %2495 = vmatprep.mubr.f32.mxu0 0.0
      %2496 = vmatmul.mubr.f32.gmra.mxu0 %v2418
      %v2497 = vpop.f32.mrf.mxu0
      %v2498 = vadd.f32 0.0, %v2497
      %v2499 = vpop.f32.mrf.mxu0
      %2500 = vmatprep.mubr.f32.mxu0 0.0
      %2501 = vmatmul.mubr.f32.gmra.mxu0 %v2421
      %v2502 = vpop.f32.mrf.mxu0
      %v2503 = vadd.f32 0.0, %v2502
      %v2504 = vpop.f32.mrf.mxu0
      %2505 = vmatprep.mubr.f32.mxu0 0.0
      %2506 = vmatmul.mubr.f32.gmra.mxu0 %v2424
      %v2507 = vpop.f32.mrf.mxu0
      %v2508 = vadd.f32 0.0, %v2507
      %v2509 = vpop.f32.mrf.mxu0
      %2510 = vdwg.mxu0
      %v2511 = vadd.f32 %v2402, %v2493
      %v2512 = vadd.f32 %v2403, %v2498
      %v2513 = vadd.f32 %v2404, %v2503
      %v2514 = vadd.f32 %v2405, %v2508
      %s2515 = scalar_lea.vmem %s3, 256
      %v2516 = vld [vmem:[%s2515] sm:$0xff]
      %v2517 = vld [vmem:[%s2515 + $0x8] sm:$0xff]
      %v2518 = vld [vmem:[%s2515 + $0x10] sm:$0xff]
      %v2519 = vld [vmem:[%s2515 + $0x18] sm:$0xff]
      %2520 = vrot.lane.b32.xlu0 %v1656, 108
      %v2521 = vpop.permute.xlu0 %2520
      %v2524 = vsel %vm1666, %v2516, 0
      %v2527 = vsel %vm1666, %v2517, 0
      %v2530 = vsel %vm1666, %v2518, 0
      %v2533 = vsel %vm1666, %v2519, 0
      %2535 = vmatprep.subr.mxu0 0.0
      %2536 = vmatpush1.msra.mxu0 0.0
      %2537 = vmatprep.subr.mxu0 0.0
      %2538 = vmatpush1.msra.mxu0 0.0
      %2539 = vmatprep.subr.mxu0 0.0
      %2540 = vmatpush1.msra.mxu0 0.0
      %2541 = vmatprep.subr.mxu0 0.0
      %2542 = vmatpush1.msra.mxu0 0.0
      %2543 = vmatprep.subr.mxu0 0.0
      %2544 = vmatpush1.msra.mxu0 0.0
      %2545 = vmatprep.subr.mxu0 0.0
      %2546 = vmatpush1.msra.mxu0 0.0
      %2547 = vmatprep.subr.mxu0 0.0
      %2548 = vmatpush1.msra.mxu0 0.0
      %2549 = vmatprep.subr.mxu0 0.0
      %2550 = vmatpush1.msra.mxu0 0.0
      %2551 = vmatprep.subr.mxu0 0.0
      %2552 = vmatpush1.msra.mxu0 0.0
      %2553 = vmatprep.subr.mxu0 0.0
      %2554 = vmatpush1.msra.mxu0 0.0
      %2555 = vmatprep.subr.mxu0 0.0
      %2556 = vmatpush1.msra.mxu0 0.0
      %2557 = vmatprep.subr.mxu0 0.0
      %2558 = vmatpush1.msra.mxu0 0.0
      %2559 = vmatprep.subr.mxu0 0.0
      %2560 = vmatpush1.msra.mxu0 0.0
      %2561 = vmatprep.subr.mxu0 0.0
      %2562 = vmatpush1.msra.mxu0 0.0
      %2563 = vmatprep.subr.mxu0 0.0
      %2564 = vmatpush1.msra.mxu0 0.0
      %2565 = vmatprep.subr.mxu0 0.0
      %2566 = vmatpush1.msra.mxu0 %v2521
      %2567 = vmatprep.subr.mxu0 0.0
      %2568 = vmatpush2.msra.mxu0 0.0
      %2569 = vmatprep.subr.mxu0 0.0
      %2570 = vmatpush2.msra.mxu0 0.0
      %2571 = vmatprep.subr.mxu0 0.0
      %2572 = vmatpush2.msra.mxu0 0.0
      %2573 = vmatprep.subr.mxu0 0.0
      %2574 = vmatpush2.msra.mxu0 0.0
      %2575 = vmatprep.subr.mxu0 0.0
      %2576 = vmatpush2.msra.mxu0 0.0
      %2577 = vmatprep.subr.mxu0 0.0
      %2578 = vmatpush2.msra.mxu0 0.0
      %2579 = vmatprep.subr.mxu0 0.0
      %2580 = vmatpush2.msra.mxu0 0.0
      %2581 = vmatprep.subr.mxu0 0.0
      %2582 = vmatpush2.msra.mxu0 0.0
      %2583 = vmatprep.subr.mxu0 0.0
      %2584 = vmatpush2.msra.mxu0 0.0
      %2585 = vmatprep.subr.mxu0 0.0
      %2586 = vmatpush2.msra.mxu0 0.0
      %2587 = vmatprep.subr.mxu0 0.0
      %2588 = vmatpush2.msra.mxu0 0.0
      %2589 = vmatprep.subr.mxu0 0.0
      %2590 = vmatpush2.msra.mxu0 0.0
      %2591 = vmatprep.subr.mxu0 0.0
      %2592 = vmatpush2.msra.mxu0 0.0
      %2593 = vmatprep.subr.mxu0 0.0
      %2594 = vmatpush2.msra.mxu0 0.0
      %2595 = vmatprep.subr.mxu0 0.0
      %2596 = vmatpush2.msra.mxu0 0.0
      %2597 = vmatprep.subr.mxu0 0.0
      %2598 = vmatpush2.msra.mxu0 0.0
      %2599 = vmatprep.mubr.f32.mxu0 0.0
      %2600 = vmatmul.mubr.f32.gmra.mxu0 %v2524
      %v2601 = vpop.f32.mrf.mxu0
      %v2602 = vadd.f32 0.0, %v2601
      %v2603 = vpop.f32.mrf.mxu0
      %2604 = vmatprep.mubr.f32.mxu0 0.0
      %2605 = vmatmul.mubr.f32.gmra.mxu0 %v2527
      %v2606 = vpop.f32.mrf.mxu0
      %v2607 = vadd.f32 0.0, %v2606
      %v2608 = vpop.f32.mrf.mxu0
      %2609 = vmatprep.mubr.f32.mxu0 0.0
      %2610 = vmatmul.mubr.f32.gmra.mxu0 %v2530
      %v2611 = vpop.f32.mrf.mxu0
      %v2612 = vadd.f32 0.0, %v2611
      %v2613 = vpop.f32.mrf.mxu0
      %2614 = vmatprep.mubr.f32.mxu0 0.0
      %2615 = vmatmul.mubr.f32.gmra.mxu0 %v2533
      %v2616 = vpop.f32.mrf.mxu0
      %v2617 = vadd.f32 0.0, %v2616
      %v2618 = vpop.f32.mrf.mxu0
      %2619 = vdwg.mxu0
      %v2620 = vadd.f32 %v2511, %v2602
      %v2621 = vadd.f32 %v2512, %v2607
      %v2622 = vadd.f32 %v2513, %v2612
      %v2623 = vadd.f32 %v2514, %v2617
      %v2624 = vld [vmem:[%s4] sm:$0xff]
      %v2625 = vld [vmem:[%s4 + $0x8] sm:$0xff]
      %v2626 = vld [vmem:[%s4 + $0x10] sm:$0xff]
      %v2627 = vld [vmem:[%s4 + $0x18] sm:$0xff]
      %2629 = vset.pattern.permute.xlu0 0
      %2630 = vperm.xlu0 %2629, %v2624
      %v2631 = vpop.permute.xlu0 %2630
      %2634 = vset.pattern.permute.xlu0 0
      %2635 = vperm.xlu0 %2634, %v2625
      %v2636 = vpop.permute.xlu0 %2635
      %2639 = vset.pattern.permute.xlu0 0
      %2640 = vperm.xlu0 %2639, %v2626
      %v2641 = vpop.permute.xlu0 %2640
      %2644 = vset.pattern.permute.xlu0 0
      %2645 = vperm.xlu0 %2644, %v2627
      %v2646 = vpop.permute.xlu0 %2645
      %v2648 = vadd.f32 %v2620, %v2631
      %v2649 = vadd.f32 %v2621, %v2636
      %v2650 = vadd.f32 %v2622, %v2641
      %v2651 = vadd.f32 %v2623, %v2646
      %v2652 = vmax.f32 %v2648, 0.0
      %v2653 = vmax.f32 %v2649, 0.0
      %v2654 = vmax.f32 %v2650, 0.0
      %v2655 = vmax.f32 %v2651, 0.0
      %vm2656 = vcmask 498688
      %2657 = vst.msk [vmem:[#allocation4] sm:$0xff] %vm2656, %v2652
      %2658 = vst.msk [vmem:[#allocation4 + $0x8] sm:$0xff] %vm2656, %v2653
      %2659 = vst.msk [vmem:[#allocation4 + $0x10] sm:$0xff] %vm2656, %v2654
      %2660 = vst.msk [vmem:[#allocation4 + $0x18] sm:$0xff] %vm2656, %v2655
      %v2661 = vld [vmem:[#allocation4] sm:$0xff]
      %v2662 = vld [vmem:[#allocation4 + $0x8] sm:$0xff]
      %v2663 = vld [vmem:[#allocation4 + $0x10] sm:$0xff]
      %v2664 = vld [vmem:[#allocation4 + $0x18] sm:$0xff]
      %2669 = vrot.lane.b32.xlu0 %v2661, 127
      %v2670 = vpop.permute.xlu0 %2669
      %2671 = vrot.lane.b32.xlu0 %v2662, 127
      %v2672 = vpop.permute.xlu0 %2671
      %2673 = vrot.lane.b32.xlu0 %v2663, 127
      %v2674 = vpop.permute.xlu0 %2673
      %2675 = vrot.lane.b32.xlu0 %v2664, 127
      %v2676 = vpop.permute.xlu0 %2675
      %v2681 = vmax.f32 %v2661, %v2670
      %v2682 = vmax.f32 %v2662, %v2672
      %v2683 = vmax.f32 %v2663, %v2674
      %v2684 = vmax.f32 %v2664, %v2676
      %2685 = vrot.lane.b32.xlu0 %v2661, 126
      %v2686 = vpop.permute.xlu0 %2685
      %2687 = vrot.lane.b32.xlu0 %v2662, 126
      %v2688 = vpop.permute.xlu0 %2687
      %2689 = vrot.lane.b32.xlu0 %v2663, 126
      %v2690 = vpop.permute.xlu0 %2689
      %2691 = vrot.lane.b32.xlu0 %v2664, 126
      %v2692 = vpop.permute.xlu0 %2691
      %v2697 = vmax.f32 %v2681, %v2686
      %v2698 = vmax.f32 %v2682, %v2688
      %v2699 = vmax.f32 %v2683, %v2690
      %v2700 = vmax.f32 %v2684, %v2692
      %2705 = vrot.lane.b32.xlu0 %v2697, 119
      %v2706 = vpop.permute.xlu0 %2705
      %2707 = vrot.lane.b32.xlu0 %v2698, 119
      %v2708 = vpop.permute.xlu0 %2707
      %2709 = vrot.lane.b32.xlu0 %v2699, 119
      %v2710 = vpop.permute.xlu0 %2709
      %2711 = vrot.lane.b32.xlu0 %v2700, 119
      %v2712 = vpop.permute.xlu0 %2711
      %v2717 = vmax.f32 %v2697, %v2706
      %v2718 = vmax.f32 %v2698, %v2708
      %v2719 = vmax.f32 %v2699, %v2710
      %v2720 = vmax.f32 %v2700, %v2712
      %2721 = vrot.lane.b32.xlu0 %v2697, 110
      %v2722 = vpop.permute.xlu0 %2721
      %2723 = vrot.lane.b32.xlu0 %v2698, 110
      %v2724 = vpop.permute.xlu0 %2723
      %2725 = vrot.lane.b32.xlu0 %v2699, 110
      %v2726 = vpop.permute.xlu0 %2725
      %2727 = vrot.lane.b32.xlu0 %v2700, 110
      %v2728 = vpop.permute.xlu0 %2727
      %v2733 = vmax.f32 %v2717, %v2722
      %v2734 = vmax.f32 %v2718, %v2724
      %v2735 = vmax.f32 %v2719, %v2726
      %v2736 = vmax.f32 %v2720, %v2728
      %v2737 = vld [vmem:[%s6] sm:$0xff]
      %v2738 = vld [vmem:[%s6 + $0x8] sm:$0xff]
      %v2739 = vld [vmem:[%s6 + $0x10] sm:$0xff]
      %v2740 = vld [vmem:[%s6 + $0x18] sm:$0xff]
      %v2741 = vld [vmem:[%s6 + $0x20] sm:$0xff]
      %v2742 = vld [vmem:[%s6 + $0x28] sm:$0x1]
      %vm2743 = vcmask 334848
      %v2745 = vsel %vm2743, %v2733, 0
      %v2748 = vsel %vm2743, %v2734, 0
      %v2751 = vsel %vm2743, %v2735, 0
      %v2754 = vsel %vm2743, %v2736, 0
      %v2757 = vsel %vm1576, %v2742, 0
      %2759 = vmatprep.subr.mxu0 0.0
      %2760 = vmatpush1.msra.mxu0 0.0
      %2761 = vmatprep.subr.mxu0 0.0
      %2762 = vmatpush1.msra.mxu0 0.0
      %2763 = vmatprep.subr.mxu0 0.0
      %2764 = vmatpush1.msra.mxu0 0.0
      %2765 = vmatprep.subr.mxu0 0.0
      %2766 = vmatpush1.msra.mxu0 0.0
      %2767 = vmatprep.subr.mxu0 0.0
      %2768 = vmatpush1.msra.mxu0 0.0
      %2769 = vmatprep.subr.mxu0 0.0
      %2770 = vmatpush1.msra.mxu0 0.0
      %2771 = vmatprep.subr.mxu0 0.0
      %2772 = vmatpush1.msra.mxu0 0.0
      %2773 = vmatprep.subr.mxu0 0.0
      %2774 = vmatpush1.msra.mxu0 0.0
      %2775 = vmatprep.subr.mxu0 0.0
      %2776 = vmatpush1.msra.mxu0 0.0
      %2777 = vmatprep.subr.mxu0 0.0
      %2778 = vmatpush1.msra.mxu0 0.0
      %2779 = vmatprep.subr.mxu0 0.0
      %2780 = vmatpush1.msra.mxu0 %v2757
      %2781 = vmatprep.subr.mxu0 0.0
      %2782 = vmatpush1.msra.mxu0 %v2741
      %2783 = vmatprep.subr.mxu0 0.0
      %2784 = vmatpush1.msra.mxu0 %v2740
      %2785 = vmatprep.subr.mxu0 0.0
      %2786 = vmatpush1.msra.mxu0 %v2739
      %2787 = vmatprep.subr.mxu0 0.0
      %2788 = vmatpush1.msra.mxu0 %v2738
      %2789 = vmatprep.subr.mxu0 0.0
      %2790 = vmatpush1.msra.mxu0 %v2737
      %2791 = vmatprep.subr.mxu0 0.0
      %2792 = vmatpush2.msra.mxu0 0.0
      %2793 = vmatprep.subr.mxu0 0.0
      %2794 = vmatpush2.msra.mxu0 0.0
      %2795 = vmatprep.subr.mxu0 0.0
      %2796 = vmatpush2.msra.mxu0 0.0
      %2797 = vmatprep.subr.mxu0 0.0
      %2798 = vmatpush2.msra.mxu0 0.0
      %2799 = vmatprep.subr.mxu0 0.0
      %2800 = vmatpush2.msra.mxu0 0.0
      %2801 = vmatprep.subr.mxu0 0.0
      %2802 = vmatpush2.msra.mxu0 0.0
      %2803 = vmatprep.subr.mxu0 0.0
      %2804 = vmatpush2.msra.mxu0 0.0
      %2805 = vmatprep.subr.mxu0 0.0
      %2806 = vmatpush2.msra.mxu0 0.0
      %2807 = vmatprep.subr.mxu0 0.0
      %2808 = vmatpush2.msra.mxu0 0.0
      %2809 = vmatprep.subr.mxu0 0.0
      %2810 = vmatpush2.msra.mxu0 0.0
      %2811 = vmatprep.subr.mxu0 0.0
      %2812 = vmatpush2.msra.mxu0 0.0
      %2813 = vmatprep.subr.mxu0 0.0
      %2814 = vmatpush2.msra.mxu0 0.0
      %2815 = vmatprep.subr.mxu0 0.0
      %2816 = vmatpush2.msra.mxu0 0.0
      %2817 = vmatprep.subr.mxu0 0.0
      %2818 = vmatpush2.msra.mxu0 0.0
      %2819 = vmatprep.subr.mxu0 0.0
      %2820 = vmatpush2.msra.mxu0 0.0
      %2821 = vmatprep.subr.mxu0 0.0
      %2822 = vmatpush2.msra.mxu0 0.0
      %2823 = vmatprep.mubr.f32.mxu0 0.0
      %2824 = vmatmul.mubr.f32.gmra.mxu0 %v2745
      %v2825 = vpop.f32.mrf.mxu0
      %v2826 = vadd.f32 0.0, %v2825
      %v2827 = vpop.f32.mrf.mxu0
      %2828 = vmatprep.mubr.f32.mxu0 0.0
      %2829 = vmatmul.mubr.f32.gmra.mxu0 %v2748
      %v2830 = vpop.f32.mrf.mxu0
      %v2831 = vadd.f32 0.0, %v2830
      %v2832 = vpop.f32.mrf.mxu0
      %2833 = vmatprep.mubr.f32.mxu0 0.0
      %2834 = vmatmul.mubr.f32.gmra.mxu0 %v2751
      %v2835 = vpop.f32.mrf.mxu0
      %v2836 = vadd.f32 0.0, %v2835
      %v2837 = vpop.f32.mrf.mxu0
      %2838 = vmatprep.mubr.f32.mxu0 0.0
      %2839 = vmatmul.mubr.f32.gmra.mxu0 %v2754
      %v2840 = vpop.f32.mrf.mxu0
      %v2841 = vadd.f32 0.0, %v2840
      %v2842 = vpop.f32.mrf.mxu0
      %2843 = vdwg.mxu0
      %vm2844 = vcmask 293888
      %2845 = vst.msk [vmem:[%s278] sm:$0xff] %vm2844, %v2826
      %2846 = vst.msk [vmem:[%s278 + $0x8] sm:$0xff] %vm2844, %v2831
      %2847 = vst.msk [vmem:[%s278 + $0x10] sm:$0xff] %vm2844, %v2836
      %2848 = vst.msk [vmem:[%s278 + $0x18] sm:$0xff] %vm2844, %v2841
      %p2849 = scmp.lt.s32.totalorder %s18, 1
      %s2850 = scalar_select %p2849, %s18, 1
      %s2851 = smul.addr %s2850, 4
      %s2852 = smul.addr %s2851, 8
      %s2853 = scalar_lea.vmem %s7, %s2852
      // Predicated region
      $region49: #{comp_feature_extractor.1} parent=47 // pred_check
        %p2854 = pneg %p188
      $region50: #{comp_feature_extractor.1} parent=47 // pred_check_branch
        %2856 = sbr.rel (%p2854) target = $region52
      $region51: #{comp_feature_extractor.1} parent=47 // pred_region
        _
      $region52: #{comp_feature_extractor.1} parent=47 // pred_fallthru
        _
    $region48: #{comp_feature_extractor.1} parent=5 // pred_fallthru
      _
    %p2857 = scmp.le.s32.totalorder 2, %s13
    // Predicated region
    $region53: #{comp_feature_extractor.1} parent=5 // pred_check
      %p2858 = pneg %p2857
    $region54: #{comp_feature_extractor.1} parent=5 // pred_check_branch
      %2860 = sbr.rel (%p2858) target = $region56
    $region55: #{comp_feature_extractor.1} parent=5 // pred_region
      %s2861 = ssub.s32 %s13, 2
      // Predicated region
      $region57: #{comp_feature_extractor.1} parent=55 // pred_check
        %p2862 = pneg %p194
      $region58: #{comp_feature_extractor.1} parent=55 // pred_check_branch
        %2864 = sbr.rel (%p2862) target = $region60
      $region59: #{comp_feature_extractor.1} parent=55 // pred_region
        %p2865 = scmp.lt.s32.totalorder %s19, 1
        %s2866 = scalar_select %p2865, %s19, 1
        %s2867 = smul.addr %s2866, 4
        %s2868 = smul.addr %s2867, 8
        %s2869 = scalar_lea.vmem %s7, %s2868
      $region60: #{comp_feature_extractor.1} parent=55 // pred_fallthru
        _
    $region56: #{comp_feature_extractor.1} parent=5 // pred_fallthru
      _
  $region6: #{comp_feature_extractor.1} parent=0 // loop_footer
    %s17 = sadd.s32 1, %s13
  $region7: #{comp_feature_extractor.1} parent=0 // loop_footer_branch
    %12 = sbr.rel target = $region3
  $region8: #{comp_feature_extractor.1} parent=0 // loop_exit
    _

</llo_original>
